<compile_context>
chip_gen: v6e
topology: v6e:2x2x1
jax: 0.10.0
libtpu: 0.0.40
codegen_flags: <defaults>
</compile_context>

<pallas_src>
import functools
import math

import jax
import jax.numpy as jnp
from jax import lax
from jax.experimental import pallas as pl
from jax.experimental.pallas import tpu as pltpu


_VMEM_LIMIT = 32 * 1024 * 1024  # safe on v5e/v6e (128 MiB) and v7x (64 MiB)


def _tile(dim, cap):
    """Largest tile <= cap that evenly divides dim (falls back to full dim)."""
    if dim <= cap:
        return dim
    if dim % cap == 0:
        return cap
    # TODO(synk): ragged dims would need masked tiles; full-dim fallback for now.
    return dim


# ----------------------------------------------------------------------------
# Tiled linear kernel:  o = act(x @ w + b) + residual
#   grid = (M/tm, N/tn, K/tk), f32 accumulator scratch, epilogue on last k.
# ----------------------------------------------------------------------------
def _make_linear_kernel(activation, w_transposed, has_bias, has_residual):
    def kernel(*refs):
        idx = 0
        x_ref = refs[idx]; idx += 1
        w_ref = refs[idx]; idx += 1
        b_ref = None
        if has_bias:
            b_ref = refs[idx]; idx += 1
        r_ref = None
        if has_residual:
            r_ref = refs[idx]; idx += 1
        o_ref = refs[idx]; idx += 1
        acc_ref = refs[idx]

        k = pl.program_id(2)

        @pl.when(k == 0)
        def _():
            acc_ref[...] = jnp.zeros_like(acc_ref)

        x = x_ref[...]
        w = w_ref[...]
        if w_transposed:  # w is (N, K); contract last dims (no transpose copy)
            acc_ref[...] += lax.dot_general(
                x, w, (((1,), (1,)), ((), ())),
                preferred_element_type=jnp.float32)
        else:             # w is (K, N)
            acc_ref[...] += jnp.dot(x, w, preferred_element_type=jnp.float32)

        @pl.when(k == pl.num_programs(2) - 1)
        def _():
            y = acc_ref[...]
            if has_bias:
                y = y + b_ref[...].astype(jnp.float32)
            if activation == "gelu":
                y = jax.nn.gelu(y)
            if has_residual:
                y = y + r_ref[...].astype(jnp.float32)
            o_ref[...] = y.astype(o_ref.dtype)

    return kernel


def linear(x, w, b=None, *, residual=None, activation=None, w_transposed=False,
           out_dtype=jnp.bfloat16, tm=256, tn=512, tk=512):
    M, K = x.shape
    N = w.shape[0] if w_transposed else w.shape[1]
    tm, tn, tk = _tile(M, tm), _tile(N, tn), _tile(K, tk)
    grid = (M // tm, N // tn, K // tk)

    in_specs = [pl.BlockSpec((tm, tk), lambda i, j, k: (i, k))]
    inputs = [x]
    if w_transposed:
        in_specs.append(pl.BlockSpec((tn, tk), lambda i, j, k: (j, k)))
    else:
        in_specs.append(pl.BlockSpec((tk, tn), lambda i, j, k: (k, j)))
    inputs.append(w)
    if b is not None:
        in_specs.append(pl.BlockSpec((1, tn), lambda i, j, k: (0, j)))
        inputs.append(b.reshape(1, N))
    if residual is not None:
        in_specs.append(pl.BlockSpec((tm, tn), lambda i, j, k: (i, j)))
        inputs.append(residual)

    kernel = _make_linear_kernel(activation, w_transposed, b is not None,
                                 residual is not None)
    return pl.pallas_call(
        kernel,
        out_shape=jax.ShapeDtypeStruct((M, N), out_dtype),
        grid_spec=pltpu.PrefetchScalarGridSpec(
            num_scalar_prefetch=0, grid=grid,
            in_specs=in_specs,
            out_specs=pl.BlockSpec((tm, tn), lambda i, j, k: (i, j)),
            scratch_shapes=[pltpu.VMEM((tm, tn), jnp.float32)]),
        compiler_params=pltpu.CompilerParams(
            dimension_semantics=("parallel", "parallel", "arbitrary"),
            vmem_limit_bytes=_VMEM_LIMIT),
    )(*inputs)


# ----------------------------------------------------------------------------
# LayerNorm fused into the prologue of a matmul:  o = act(LN(x) @ w + b)
#   grid = (M/tm, N/tn); K (= D) is kept whole since LN needs full rows.
# ----------------------------------------------------------------------------
def _make_ln_linear_kernel(activation, w_transposed, has_bias, eps):
    def kernel(*refs):
        idx = 0
        x_ref = refs[idx]; idx += 1
        g_ref = refs[idx]; idx += 1
        bt_ref = refs[idx]; idx += 1
        w_ref = refs[idx]; idx += 1
        b_ref = None
        if has_bias:
            b_ref = refs[idx]; idx += 1
        o_ref = refs[idx]

        x = x_ref[...].astype(jnp.float32)
        mu = jnp.mean(x, axis=-1, keepdims=True)
        xc = x - mu
        var = jnp.mean(xc * xc, axis=-1, keepdims=True)
        h = xc * lax.rsqrt(var + eps)
        h = h * g_ref[...].astype(jnp.float32) + bt_ref[...].astype(jnp.float32)
        h = h.astype(w_ref.dtype)  # bf16 into the MXU

        w = w_ref[...]
        if w_transposed:  # w is (N, K) — tied vocab projection
            y = lax.dot_general(h, w, (((1,), (1,)), ((), ())),
                                preferred_element_type=jnp.float32)
        else:             # w is (K, N)
            y = jnp.dot(h, w, preferred_element_type=jnp.float32)
        if has_bias:
            y = y + b_ref[...].astype(jnp.float32)
        if activation == "gelu":
            y = jax.nn.gelu(y)
        o_ref[...] = y.astype(o_ref.dtype)

    return kernel


def ln_linear(x, gamma, beta, w, b=None, *, activation=None, w_transposed=False,
              out_dtype=jnp.bfloat16, eps=1e-5, tm=256, tn=512):
    M, K = x.shape
    N = w.shape[0] if w_transposed else w.shape[1]
    tm, tn = _tile(M, tm), _tile(N, tn)
    grid = (M // tm, N // tn)

    in_specs = [
        pl.BlockSpec((tm, K), lambda i, j: (i, 0)),
        pl.BlockSpec((1, K), lambda i, j: (0, 0)),
        pl.BlockSpec((1, K), lambda i, j: (0, 0)),
    ]
    inputs = [x, gamma.reshape(1, K), beta.reshape(1, K)]
    if w_transposed:
        in_specs.append(pl.BlockSpec((tn, K), lambda i, j: (j, 0)))
    else:
        in_specs.append(pl.BlockSpec((K, tn), lambda i, j: (0, j)))
    inputs.append(w)
    if b is not None:
        in_specs.append(pl.BlockSpec((1, tn), lambda i, j: (0, j)))
        inputs.append(b.reshape(1, N))

    kernel = _make_ln_linear_kernel(activation, w_transposed, b is not None, eps)
    return pl.pallas_call(
        kernel,
        out_shape=jax.ShapeDtypeStruct((M, N), out_dtype),
        grid=grid,
        in_specs=in_specs,
        out_specs=pl.BlockSpec((tm, tn), lambda i, j: (i, j)),
        compiler_params=pltpu.CompilerParams(
            dimension_semantics=("parallel", "parallel"),
            vmem_limit_bytes=_VMEM_LIMIT),
    )(*inputs)


# ----------------------------------------------------------------------------
# Standalone tiled LayerNorm (used only for the encoder's final LN, whose
# output is reused by every decoder layer's cross-attention).
# ----------------------------------------------------------------------------
def _layernorm_kernel(x_ref, g_ref, b_ref, o_ref, *, eps):
    x = x_ref[...].astype(jnp.float32)
    mu = jnp.mean(x, axis=-1, keepdims=True)
    xc = x - mu
    var = jnp.mean(xc * xc, axis=-1, keepdims=True)
    y = xc * lax.rsqrt(var + eps)
    y = y * g_ref[...].astype(jnp.float32) + b_ref[...].astype(jnp.float32)
    o_ref[...] = y.astype(o_ref.dtype)


def layer_norm(x, g, b, *, eps=1e-5, out_dtype=jnp.bfloat16, tm=256):
    M, D = x.shape
    tm = _tile(M, tm)
    return pl.pallas_call(
        functools.partial(_layernorm_kernel, eps=eps),
        out_shape=jax.ShapeDtypeStruct((M, D), out_dtype),
        grid=(M // tm,),
        in_specs=[pl.BlockSpec((tm, D), lambda i: (i, 0)),
                  pl.BlockSpec((1, D), lambda i: (0, 0)),
                  pl.BlockSpec((1, D), lambda i: (0, 0))],
        out_specs=pl.BlockSpec((tm, D), lambda i: (i, 0)),
        compiler_params=pltpu.CompilerParams(
            dimension_semantics=("parallel",),
            vmem_limit_bytes=_VMEM_LIMIT),
    )(x, g.reshape(1, D), b.reshape(1, D))


# ----------------------------------------------------------------------------
# Multi-head attention kernel.
#   grid=(B,) with lane-dense (1, S, D) / (1, S, 3D) / (1, S, 2D) blocks.
#   Heads are split inside the kernel (static slices) — no host transposes.
#   Causal mask built with broadcasted_iota; key-padding bias is (B,1,Sk).
# ----------------------------------------------------------------------------
def _make_attn_kernel(num_heads, scale, causal, has_kbias, fused_qkv):
    def kernel(*refs):
        idx = 0
        if fused_qkv:
            qkv = refs[idx][0].astype(jnp.float32); idx += 1
            D = qkv.shape[-1] // 3
            q, k, v = qkv[:, :D], qkv[:, D:2 * D], qkv[:, 2 * D:]
        else:
            q = refs[idx][0].astype(jnp.float32); idx += 1
            kv = refs[idx][0].astype(jnp.float32); idx += 1
            D = q.shape[-1]
            k, v = kv[:, :D], kv[:, D:]
        kb_ref = None
        if has_kbias:
            kb_ref = refs[idx]; idx += 1
        o_ref = refs[idx]

        Sq, Sk = q.shape[0], k.shape[0]
        Dh = D // num_heads

        bias = None
        if has_kbias:
            bias = kb_ref[0].astype(jnp.float32)            # (1, Sk) additive
        if causal:
            rows = lax.broadcasted_iota(jnp.int32, (Sq, Sk), 0)
            cols = lax.broadcasted_iota(jnp.int32, (Sq, Sk), 1)
            cmask = jnp.where(rows >= cols, 0.0, -1e9).astype(jnp.float32)
            bias = cmask if bias is None else bias + cmask

        outs = []
        for h in range(num_heads):                          # static unroll
            sl = slice(h * Dh, (h + 1) * Dh)
            qh = q[:, sl].astype(jnp.bfloat16)
            kh = k[:, sl].astype(jnp.bfloat16)
            vh = v[:, sl].astype(jnp.bfloat16)
            # contract last dims: no k.T materialisation
            s = lax.dot_general(qh, kh, (((1,), (1,)), ((), ())),
                                preferred_element_type=jnp.float32) * scale
            if bias is not None:
                s = s + bias
            m = jnp.max(s, axis=-1, keepdims=True)
            p = jnp.exp(s - m)
            l = jnp.sum(p, axis=-1, keepdims=True)
            o = jnp.dot(p.astype(jnp.bfloat16), vh,
                        preferred_element_type=jnp.float32)
            outs.append(o * pl.reciprocal(l, approx=True))  # EUP, off VALU path
        o_ref[0] = jnp.concatenate(outs, axis=-1).astype(o_ref.dtype)

    return kernel


def attention(qkv=None, q=None, kv=None, *, num_heads, causal=False, kbias=None,
              out_dtype=jnp.bfloat16):
    fused = qkv is not None
    if fused:
        B, Sq, D3 = qkv.shape
        D = D3 // 3
        Sk = Sq
        inputs = [qkv]
        in_specs = [pl.BlockSpec((1, Sq, D3), lambda b: (b, 0, 0))]
    else:
        B, Sq, D = q.shape
        Sk = kv.shape[1]
        inputs = [q, kv]
        in_specs = [pl.BlockSpec((1, Sq, D), lambda b: (b, 0, 0)),
                    pl.BlockSpec((1, Sk, 2 * D), lambda b: (b, 0, 0))]
    if kbias is not None:
        inputs.append(kbias)
        in_specs.append(pl.BlockSpec((1, 1, Sk), lambda b: (b, 0, 0)))

    scale = 1.0 / math.sqrt(D // num_heads)
    kernel = _make_attn_kernel(num_heads, scale, causal, kbias is not None, fused)
    return pl.pallas_call(
        kernel,
        out_shape=jax.ShapeDtypeStruct((B, Sq, D), out_dtype),
        grid=(B,),
        in_specs=in_specs,
        out_specs=pl.BlockSpec((1, Sq, D), lambda b: (b, 0, 0)),
        compiler_params=pltpu.CompilerParams(
            dimension_semantics=("parallel",),
            vmem_limit_bytes=_VMEM_LIMIT),
    )(*inputs)


# ----------------------------------------------------------------------------
# Model glue (thin JAX wrappers around the Pallas kernels; no host transposes)
# ----------------------------------------------------------------------------
def encoder_layer(x, src_bias, p, num_heads):
    B, S, D = x.shape
    xf = x.reshape(B * S, D)

    # self-attention: pre-LN fused into fused-QKV projection
    qkv = ln_linear(xf, p["ln1_g"], p["ln1_b"], p["sa_wqkv"], p["sa_bqkv"])
    a = attention(qkv=qkv.reshape(B, S, 3 * D), num_heads=num_heads,
                  causal=False, kbias=src_bias)
    xf = linear(a.reshape(B * S, D), p["sa_wo"], p["sa_bo"], residual=xf)

    # FFN: pre-LN fused into FFN-1, residual fused into FFN-2 epilogue
    h = ln_linear(xf, p["ln2_g"], p["ln2_b"], p["w1"], p["b1"], activation="gelu")
    xf = linear(h, p["w2"], p["b2"], residual=xf)
    return xf.reshape(B, S, D)


def decoder_layer(x, enc, src_bias, p, num_heads):
    B, T, D = x.shape
    S = enc.shape[1]
    xf = x.reshape(B * T, D)

    # causal self-attention
    qkv = ln_linear(xf, p["ln1_g"], p["ln1_b"], p["sa_wqkv"], p["sa_bqkv"])
    a = attention(qkv=qkv.reshape(B, T, 3 * D), num_heads=num_heads, causal=True)
    xf = linear(a.reshape(B * T, D), p["sa_wo"], p["sa_bo"], residual=xf)

    # cross-attention over encoder memory (fused K/V projection)
    q = ln_linear(xf, p["ln2_g"], p["ln2_b"], p["ca_wq"], p["ca_bq"])
    kv = linear(enc.reshape(B * S, D), p["ca_wkv"], p["ca_bkv"])
    a = attention(q=q.reshape(B, T, D), kv=kv.reshape(B, S, 2 * D),
                  num_heads=num_heads, causal=False, kbias=src_bias)
    xf = linear(a.reshape(B * T, D), p["ca_wo"], p["ca_bo"], residual=xf)

    # FFN
    h = ln_linear(xf, p["ln3_g"], p["ln3_b"], p["w1"], p["b1"], activation="gelu")
    xf = linear(h, p["w2"], p["b2"], residual=xf)
    return xf.reshape(B, T, D)


def encoder_decoder_forward(params, src, tgt, num_heads):
    embed = params["embed"]                      # (V, D) bf16, shared/tied
    V, D = embed.shape
    B, S = src.shape
    T = tgt.shape[1]
    emb_scale = math.sqrt(D)

    # key-padding additive bias from source token id 0 (padding_idx)
    src_bias = jnp.where(src == 0, -1e9, 0.0).astype(jnp.float32).reshape(B, 1, S)

    # Encoder
    enc = (jnp.take(embed, src, axis=0).astype(jnp.float32) * emb_scale
           + params["pos"][:S].astype(jnp.float32)[None]).astype(jnp.bfloat16)
    for lp in params["enc_layers"]:
        enc = encoder_layer(enc, src_bias, lp, num_heads)
    enc = layer_norm(enc.reshape(-1, D),
                     params["enc_ln_g"], params["enc_ln_b"]).reshape(B, S, D)

    # Decoder
    dec = (jnp.take(embed, tgt, axis=0).astype(jnp.float32) * emb_scale
           + params["pos"][:T].astype(jnp.float32)[None]).astype(jnp.bfloat16)
    for lp in params["dec_layers"]:
        dec = decoder_layer(dec, enc, src_bias, lp, num_heads)

    # Final LN fused with tied output projection: embed used as (V, D) directly
    # (no embed.T HBM copy, no zero bias), f32 logits out.
    logits = ln_linear(dec.reshape(-1, D), params["dec_ln_g"], params["dec_ln_b"],
                       embed, None, w_transposed=True, out_dtype=jnp.float32,
                       tn=512)  # tn<=512 keeps the vocab tile inside v7x VMEM
    return logits.reshape(B, T, V)


# ----------------------------------------------------------------------------
# Deterministic parameter init (bf16 weights, f32 LN params / biases)
# ----------------------------------------------------------------------------
def init_params(key, vocab_size, embed_dim, ffn_dim, layers, max_seq_len):
    keys = iter(jax.random.split(key, 8 + layers * 32))
    D, F = embed_dim, ffn_dim

    def nrm(shape, scale=0.02):
        return (scale * jax.random.normal(next(keys), shape,
                                          jnp.float32)).astype(jnp.bfloat16)

    def zeros(n):
        return jnp.zeros((n,), jnp.float32)

    def ln():
        return jnp.ones((D,), jnp.float32), jnp.zeros((D,), jnp.float32)

    def enc_layer():
        g1, b1 = ln(); g2, b2 = ln()
        return {"ln1_g": g1, "ln1_b": b1,
                "sa_wqkv": nrm((D, 3 * D)), "sa_bqkv": zeros(3 * D),
                "sa_wo": nrm((D, D)), "sa_bo": zeros(D),
                "ln2_g": g2, "ln2_b": b2,
                "w1": nrm((D, F)), "b1": zeros(F),
                "w2": nrm((F, D)), "b2": zeros(D)}

    def dec_layer():
        g1, b1 = ln(); g2, b2 = ln(); g3, b3 = ln()
        return {"ln1_g": g1, "ln1_b": b1,
                "sa_wqkv": nrm((D, 3 * D)), "sa_bqkv": zeros(3 * D),
                "sa_wo": nrm((D, D)), "sa_bo": zeros(D),
                "ln2_g": g2, "ln2_b": b2,
                "ca_wq": nrm((D, D)), "ca_bq": zeros(D),
                "ca_wkv": nrm((D, 2 * D)), "ca_bkv": zeros(2 * D),
                "ca_wo": nrm((D, D)), "ca_bo": zeros(D),
                "ln3_g": g3, "ln3_b": b3,
                "w1": nrm((D, F)), "b1": zeros(F),
                "w2": nrm((F, D)), "b2": zeros(D)}

    embed = nrm((vocab_size, D))
    embed = embed.at[0].set(0)                  # padding_idx=0 -> zero row
    pos = nrm((max_seq_len, D))
    eg, eb = ln(); dg, db = ln()
    return {"embed": embed, "pos": pos,
            "enc_layers": [enc_layer() for _ in range(layers)],
            "dec_layers": [dec_layer() for _ in range(layers)],
            "enc_ln_g": eg, "enc_ln_b": eb,
            "dec_ln_g": dg, "dec_ln_b": db}


# ----------------------------------------------------------------------------
if __name__ == "__main__":
    vocab_size = 32
    embed_dim = 32
    value_embed_dim = 32          # kept equal to embed_dim
    attention_heads = 4
    ffn_dim = 64
    layers = 2
    max_seq_len = 16
    batch, src_len, tgt_len = 2, 8, 8

    key = jax.random.PRNGKey(0)
    k_param, k_src, k_tgt = jax.random.split(key, 3)

    params = init_params(k_param, vocab_size, embed_dim, ffn_dim, layers,
                         max_seq_len)
    src = jax.random.randint(k_src, (batch, src_len), 1, vocab_size,
                             dtype=jnp.int32)
    tgt = jax.random.randint(k_tgt, (batch, tgt_len), 1, vocab_size,
                             dtype=jnp.int32)

    fwd = jax.jit(functools.partial(encoder_decoder_forward,
                                    num_heads=attention_heads))
    logits = fwd(params, src, tgt)
    jax.block_until_ready(logits)

    assert logits.shape == (batch, tgt_len, vocab_size)
    assert logits.dtype == jnp.float32
    assert bool(jnp.all(jnp.isfinite(logits)))
    print("KERNEL_OK")
</pallas_src>

<mosaic_0001>
module attributes {stable_mosaic.version = 11 : i64} {
  func.func @kernel(%arg0: i32, %arg1: i32, %arg2: memref<16x32xbf16, #tpu.memory_space<vmem>>, %arg3: memref<1x32xf32, #tpu.memory_space<vmem>>, %arg4: memref<1x32xf32, #tpu.memory_space<vmem>>, %arg5: memref<32x64xbf16, #tpu.memory_space<vmem>>, %arg6: memref<1x64xf32, #tpu.memory_space<vmem>>, %arg7: memref<16x64xbf16, #tpu.memory_space<vmem>>) attributes {dimension_semantics = [#tpu.dimension_semantics<parallel>, #tpu.dimension_semantics<parallel>], iteration_bounds = array<i64: 1, 1>, scalar_prefetch = 0 : i64, scratch_operands = 0 : i64, tpu.core_type = #tpu.core_type<tc>, window_params = [{transform_indices = @transform_0, window_bounds = array<i64: 16, 32>}, {pipeline_mode = #tpu.pipeline_mode<synchronous>, transform_indices = @transform_1, window_bounds = array<i64: 1, 32>}, {pipeline_mode = #tpu.pipeline_mode<synchronous>, transform_indices = @transform_2, window_bounds = array<i64: 1, 32>}, {transform_indices = @transform_3, window_bounds = array<i64: 32, 64>}, {transform_indices = @transform_4, window_bounds = array<i64: 1, 64>}, {transform_indices = @transform_5, window_bounds = array<i64: 16, 64>}]} {
    %c0 = arith.constant 0 : index
    %c0_0 = arith.constant 0 : index
    %0 = vector.load %arg2[%c0, %c0_0] : memref<16x32xbf16, #tpu.memory_space<vmem>>, vector<16x32xbf16>
    %1 = arith.extf %0 : vector<16x32xbf16> to vector<16x32xf32>
    %cst = arith.constant dense<0.000000e+00> : vector<16xf32>
    %2 = vector.multi_reduction <add>, %1, %cst [1] : vector<16x32xf32> to vector<16xf32>
    %3 = vector.shape_cast %2 : vector<16xf32> to vector<16x1xf32>
    %cst_1 = arith.constant 3.200000e+01 : f32
    %4 = vector.broadcast %cst_1 : f32 to vector<16x1xf32>
    %5 = arith.divf %3, %4 : vector<16x1xf32>
    %6 = vector.broadcast %5 : vector<16x1xf32> to vector<16x32xf32>
    %7 = arith.subf %1, %6 : vector<16x32xf32>
    %8 = arith.mulf %7, %7 : vector<16x32xf32>
    %cst_2 = arith.constant dense<0.000000e+00> : vector<16xf32>
    %9 = vector.multi_reduction <add>, %8, %cst_2 [1] : vector<16x32xf32> to vector<16xf32>
    %10 = vector.shape_cast %9 : vector<16xf32> to vector<16x1xf32>
    %cst_3 = arith.constant 3.200000e+01 : f32
    %11 = vector.broadcast %cst_3 : f32 to vector<16x1xf32>
    %12 = arith.divf %10, %11 : vector<16x1xf32>
    %cst_4 = arith.constant 9.99999974E-6 : f32
    %13 = vector.broadcast %cst_4 : f32 to vector<16x1xf32>
    %14 = arith.addf %12, %13 : vector<16x1xf32>
    %15 = math.rsqrt %14 : vector<16x1xf32>
    %16 = vector.broadcast %15 : vector<16x1xf32> to vector<16x32xf32>
    %17 = arith.mulf %7, %16 : vector<16x32xf32>
    %c0_5 = arith.constant 0 : index
    %c0_6 = arith.constant 0 : index
    %18 = vector.load %arg3[%c0_5, %c0_6] : memref<1x32xf32, #tpu.memory_space<vmem>>, vector<1x32xf32>
    %19 = vector.broadcast %18 : vector<1x32xf32> to vector<16x32xf32>
    %20 = arith.mulf %17, %19 : vector<16x32xf32>
    %c0_7 = arith.constant 0 : index
    %c0_8 = arith.constant 0 : index
    %21 = vector.load %arg4[%c0_7, %c0_8] : memref<1x32xf32, #tpu.memory_space<vmem>>, vector<1x32xf32>
    %22 = vector.broadcast %21 : vector<1x32xf32> to vector<16x32xf32>
    %23 = arith.addf %20, %22 : vector<16x32xf32>
    %24 = arith.truncf %23 : vector<16x32xf32> to vector<16x32xbf16>
    %c0_9 = arith.constant 0 : index
    %c0_10 = arith.constant 0 : index
    %25 = vector.load %arg5[%c0_9, %c0_10] : memref<32x64xbf16, #tpu.memory_space<vmem>>, vector<32x64xbf16>
    %cst_11 = arith.constant dense<0.000000e+00> : vector<16x64xf32>
    %26 = tpu.matmul %24, %25, %cst_11 {dimension_numbers = #tpu.dot_dimension_numbers<[1], [0], [0], [1], [0, 0, 1, 1], [], []>} : vector<16x32xbf16>, vector<32x64xbf16>, vector<16x64xf32> -> vector<16x64xf32>
    %c0_12 = arith.constant 0 : index
    %c0_13 = arith.constant 0 : index
    %27 = vector.load %arg6[%c0_12, %c0_13] : memref<1x64xf32, #tpu.memory_space<vmem>>, vector<1x64xf32>
    %28 = vector.broadcast %27 : vector<1x64xf32> to vector<16x64xf32>
    %29 = arith.addf %26, %28 : vector<16x64xf32>
    %30 = arith.mulf %29, %29 : vector<16x64xf32>
    %31 = arith.mulf %29, %30 : vector<16x64xf32>
    %cst_14 = arith.constant 4.471500e-02 : f32
    %32 = vector.broadcast %cst_14 : f32 to vector<16x64xf32>
    %33 = arith.mulf %32, %31 : vector<16x64xf32>
    %34 = arith.addf %29, %33 : vector<16x64xf32>
    %cst_15 = arith.constant 0.797884583 : f32
    %35 = vector.broadcast %cst_15 : f32 to vector<16x64xf32>
    %36 = arith.mulf %35, %34 : vector<16x64xf32>
    %37 = math.tanh %36 : vector<16x64xf32>
    %cst_16 = arith.constant 1.000000e+00 : f32
    %38 = vector.broadcast %cst_16 : f32 to vector<16x64xf32>
    %39 = arith.addf %38, %37 : vector<16x64xf32>
    %cst_17 = arith.constant 5.000000e-01 : f32
    %40 = vector.broadcast %cst_17 : f32 to vector<16x64xf32>
    %41 = arith.mulf %40, %39 : vector<16x64xf32>
    %42 = arith.mulf %29, %41 : vector<16x64xf32>
    %43 = arith.truncf %42 : vector<16x64xf32> to vector<16x64xbf16>
    %c0_18 = arith.constant 0 : index
    %c0_19 = arith.constant 0 : index
    %44 = vector.load %arg7[%c0_18, %c0_19] : memref<16x64xbf16, #tpu.memory_space<vmem>>, vector<16x64xbf16>
    tpu.vector_store %arg7[%c0_18, %c0_19], %43 {strides = array<i32>} : memref<16x64xbf16, #tpu.memory_space<vmem>>, vector<16x64xbf16>,
    return
  }
  func.func @transform_0(%arg0: i32, %arg1: i32) -> (i32, i32) {
    %c0_i32 = arith.constant 0 : i32
    %c0_i32_0 = arith.constant 0 : i32
    return %arg0, %c0_i32 : i32, i32
  }
  func.func @transform_1(%arg0: i32, %arg1: i32) -> (i32, i32) {
    %c0_i32 = arith.constant 0 : i32
    %c0_i32_0 = arith.constant 0 : i32
    %c0_i32_1 = arith.constant 0 : i32
    return %c0_i32, %c0_i32_0 : i32, i32
  }
  func.func @transform_2(%arg0: i32, %arg1: i32) -> (i32, i32) {
    %c0_i32 = arith.constant 0 : i32
    %c0_i32_0 = arith.constant 0 : i32
    %c0_i32_1 = arith.constant 0 : i32
    return %c0_i32, %c0_i32_0 : i32, i32
  }
  func.func @transform_3(%arg0: i32, %arg1: i32) -> (i32, i32) {
    %c0_i32 = arith.constant 0 : i32
    %c0_i32_0 = arith.constant 0 : i32
    return %c0_i32, %arg1 : i32, i32
  }
  func.func @transform_4(%arg0: i32, %arg1: i32) -> (i32, i32) {
    %c0_i32 = arith.constant 0 : i32
    %c0_i32_0 = arith.constant 0 : i32
    return %c0_i32, %arg1 : i32, i32
  }
  func.func @transform_5(%arg0: i32, %arg1: i32) -> (i32, i32) {
    %c0_i32 = arith.constant 0 : i32
    return %arg0, %arg1 : i32, i32
  }
}

module attributes {stable_mosaic.version = 11 : i64} {
  func.func @kernel(%arg0: i32, %arg1: i32, %arg2: i32, %arg3: memref<16x32xbf16, #tpu.memory_space<vmem>>, %arg4: memref<32x32xbf16, #tpu.memory_space<vmem>>, %arg5: memref<1x32xf32, #tpu.memory_space<vmem>>, %arg6: memref<16x32xbf16, #tpu.memory_space<vmem>>, %arg7: memref<16x32xbf16, #tpu.memory_space<vmem>>, %arg8: memref<16x32xf32, #tpu.memory_space<vmem>>) attributes {dimension_semantics = [#tpu.dimension_semantics<parallel>, #tpu.dimension_semantics<parallel>, #tpu.dimension_semantics<arbitrary>], iteration_bounds = array<i64: 1, 1, 1>, scalar_prefetch = 0 : i64, scratch_operands = 1 : i64, tpu.core_type = #tpu.core_type<tc>, window_params = [{transform_indices = @transform_0, window_bounds = array<i64: 16, 32>}, {transform_indices = @transform_1, window_bounds = array<i64: 32, 32>}, {transform_indices = @transform_2, window_bounds = array<i64: 1, 32>}, {transform_indices = @transform_3, window_bounds = array<i64: 16, 32>}, {transform_indices = @transform_4, window_bounds = array<i64: 16, 32>}]} {
    %c0_i32 = arith.constant 0 : i32
    %0 = arith.cmpi eq, %arg2, %c0_i32 : i32
    %1 = arith.extui %0 : i1 to i32
    %c0_i32_0 = arith.constant 0 : i32
    %2 = arith.cmpi ne, %1, %c0_i32_0 : i32
    scf.if %2 {
      %cst_10 = arith.constant 0.000000e+00 : f32
      %12 = vector.broadcast %cst_10 : f32 to vector<16x32xf32>
      %c0_11 = arith.constant 0 : index
      %c0_12 = arith.constant 0 : index
      %13 = vector.load %arg8[%c0_11, %c0_12] : memref<16x32xf32, #tpu.memory_space<vmem>>, vector<16x32xf32>
      tpu.vector_store %arg8[%c0_11, %c0_12], %12 {strides = array<i32>} : memref<16x32xf32, #tpu.memory_space<vmem>>, vector<16x32xf32>,
    } else {
    }
    %c0 = arith.constant 0 : index
    %c0_1 = arith.constant 0 : index
    %3 = vector.load %arg3[%c0, %c0_1] : memref<16x32xbf16, #tpu.memory_space<vmem>>, vector<16x32xbf16>
    %c0_2 = arith.constant 0 : index
    %c0_3 = arith.constant 0 : index
    %4 = vector.load %arg4[%c0_2, %c0_3] : memref<32x32xbf16, #tpu.memory_space<vmem>>, vector<32x32xbf16>
    %c0_4 = arith.constant 0 : index
    %c0_5 = arith.constant 0 : index
    %5 = vector.load %arg8[%c0_4, %c0_5] : memref<16x32xf32, #tpu.memory_space<vmem>>, vector<16x32xf32>
    %cst = arith.constant dense<0.000000e+00> : vector<16x32xf32>
    %6 = tpu.matmul %3, %4, %cst {dimension_numbers = #tpu.dot_dimension_numbers<[1], [0], [0], [1], [0, 0, 1, 1], [], []>} : vector<16x32xbf16>, vector<32x32xbf16>, vector<16x32xf32> -> vector<16x32xf32>
    %7 = arith.addf %5, %6 : vector<16x32xf32>
    %c0_6 = arith.constant 0 : index
    %c0_7 = arith.constant 0 : index
    %8 = vector.load %arg8[%c0_6, %c0_7] : memref<16x32xf32, #tpu.memory_space<vmem>>, vector<16x32xf32>
    tpu.vector_store %arg8[%c0_6, %c0_7], %7 {strides = array<i32>} : memref<16x32xf32, #tpu.memory_space<vmem>>, vector<16x32xf32>,
    %c0_i32_8 = arith.constant 0 : i32
    %9 = arith.cmpi eq, %arg2, %c0_i32_8 : i32
    %10 = arith.extui %9 : i1 to i32
    %c0_i32_9 = arith.constant 0 : i32
    %11 = arith.cmpi ne, %10, %c0_i32_9 : i32
    scf.if %11 {
      %c0_10 = arith.constant 0 : index
      %c0_11 = arith.constant 0 : index
      %12 = vector.load %arg8[%c0_10, %c0_11] : memref<16x32xf32, #tpu.memory_space<vmem>>, vector<16x32xf32>
      %c0_12 = arith.constant 0 : index
      %c0_13 = arith.constant 0 : index
      %13 = vector.load %arg5[%c0_12, %c0_13] : memref<1x32xf32, #tpu.memory_space<vmem>>, vector<1x32xf32>
      %14 = vector.broadcast %13 : vector<1x32xf32> to vector<16x32xf32>
      %15 = arith.addf %12, %14 : vector<16x32xf32>
      %c0_14 = arith.constant 0 : index
      %c0_15 = arith.constant 0 : index
      %16 = vector.load %arg6[%c0_14, %c0_15] : memref<16x32xbf16, #tpu.memory_space<vmem>>, vector<16x32xbf16>
      %17 = arith.extf %16 : vector<16x32xbf16> to vector<16x32xf32>
      %18 = arith.addf %15, %17 : vector<16x32xf32>
      %19 = arith.truncf %18 : vector<16x32xf32> to vector<16x32xbf16>
      %c0_16 = arith.constant 0 : index
      %c0_17 = arith.constant 0 : index
      %20 = vector.load %arg7[%c0_16, %c0_17] : memref<16x32xbf16, #tpu.memory_space<vmem>>, vector<16x32xbf16>
      tpu.vector_store %arg7[%c0_16, %c0_17], %19 {strides = array<i32>} : memref<16x32xbf16, #tpu.memory_space<vmem>>, vector<16x32xbf16>,
    } else {
    }
    return
  }
  func.func @transform_0(%arg0: i32, %arg1: i32, %arg2: i32) -> (i32, i32) {
    %c0_i32 = arith.constant 0 : i32
    return %arg0, %arg2 : i32, i32
  }
  func.func @transform_1(%arg0: i32, %arg1: i32, %arg2: i32) -> (i32, i32) {
    %c0_i32 = arith.constant 0 : i32
    return %arg2, %arg1 : i32, i32
  }
  func.func @transform_2(%arg0: i32, %arg1: i32, %arg2: i32) -> (i32, i32) {
    %c0_i32 = arith.constant 0 : i32
    %c0_i32_0 = arith.constant 0 : i32
    return %c0_i32, %arg1 : i32, i32
  }
  func.func @transform_3(%arg0: i32, %arg1: i32, %arg2: i32) -> (i32, i32) {
    %c0_i32 = arith.constant 0 : i32
    return %arg0, %arg1 : i32, i32
  }
  func.func @transform_4(%arg0: i32, %arg1: i32, %arg2: i32) -> (i32, i32) {
    %c0_i32 = arith.constant 0 : i32
    return %arg0, %arg1 : i32, i32
  }
}

module attributes {stable_mosaic.version = 11 : i64} {
  func.func @kernel(%arg0: i32, %arg1: i32, %arg2: memref<16x32xbf16, #tpu.memory_space<vmem>>, %arg3: memref<1x32xf32, #tpu.memory_space<vmem>>, %arg4: memref<1x32xf32, #tpu.memory_space<vmem>>, %arg5: memref<32x96xbf16, #tpu.memory_space<vmem>>, %arg6: memref<1x96xf32, #tpu.memory_space<vmem>>, %arg7: memref<16x96xbf16, #tpu.memory_space<vmem>>) attributes {dimension_semantics = [#tpu.dimension_semantics<parallel>, #tpu.dimension_semantics<parallel>], iteration_bounds = array<i64: 1, 1>, scalar_prefetch = 0 : i64, scratch_operands = 0 : i64, tpu.core_type = #tpu.core_type<tc>, window_params = [{transform_indices = @transform_0, window_bounds = array<i64: 16, 32>}, {pipeline_mode = #tpu.pipeline_mode<synchronous>, transform_indices = @transform_1, window_bounds = array<i64: 1, 32>}, {pipeline_mode = #tpu.pipeline_mode<synchronous>, transform_indices = @transform_2, window_bounds = array<i64: 1, 32>}, {transform_indices = @transform_3, window_bounds = array<i64: 32, 96>}, {transform_indices = @transform_4, window_bounds = array<i64: 1, 96>}, {transform_indices = @transform_5, window_bounds = array<i64: 16, 96>}]} {
    %c0 = arith.constant 0 : index
    %c0_0 = arith.constant 0 : index
    %0 = vector.load %arg2[%c0, %c0_0] : memref<16x32xbf16, #tpu.memory_space<vmem>>, vector<16x32xbf16>
    %1 = arith.extf %0 : vector<16x32xbf16> to vector<16x32xf32>
    %cst = arith.constant dense<0.000000e+00> : vector<16xf32>
    %2 = vector.multi_reduction <add>, %1, %cst [1] : vector<16x32xf32> to vector<16xf32>
    %3 = vector.shape_cast %2 : vector<16xf32> to vector<16x1xf32>
    %cst_1 = arith.constant 3.200000e+01 : f32
    %4 = vector.broadcast %cst_1 : f32 to vector<16x1xf32>
    %5 = arith.divf %3, %4 : vector<16x1xf32>
    %6 = vector.broadcast %5 : vector<16x1xf32> to vector<16x32xf32>
    %7 = arith.subf %1, %6 : vector<16x32xf32>
    %8 = arith.mulf %7, %7 : vector<16x32xf32>
    %cst_2 = arith.constant dense<0.000000e+00> : vector<16xf32>
    %9 = vector.multi_reduction <add>, %8, %cst_2 [1] : vector<16x32xf32> to vector<16xf32>
    %10 = vector.shape_cast %9 : vector<16xf32> to vector<16x1xf32>
    %cst_3 = arith.constant 3.200000e+01 : f32
    %11 = vector.broadcast %cst_3 : f32 to vector<16x1xf32>
    %12 = arith.divf %10, %11 : vector<16x1xf32>
    %cst_4 = arith.constant 9.99999974E-6 : f32
    %13 = vector.broadcast %cst_4 : f32 to vector<16x1xf32>
    %14 = arith.addf %12, %13 : vector<16x1xf32>
    %15 = math.rsqrt %14 : vector<16x1xf32>
    %16 = vector.broadcast %15 : vector<16x1xf32> to vector<16x32xf32>
    %17 = arith.mulf %7, %16 : vector<16x32xf32>
    %c0_5 = arith.constant 0 : index
    %c0_6 = arith.constant 0 : index
    %18 = vector.load %arg3[%c0_5, %c0_6] : memref<1x32xf32, #tpu.memory_space<vmem>>, vector<1x32xf32>
    %19 = vector.broadcast %18 : vector<1x32xf32> to vector<16x32xf32>
    %20 = arith.mulf %17, %19 : vector<16x32xf32>
    %c0_7 = arith.constant 0 : index
    %c0_8 = arith.constant 0 : index
    %21 = vector.load %arg4[%c0_7, %c0_8] : memref<1x32xf32, #tpu.memory_space<vmem>>, vector<1x32xf32>
    %22 = vector.broadcast %21 : vector<1x32xf32> to vector<16x32xf32>
    %23 = arith.addf %20, %22 : vector<16x32xf32>
    %24 = arith.truncf %23 : vector<16x32xf32> to vector<16x32xbf16>
    %c0_9 = arith.constant 0 : index
    %c0_10 = arith.constant 0 : index
    %25 = vector.load %arg5[%c0_9, %c0_10] : memref<32x96xbf16, #tpu.memory_space<vmem>>, vector<32x96xbf16>
    %cst_11 = arith.constant dense<0.000000e+00> : vector<16x96xf32>
    %26 = tpu.matmul %24, %25, %cst_11 {dimension_numbers = #tpu.dot_dimension_numbers<[1], [0], [0], [1], [0, 0, 1, 1], [], []>} : vector<16x32xbf16>, vector<32x96xbf16>, vector<16x96xf32> -> vector<16x96xf32>
    %c0_12 = arith.constant 0 : index
    %c0_13 = arith.constant 0 : index
    %27 = vector.load %arg6[%c0_12, %c0_13] : memref<1x96xf32, #tpu.memory_space<vmem>>, vector<1x96xf32>
    %28 = vector.broadcast %27 : vector<1x96xf32> to vector<16x96xf32>
    %29 = arith.addf %26, %28 : vector<16x96xf32>
    %30 = arith.truncf %29 : vector<16x96xf32> to vector<16x96xbf16>
    %c0_14 = arith.constant 0 : index
    %c0_15 = arith.constant 0 : index
    %31 = vector.load %arg7[%c0_14, %c0_15] : memref<16x96xbf16, #tpu.memory_space<vmem>>, vector<16x96xbf16>
    tpu.vector_store %arg7[%c0_14, %c0_15], %30 {strides = array<i32>} : memref<16x96xbf16, #tpu.memory_space<vmem>>, vector<16x96xbf16>,
    return
  }
  func.func @transform_0(%arg0: i32, %arg1: i32) -> (i32, i32) {
    %c0_i32 = arith.constant 0 : i32
    %c0_i32_0 = arith.constant 0 : i32
    return %arg0, %c0_i32 : i32, i32
  }
  func.func @transform_1(%arg0: i32, %arg1: i32) -> (i32, i32) {
    %c0_i32 = arith.constant 0 : i32
    %c0_i32_0 = arith.constant 0 : i32
    %c0_i32_1 = arith.constant 0 : i32
    return %c0_i32, %c0_i32_0 : i32, i32
  }
  func.func @transform_2(%arg0: i32, %arg1: i32) -> (i32, i32) {
    %c0_i32 = arith.constant 0 : i32
    %c0_i32_0 = arith.constant 0 : i32
    %c0_i32_1 = arith.constant 0 : i32
    return %c0_i32, %c0_i32_0 : i32, i32
  }
  func.func @transform_3(%arg0: i32, %arg1: i32) -> (i32, i32) {
    %c0_i32 = arith.constant 0 : i32
    %c0_i32_0 = arith.constant 0 : i32
    return %c0_i32, %arg1 : i32, i32
  }
  func.func @transform_4(%arg0: i32, %arg1: i32) -> (i32, i32) {
    %c0_i32 = arith.constant 0 : i32
    %c0_i32_0 = arith.constant 0 : i32
    return %c0_i32, %arg1 : i32, i32
  }
  func.func @transform_5(%arg0: i32, %arg1: i32) -> (i32, i32) {
    %c0_i32 = arith.constant 0 : i32
    return %arg0, %arg1 : i32, i32
  }
}

module attributes {stable_mosaic.version = 11 : i64} {
  func.func @kernel(%arg0: i32, %arg1: memref<1x8x96xbf16, #tpu.memory_space<vmem>>, %arg2: memref<1x1x8xf32, #tpu.memory_space<vmem>>, %arg3: memref<1x8x32xbf16, #tpu.memory_space<vmem>>) attributes {dimension_semantics = [#tpu.dimension_semantics<parallel>], iteration_bounds = array<i64: 2>, scalar_prefetch = 0 : i64, scratch_operands = 0 : i64, tpu.core_type = #tpu.core_type<tc>, window_params = [{transform_indices = @transform_0, window_bounds = array<i64: 1, 8, 96>}, {transform_indices = @transform_1, window_bounds = array<i64: 1, 1, 8>}, {transform_indices = @transform_2, window_bounds = array<i64: 1, 8, 32>}]} {
    %c0 = arith.constant 0 : index
    %c0_0 = arith.constant 0 : index
    %c0_1 = arith.constant 0 : index
    %0 = vector.load %arg1[%c0, %c0_0, %c0_1] : memref<1x8x96xbf16, #tpu.memory_space<vmem>>, vector<1x8x96xbf16>
    %1 = vector.shape_cast %0 : vector<1x8x96xbf16> to vector<8x96xbf16>
    %2 = arith.extf %1 : vector<8x96xbf16> to vector<8x96xf32>
    %3 = vector.extract_strided_slice %2 {offsets = [0, 0], sizes = [8, 32], strides = [1, 1]} : vector<8x96xf32> to vector<8x32xf32>
    %4 = vector.extract_strided_slice %2 {offsets = [0, 32], sizes = [8, 32], strides = [1, 1]} : vector<8x96xf32> to vector<8x32xf32>
    %5 = vector.extract_strided_slice %2 {offsets = [0, 64], sizes = [8, 32], strides = [1, 1]} : vector<8x96xf32> to vector<8x32xf32>
    %c0_2 = arith.constant 0 : index
    %c0_3 = arith.constant 0 : index
    %c0_4 = arith.constant 0 : index
    %6 = vector.load %arg2[%c0_2, %c0_3, %c0_4] : memref<1x1x8xf32, #tpu.memory_space<vmem>>, vector<1x1x8xf32>
    %7 = vector.shape_cast %6 : vector<1x1x8xf32> to vector<1x8xf32>
    %8 = vector.extract_strided_slice %3 {offsets = [0, 0], sizes = [8, 8], strides = [1, 1]} : vector<8x32xf32> to vector<8x8xf32>
    %9 = arith.truncf %8 : vector<8x8xf32> to vector<8x8xbf16>
    %10 = vector.extract_strided_slice %4 {offsets = [0, 0], sizes = [8, 8], strides = [1, 1]} : vector<8x32xf32> to vector<8x8xf32>
    %11 = arith.truncf %10 : vector<8x8xf32> to vector<8x8xbf16>
    %12 = vector.extract_strided_slice %5 {offsets = [0, 0], sizes = [8, 8], strides = [1, 1]} : vector<8x32xf32> to vector<8x8xf32>
    %13 = arith.truncf %12 : vector<8x8xf32> to vector<8x8xbf16>
    %cst = arith.constant dense<0.000000e+00> : vector<8x8xf32>
    %14 = tpu.matmul %9, %11, %cst {dimension_numbers = #tpu.dot_dimension_numbers<[1], [1], [0], [0], [0, 0, 1, 0], [], []>} : vector<8x8xbf16>, vector<8x8xbf16>, vector<8x8xf32> -> vector<8x8xf32>
    %cst_5 = arith.constant 0.353553385 : f32
    %15 = vector.broadcast %cst_5 : f32 to vector<8x8xf32>
    %16 = arith.mulf %14, %15 : vector<8x8xf32>
    %17 = vector.broadcast %7 : vector<1x8xf32> to vector<8x8xf32>
    %18 = arith.addf %16, %17 : vector<8x8xf32>
    %cst_6 = arith.constant dense<0xFF800000> : vector<8xf32>
    %19 = vector.multi_reduction <maximumf>, %18, %cst_6 [1] : vector<8x8xf32> to vector<8xf32>
    %20 = vector.shape_cast %19 : vector<8xf32> to vector<8x1xf32>
    %21 = vector.broadcast %20 : vector<8x1xf32> to vector<8x8xf32>
    %22 = arith.subf %18, %21 : vector<8x8xf32>
    %23 = math.exp %22 : vector<8x8xf32>
    %cst_7 = arith.constant dense<0.000000e+00> : vector<8xf32>
    %24 = vector.multi_reduction <add>, %23, %cst_7 [1] : vector<8x8xf32> to vector<8xf32>
    %25 = vector.shape_cast %24 : vector<8xf32> to vector<8x1xf32>
    %26 = arith.truncf %23 : vector<8x8xf32> to vector<8x8xbf16>
    %cst_8 = arith.constant dense<0.000000e+00> : vector<8x8xf32>
    %27 = tpu.matmul %26, %13, %cst_8 {dimension_numbers = #tpu.dot_dimension_numbers<[1], [0], [0], [1], [0, 0, 1, 1], [], []>} : vector<8x8xbf16>, vector<8x8xbf16>, vector<8x8xf32> -> vector<8x8xf32>
    %28 = tpu.reciprocal %25 {approx = true} : vector<8x1xf32> -> vector<8x1xf32>
    %29 = vector.broadcast %28 : vector<8x1xf32> to vector<8x8xf32>
    %30 = arith.mulf %27, %29 : vector<8x8xf32>
    %31 = vector.extract_strided_slice %3 {offsets = [0, 8], sizes = [8, 8], strides = [1, 1]} : vector<8x32xf32> to vector<8x8xf32>
    %32 = arith.truncf %31 : vector<8x8xf32> to vector<8x8xbf16>
    %33 = vector.extract_strided_slice %4 {offsets = [0, 8], sizes = [8, 8], strides = [1, 1]} : vector<8x32xf32> to vector<8x8xf32>
    %34 = arith.truncf %33 : vector<8x8xf32> to vector<8x8xbf16>
    %35 = vector.extract_strided_slice %5 {offsets = [0, 8], sizes = [8, 8], strides = [1, 1]} : vector<8x32xf32> to vector<8x8xf32>
    %36 = arith.truncf %35 : vector<8x8xf32> to vector<8x8xbf16>
    %cst_9 = arith.constant dense<0.000000e+00> : vector<8x8xf32>
    %37 = tpu.matmul %32, %34, %cst_9 {dimension_numbers = #tpu.dot_dimension_numbers<[1], [1], [0], [0], [0, 0, 1, 0], [], []>} : vector<8x8xbf16>, vector<8x8xbf16>, vector<8x8xf32> -> vector<8x8xf32>
    %cst_10 = arith.constant 0.353553385 : f32
    %38 = vector.broadcast %cst_10 : f32 to vector<8x8xf32>
    %39 = arith.mulf %37, %38 : vector<8x8xf32>
    %40 = vector.broadcast %7 : vector<1x8xf32> to vector<8x8xf32>
    %41 = arith.addf %39, %40 : vector<8x8xf32>
    %cst_11 = arith.constant dense<0xFF800000> : vector<8xf32>
    %42 = vector.multi_reduction <maximumf>, %41, %cst_11 [1] : vector<8x8xf32> to vector<8xf32>
    %43 = vector.shape_cast %42 : vector<8xf32> to vector<8x1xf32>
    %44 = vector.broadcast %43 : vector<8x1xf32> to vector<8x8xf32>
    %45 = arith.subf %41, %44 : vector<8x8xf32>
    %46 = math.exp %45 : vector<8x8xf32>
    %cst_12 = arith.constant dense<0.000000e+00> : vector<8xf32>
    %47 = vector.multi_reduction <add>, %46, %cst_12 [1] : vector<8x8xf32> to vector<8xf32>
    %48 = vector.shape_cast %47 : vector<8xf32> to vector<8x1xf32>
    %49 = arith.truncf %46 : vector<8x8xf32> to vector<8x8xbf16>
    %cst_13 = arith.constant dense<0.000000e+00> : vector<8x8xf32>
    %50 = tpu.matmul %49, %36, %cst_13 {dimension_numbers = #tpu.dot_dimension_numbers<[1], [0], [0], [1], [0, 0, 1, 1], [], []>} : vector<8x8xbf16>, vector<8x8xbf16>, vector<8x8xf32> -> vector<8x8xf32>
    %51 = tpu.reciprocal %48 {approx = true} : vector<8x1xf32> -> vector<8x1xf32>
    %52 = vector.broadcast %51 : vector<8x1xf32> to vector<8x8xf32>
    %53 = arith.mulf %50, %52 : vector<8x8xf32>
    %54 = vector.extract_strided_slice %3 {offsets = [0, 16], sizes = [8, 8], strides = [1, 1]} : vector<8x32xf32> to vector<8x8xf32>
    %55 = arith.truncf %54 : vector<8x8xf32> to vector<8x8xbf16>
    %56 = vector.extract_strided_slice %4 {offsets = [0, 16], sizes = [8, 8], strides = [1, 1]} : vector<8x32xf32> to vector<8x8xf32>
    %57 = arith.truncf %56 : vector<8x8xf32> to vector<8x8xbf16>
    %58 = vector.extract_strided_slice %5 {offsets = [0, 16], sizes = [8, 8], strides = [1, 1]} : vector<8x32xf32> to vector<8x8xf32>
    %59 = arith.truncf %58 : vector<8x8xf32> to vector<8x8xbf16>
    %cst_14 = arith.constant dense<0.000000e+00> : vector<8x8xf32>
    %60 = tpu.matmul %55, %57, %cst_14 {dimension_numbers = #tpu.dot_dimension_numbers<[1], [1], [0], [0], [0, 0, 1, 0], [], []>} : vector<8x8xbf16>, vector<8x8xbf16>, vector<8x8xf32> -> vector<8x8xf32>
    %cst_15 = arith.constant 0.353553385 : f32
    %61 = vector.broadcast %cst_15 : f32 to vector<8x8xf32>
    %62 = arith.mulf %60, %61 : vector<8x8xf32>
    %63 = vector.broadcast %7 : vector<1x8xf32> to vector<8x8xf32>
    %64 = arith.addf %62, %63 : vector<8x8xf32>
    %cst_16 = arith.constant dense<0xFF800000> : vector<8xf32>
    %65 = vector.multi_reduction <maximumf>, %64, %cst_16 [1] : vector<8x8xf32> to vector<8xf32>
    %66 = vector.shape_cast %65 : vector<8xf32> to vector<8x1xf32>
    %67 = vector.broadcast %66 : vector<8x1xf32> to vector<8x8xf32>
    %68 = arith.subf %64, %67 : vector<8x8xf32>
    %69 = math.exp %68 : vector<8x8xf32>
    %cst_17 = arith.constant dense<0.000000e+00> : vector<8xf32>
    %70 = vector.multi_reduction <add>, %69, %cst_17 [1] : vector<8x8xf32> to vector<8xf32>
    %71 = vector.shape_cast %70 : vector<8xf32> to vector<8x1xf32>
    %72 = arith.truncf %69 : vector<8x8xf32> to vector<8x8xbf16>
    %cst_18 = arith.constant dense<0.000000e+00> : vector<8x8xf32>
    %73 = tpu.matmul %72, %59, %cst_18 {dimension_numbers = #tpu.dot_dimension_numbers<[1], [0], [0], [1], [0, 0, 1, 1], [], []>} : vector<8x8xbf16>, vector<8x8xbf16>, vector<8x8xf32> -> vector<8x8xf32>
    %74 = tpu.reciprocal %71 {approx = true} : vector<8x1xf32> -> vector<8x1xf32>
    %75 = vector.broadcast %74 : vector<8x1xf32> to vector<8x8xf32>
    %76 = arith.mulf %73, %75 : vector<8x8xf32>
    %77 = vector.extract_strided_slice %3 {offsets = [0, 24], sizes = [8, 8], strides = [1, 1]} : vector<8x32xf32> to vector<8x8xf32>
    %78 = arith.truncf %77 : vector<8x8xf32> to vector<8x8xbf16>
    %79 = vector.extract_strided_slice %4 {offsets = [0, 24], sizes = [8, 8], strides = [1, 1]} : vector<8x32xf32> to vector<8x8xf32>
    %80 = arith.truncf %79 : vector<8x8xf32> to vector<8x8xbf16>
    %81 = vector.extract_strided_slice %5 {offsets = [0, 24], sizes = [8, 8], strides = [1, 1]} : vector<8x32xf32> to vector<8x8xf32>
    %82 = arith.truncf %81 : vector<8x8xf32> to vector<8x8xbf16>
    %cst_19 = arith.constant dense<0.000000e+00> : vector<8x8xf32>
    %83 = tpu.matmul %78, %80, %cst_19 {dimension_numbers = #tpu.dot_dimension_numbers<[1], [1], [0], [0], [0, 0, 1, 0], [], []>} : vector<8x8xbf16>, vector<8x8xbf16>, vector<8x8xf32> -> vector<8x8xf32>
    %cst_20 = arith.constant 0.353553385 : f32
    %84 = vector.broadcast %cst_20 : f32 to vector<8x8xf32>
    %85 = arith.mulf %83, %84 : vector<8x8xf32>
    %86 = vector.broadcast %7 : vector<1x8xf32> to vector<8x8xf32>
    %87 = arith.addf %85, %86 : vector<8x8xf32>
    %cst_21 = arith.constant dense<0xFF800000> : vector<8xf32>
    %88 = vector.multi_reduction <maximumf>, %87, %cst_21 [1] : vector<8x8xf32> to vector<8xf32>
    %89 = vector.shape_cast %88 : vector<8xf32> to vector<8x1xf32>
    %90 = vector.broadcast %89 : vector<8x1xf32> to vector<8x8xf32>
    %91 = arith.subf %87, %90 : vector<8x8xf32>
    %92 = math.exp %91 : vector<8x8xf32>
    %cst_22 = arith.constant dense<0.000000e+00> : vector<8xf32>
    %93 = vector.multi_reduction <add>, %92, %cst_22 [1] : vector<8x8xf32> to vector<8xf32>
    %94 = vector.shape_cast %93 : vector<8xf32> to vector<8x1xf32>
    %95 = arith.truncf %92 : vector<8x8xf32> to vector<8x8xbf16>
    %cst_23 = arith.constant dense<0.000000e+00> : vector<8x8xf32>
    %96 = tpu.matmul %95, %82, %cst_23 {dimension_numbers = #tpu.dot_dimension_numbers<[1], [0], [0], [1], [0, 0, 1, 1], [], []>} : vector<8x8xbf16>, vector<8x8xbf16>, vector<8x8xf32> -> vector<8x8xf32>
    %97 = tpu.reciprocal %94 {approx = true} : vector<8x1xf32> -> vector<8x1xf32>
    %98 = vector.broadcast %97 : vector<8x1xf32> to vector<8x8xf32>
    %99 = arith.mulf %96, %98 : vector<8x8xf32>
    %100 = tpu.concatenate %30, %53, %76, %99 in 1 : vector<8x8xf32>, vector<8x8xf32>, vector<8x8xf32>, vector<8x8xf32> -> vector<8x32xf32>
    %101 = arith.truncf %100 : vector<8x32xf32> to vector<8x32xbf16>
    %c0_24 = arith.constant 0 : index
    %c0_25 = arith.constant 0 : index
    %c0_26 = arith.constant 0 : index
    %102 = vector.load %arg3[%c0_24, %c0_25, %c0_26] : memref<1x8x32xbf16, #tpu.memory_space<vmem>>, vector<1x8x32xbf16>
    %103 = vector.shape_cast %102 : vector<1x8x32xbf16> to vector<8x32xbf16>
    %104 = vector.shape_cast %101 : vector<8x32xbf16> to vector<1x8x32xbf16>
    tpu.vector_store %arg3[%c0_24, %c0_25, %c0_26], %104 {strides = array<i32>} : memref<1x8x32xbf16, #tpu.memory_space<vmem>>, vector<1x8x32xbf16>,
    return
  }
  func.func @transform_0(%arg0: i32) -> (i32, i32, i32) {
    %c0_i32 = arith.constant 0 : i32
    %c0_i32_0 = arith.constant 0 : i32
    %c0_i32_1 = arith.constant 0 : i32
    return %arg0, %c0_i32, %c0_i32_0 : i32, i32, i32
  }
  func.func @transform_1(%arg0: i32) -> (i32, i32, i32) {
    %c0_i32 = arith.constant 0 : i32
    %c0_i32_0 = arith.constant 0 : i32
    %c0_i32_1 = arith.constant 0 : i32
    return %arg0, %c0_i32, %c0_i32_0 : i32, i32, i32
  }
  func.func @transform_2(%arg0: i32) -> (i32, i32, i32) {
    %c0_i32 = arith.constant 0 : i32
    %c0_i32_0 = arith.constant 0 : i32
    %c0_i32_1 = arith.constant 0 : i32
    return %arg0, %c0_i32, %c0_i32_0 : i32, i32, i32
  }
}

module attributes {stable_mosaic.version = 11 : i64} {
  func.func @kernel(%arg0: i32, %arg1: i32, %arg2: i32, %arg3: memref<16x64xbf16, #tpu.memory_space<vmem>>, %arg4: memref<64x32xbf16, #tpu.memory_space<vmem>>, %arg5: memref<1x32xf32, #tpu.memory_space<vmem>>, %arg6: memref<16x32xbf16, #tpu.memory_space<vmem>>, %arg7: memref<16x32xbf16, #tpu.memory_space<vmem>>, %arg8: memref<16x32xf32, #tpu.memory_space<vmem>>) attributes {dimension_semantics = [#tpu.dimension_semantics<parallel>, #tpu.dimension_semantics<parallel>, #tpu.dimension_semantics<arbitrary>], iteration_bounds = array<i64: 1, 1, 1>, scalar_prefetch = 0 : i64, scratch_operands = 1 : i64, tpu.core_type = #tpu.core_type<tc>, window_params = [{transform_indices = @transform_0, window_bounds = array<i64: 16, 64>}, {transform_indices = @transform_1, window_bounds = array<i64: 64, 32>}, {transform_indices = @transform_2, window_bounds = array<i64: 1, 32>}, {transform_indices = @transform_3, window_bounds = array<i64: 16, 32>}, {transform_indices = @transform_4, window_bounds = array<i64: 16, 32>}]} {
    %c0_i32 = arith.constant 0 : i32
    %0 = arith.cmpi eq, %arg2, %c0_i32 : i32
    %1 = arith.extui %0 : i1 to i32
    %c0_i32_0 = arith.constant 0 : i32
    %2 = arith.cmpi ne, %1, %c0_i32_0 : i32
    scf.if %2 {
      %cst_10 = arith.constant 0.000000e+00 : f32
      %12 = vector.broadcast %cst_10 : f32 to vector<16x32xf32>
      %c0_11 = arith.constant 0 : index
      %c0_12 = arith.constant 0 : index
      %13 = vector.load %arg8[%c0_11, %c0_12] : memref<16x32xf32, #tpu.memory_space<vmem>>, vector<16x32xf32>
      tpu.vector_store %arg8[%c0_11, %c0_12], %12 {strides = array<i32>} : memref<16x32xf32, #tpu.memory_space<vmem>>, vector<16x32xf32>,
    } else {
    }
    %c0 = arith.constant 0 : index
    %c0_1 = arith.constant 0 : index
    %3 = vector.load %arg3[%c0, %c0_1] : memref<16x64xbf16, #tpu.memory_space<vmem>>, vector<16x64xbf16>
    %c0_2 = arith.constant 0 : index
    %c0_3 = arith.constant 0 : index
    %4 = vector.load %arg4[%c0_2, %c0_3] : memref<64x32xbf16, #tpu.memory_space<vmem>>, vector<64x32xbf16>
    %c0_4 = arith.constant 0 : index
    %c0_5 = arith.constant 0 : index
    %5 = vector.load %arg8[%c0_4, %c0_5] : memref<16x32xf32, #tpu.memory_space<vmem>>, vector<16x32xf32>
    %cst = arith.constant dense<0.000000e+00> : vector<16x32xf32>
    %6 = tpu.matmul %3, %4, %cst {dimension_numbers = #tpu.dot_dimension_numbers<[1], [0], [0], [1], [0, 0, 1, 1], [], []>} : vector<16x64xbf16>, vector<64x32xbf16>, vector<16x32xf32> -> vector<16x32xf32>
    %7 = arith.addf %5, %6 : vector<16x32xf32>
    %c0_6 = arith.constant 0 : index
    %c0_7 = arith.constant 0 : index
    %8 = vector.load %arg8[%c0_6, %c0_7] : memref<16x32xf32, #tpu.memory_space<vmem>>, vector<16x32xf32>
    tpu.vector_store %arg8[%c0_6, %c0_7], %7 {strides = array<i32>} : memref<16x32xf32, #tpu.memory_space<vmem>>, vector<16x32xf32>,
    %c0_i32_8 = arith.constant 0 : i32
    %9 = arith.cmpi eq, %arg2, %c0_i32_8 : i32
    %10 = arith.extui %9 : i1 to i32
    %c0_i32_9 = arith.constant 0 : i32
    %11 = arith.cmpi ne, %10, %c0_i32_9 : i32
    scf.if %11 {
      %c0_10 = arith.constant 0 : index
      %c0_11 = arith.constant 0 : index
      %12 = vector.load %arg8[%c0_10, %c0_11] : memref<16x32xf32, #tpu.memory_space<vmem>>, vector<16x32xf32>
      %c0_12 = arith.constant 0 : index
      %c0_13 = arith.constant 0 : index
      %13 = vector.load %arg5[%c0_12, %c0_13] : memref<1x32xf32, #tpu.memory_space<vmem>>, vector<1x32xf32>
      %14 = vector.broadcast %13 : vector<1x32xf32> to vector<16x32xf32>
      %15 = arith.addf %12, %14 : vector<16x32xf32>
      %c0_14 = arith.constant 0 : index
      %c0_15 = arith.constant 0 : index
      %16 = vector.load %arg6[%c0_14, %c0_15] : memref<16x32xbf16, #tpu.memory_space<vmem>>, vector<16x32xbf16>
      %17 = arith.extf %16 : vector<16x32xbf16> to vector<16x32xf32>
      %18 = arith.addf %15, %17 : vector<16x32xf32>
      %19 = arith.truncf %18 : vector<16x32xf32> to vector<16x32xbf16>
      %c0_16 = arith.constant 0 : index
      %c0_17 = arith.constant 0 : index
      %20 = vector.load %arg7[%c0_16, %c0_17] : memref<16x32xbf16, #tpu.memory_space<vmem>>, vector<16x32xbf16>
      tpu.vector_store %arg7[%c0_16, %c0_17], %19 {strides = array<i32>} : memref<16x32xbf16, #tpu.memory_space<vmem>>, vector<16x32xbf16>,
    } else {
    }
    return
  }
  func.func @transform_0(%arg0: i32, %arg1: i32, %arg2: i32) -> (i32, i32) {
    %c0_i32 = arith.constant 0 : i32
    return %arg0, %arg2 : i32, i32
  }
  func.func @transform_1(%arg0: i32, %arg1: i32, %arg2: i32) -> (i32, i32) {
    %c0_i32 = arith.constant 0 : i32
    return %arg2, %arg1 : i32, i32
  }
  func.func @transform_2(%arg0: i32, %arg1: i32, %arg2: i32) -> (i32, i32) {
    %c0_i32 = arith.constant 0 : i32
    %c0_i32_0 = arith.constant 0 : i32
    return %c0_i32, %arg1 : i32, i32
  }
  func.func @transform_3(%arg0: i32, %arg1: i32, %arg2: i32) -> (i32, i32) {
    %c0_i32 = arith.constant 0 : i32
    return %arg0, %arg1 : i32, i32
  }
  func.func @transform_4(%arg0: i32, %arg1: i32, %arg2: i32) -> (i32, i32) {
    %c0_i32 = arith.constant 0 : i32
    return %arg0, %arg1 : i32, i32
  }
}

module attributes {stable_mosaic.version = 11 : i64} {
  func.func @_layernorm_kernel(%arg0: i32, %arg1: memref<16x32xbf16, #tpu.memory_space<vmem>>, %arg2: memref<1x32xf32, #tpu.memory_space<vmem>>, %arg3: memref<1x32xf32, #tpu.memory_space<vmem>>, %arg4: memref<16x32xbf16, #tpu.memory_space<vmem>>) attributes {dimension_semantics = [#tpu.dimension_semantics<parallel>], iteration_bounds = array<i64: 1>, scalar_prefetch = 0 : i64, scratch_operands = 0 : i64, tpu.core_type = #tpu.core_type<tc>, window_params = [{transform_indices = @transform_0, window_bounds = array<i64: 16, 32>}, {pipeline_mode = #tpu.pipeline_mode<synchronous>, transform_indices = @transform_1, window_bounds = array<i64: 1, 32>}, {pipeline_mode = #tpu.pipeline_mode<synchronous>, transform_indices = @transform_2, window_bounds = array<i64: 1, 32>}, {transform_indices = @transform_3, window_bounds = array<i64: 16, 32>}]} {
    %c0 = arith.constant 0 : index
    %c0_0 = arith.constant 0 : index
    %0 = vector.load %arg1[%c0, %c0_0] : memref<16x32xbf16, #tpu.memory_space<vmem>>, vector<16x32xbf16>
    %1 = arith.extf %0 : vector<16x32xbf16> to vector<16x32xf32>
    %cst = arith.constant dense<0.000000e+00> : vector<16xf32>
    %2 = vector.multi_reduction <add>, %1, %cst [1] : vector<16x32xf32> to vector<16xf32>
    %3 = vector.shape_cast %2 : vector<16xf32> to vector<16x1xf32>
    %cst_1 = arith.constant 3.200000e+01 : f32
    %4 = vector.broadcast %cst_1 : f32 to vector<16x1xf32>
    %5 = arith.divf %3, %4 : vector<16x1xf32>
    %6 = vector.broadcast %5 : vector<16x1xf32> to vector<16x32xf32>
    %7 = arith.subf %1, %6 : vector<16x32xf32>
    %8 = arith.mulf %7, %7 : vector<16x32xf32>
    %cst_2 = arith.constant dense<0.000000e+00> : vector<16xf32>
    %9 = vector.multi_reduction <add>, %8, %cst_2 [1] : vector<16x32xf32> to vector<16xf32>
    %10 = vector.shape_cast %9 : vector<16xf32> to vector<16x1xf32>
    %cst_3 = arith.constant 3.200000e+01 : f32
    %11 = vector.broadcast %cst_3 : f32 to vector<16x1xf32>
    %12 = arith.divf %10, %11 : vector<16x1xf32>
    %cst_4 = arith.constant 9.99999974E-6 : f32
    %13 = vector.broadcast %cst_4 : f32 to vector<16x1xf32>
    %14 = arith.addf %12, %13 : vector<16x1xf32>
    %15 = math.rsqrt %14 : vector<16x1xf32>
    %16 = vector.broadcast %15 : vector<16x1xf32> to vector<16x32xf32>
    %17 = arith.mulf %7, %16 : vector<16x32xf32>
    %c0_5 = arith.constant 0 : index
    %c0_6 = arith.constant 0 : index
    %18 = vector.load %arg2[%c0_5, %c0_6] : memref<1x32xf32, #tpu.memory_space<vmem>>, vector<1x32xf32>
    %19 = vector.broadcast %18 : vector<1x32xf32> to vector<16x32xf32>
    %20 = arith.mulf %17, %19 : vector<16x32xf32>
    %c0_7 = arith.constant 0 : index
    %c0_8 = arith.constant 0 : index
    %21 = vector.load %arg3[%c0_7, %c0_8] : memref<1x32xf32, #tpu.memory_space<vmem>>, vector<1x32xf32>
    %22 = vector.broadcast %21 : vector<1x32xf32> to vector<16x32xf32>
    %23 = arith.addf %20, %22 : vector<16x32xf32>
    %24 = arith.truncf %23 : vector<16x32xf32> to vector<16x32xbf16>
    %c0_9 = arith.constant 0 : index
    %c0_10 = arith.constant 0 : index
    %25 = vector.load %arg4[%c0_9, %c0_10] : memref<16x32xbf16, #tpu.memory_space<vmem>>, vector<16x32xbf16>
    tpu.vector_store %arg4[%c0_9, %c0_10], %24 {strides = array<i32>} : memref<16x32xbf16, #tpu.memory_space<vmem>>, vector<16x32xbf16>,
    return
  }
  func.func @transform_0(%arg0: i32) -> (i32, i32) {
    %c0_i32 = arith.constant 0 : i32
    %c0_i32_0 = arith.constant 0 : i32
    return %arg0, %c0_i32 : i32, i32
  }
  func.func @transform_1(%arg0: i32) -> (i32, i32) {
    %c0_i32 = arith.constant 0 : i32
    %c0_i32_0 = arith.constant 0 : i32
    %c0_i32_1 = arith.constant 0 : i32
    return %c0_i32, %c0_i32_0 : i32, i32
  }
  func.func @transform_2(%arg0: i32) -> (i32, i32) {
    %c0_i32 = arith.constant 0 : i32
    %c0_i32_0 = arith.constant 0 : i32
    %c0_i32_1 = arith.constant 0 : i32
    return %c0_i32, %c0_i32_0 : i32, i32
  }
  func.func @transform_3(%arg0: i32) -> (i32, i32) {
    %c0_i32 = arith.constant 0 : i32
    %c0_i32_0 = arith.constant 0 : i32
    return %arg0, %c0_i32 : i32, i32
  }
}

module attributes {stable_mosaic.version = 11 : i64} {
  func.func @kernel(%arg0: i32, %arg1: i32, %arg2: i32, %arg3: memref<16x32xbf16, #tpu.memory_space<vmem>>, %arg4: memref<32x64xbf16, #tpu.memory_space<vmem>>, %arg5: memref<1x64xf32, #tpu.memory_space<vmem>>, %arg6: memref<16x64xbf16, #tpu.memory_space<vmem>>, %arg7: memref<16x64xf32, #tpu.memory_space<vmem>>) attributes {dimension_semantics = [#tpu.dimension_semantics<parallel>, #tpu.dimension_semantics<parallel>, #tpu.dimension_semantics<arbitrary>], iteration_bounds = array<i64: 1, 1, 1>, scalar_prefetch = 0 : i64, scratch_operands = 1 : i64, tpu.core_type = #tpu.core_type<tc>, window_params = [{transform_indices = @transform_0, window_bounds = array<i64: 16, 32>}, {transform_indices = @transform_1, window_bounds = array<i64: 32, 64>}, {transform_indices = @transform_2, window_bounds = array<i64: 1, 64>}, {transform_indices = @transform_3, window_bounds = array<i64: 16, 64>}]} {
    %c0_i32 = arith.constant 0 : i32
    %0 = arith.cmpi eq, %arg2, %c0_i32 : i32
    %1 = arith.extui %0 : i1 to i32
    %c0_i32_0 = arith.constant 0 : i32
    %2 = arith.cmpi ne, %1, %c0_i32_0 : i32
    scf.if %2 {
      %cst_10 = arith.constant 0.000000e+00 : f32
      %12 = vector.broadcast %cst_10 : f32 to vector<16x64xf32>
      %c0_11 = arith.constant 0 : index
      %c0_12 = arith.constant 0 : index
      %13 = vector.load %arg7[%c0_11, %c0_12] : memref<16x64xf32, #tpu.memory_space<vmem>>, vector<16x64xf32>
      tpu.vector_store %arg7[%c0_11, %c0_12], %12 {strides = array<i32>} : memref<16x64xf32, #tpu.memory_space<vmem>>, vector<16x64xf32>,
    } else {
    }
    %c0 = arith.constant 0 : index
    %c0_1 = arith.constant 0 : index
    %3 = vector.load %arg3[%c0, %c0_1] : memref<16x32xbf16, #tpu.memory_space<vmem>>, vector<16x32xbf16>
    %c0_2 = arith.constant 0 : index
    %c0_3 = arith.constant 0 : index
    %4 = vector.load %arg4[%c0_2, %c0_3] : memref<32x64xbf16, #tpu.memory_space<vmem>>, vector<32x64xbf16>
    %c0_4 = arith.constant 0 : index
    %c0_5 = arith.constant 0 : index
    %5 = vector.load %arg7[%c0_4, %c0_5] : memref<16x64xf32, #tpu.memory_space<vmem>>, vector<16x64xf32>
    %cst = arith.constant dense<0.000000e+00> : vector<16x64xf32>
    %6 = tpu.matmul %3, %4, %cst {dimension_numbers = #tpu.dot_dimension_numbers<[1], [0], [0], [1], [0, 0, 1, 1], [], []>} : vector<16x32xbf16>, vector<32x64xbf16>, vector<16x64xf32> -> vector<16x64xf32>
    %7 = arith.addf %5, %6 : vector<16x64xf32>
    %c0_6 = arith.constant 0 : index
    %c0_7 = arith.constant 0 : index
    %8 = vector.load %arg7[%c0_6, %c0_7] : memref<16x64xf32, #tpu.memory_space<vmem>>, vector<16x64xf32>
    tpu.vector_store %arg7[%c0_6, %c0_7], %7 {strides = array<i32>} : memref<16x64xf32, #tpu.memory_space<vmem>>, vector<16x64xf32>,
    %c0_i32_8 = arith.constant 0 : i32
    %9 = arith.cmpi eq, %arg2, %c0_i32_8 : i32
    %10 = arith.extui %9 : i1 to i32
    %c0_i32_9 = arith.constant 0 : i32
    %11 = arith.cmpi ne, %10, %c0_i32_9 : i32
    scf.if %11 {
      %c0_10 = arith.constant 0 : index
      %c0_11 = arith.constant 0 : index
      %12 = vector.load %arg7[%c0_10, %c0_11] : memref<16x64xf32, #tpu.memory_space<vmem>>, vector<16x64xf32>
      %c0_12 = arith.constant 0 : index
      %c0_13 = arith.constant 0 : index
      %13 = vector.load %arg5[%c0_12, %c0_13] : memref<1x64xf32, #tpu.memory_space<vmem>>, vector<1x64xf32>
      %14 = vector.broadcast %13 : vector<1x64xf32> to vector<16x64xf32>
      %15 = arith.addf %12, %14 : vector<16x64xf32>
      %16 = arith.truncf %15 : vector<16x64xf32> to vector<16x64xbf16>
      %c0_14 = arith.constant 0 : index
      %c0_15 = arith.constant 0 : index
      %17 = vector.load %arg6[%c0_14, %c0_15] : memref<16x64xbf16, #tpu.memory_space<vmem>>, vector<16x64xbf16>
      tpu.vector_store %arg6[%c0_14, %c0_15], %16 {strides = array<i32>} : memref<16x64xbf16, #tpu.memory_space<vmem>>, vector<16x64xbf16>,
    } else {
    }
    return
  }
  func.func @transform_0(%arg0: i32, %arg1: i32, %arg2: i32) -> (i32, i32) {
    %c0_i32 = arith.constant 0 : i32
    return %arg0, %arg2 : i32, i32
  }
  func.func @transform_1(%arg0: i32, %arg1: i32, %arg2: i32) -> (i32, i32) {
    %c0_i32 = arith.constant 0 : i32
    return %arg2, %arg1 : i32, i32
  }
  func.func @transform_2(%arg0: i32, %arg1: i32, %arg2: i32) -> (i32, i32) {
    %c0_i32 = arith.constant 0 : i32
    %c0_i32_0 = arith.constant 0 : i32
    return %c0_i32, %arg1 : i32, i32
  }
  func.func @transform_3(%arg0: i32, %arg1: i32, %arg2: i32) -> (i32, i32) {
    %c0_i32 = arith.constant 0 : i32
    return %arg0, %arg1 : i32, i32
  }
}

module attributes {stable_mosaic.version = 11 : i64} {
  func.func @kernel(%arg0: i32, %arg1: memref<1x8x96xbf16, #tpu.memory_space<vmem>>, %arg2: memref<1x8x32xbf16, #tpu.memory_space<vmem>>) attributes {dimension_semantics = [#tpu.dimension_semantics<parallel>], iteration_bounds = array<i64: 2>, scalar_prefetch = 0 : i64, scratch_operands = 0 : i64, tpu.core_type = #tpu.core_type<tc>, window_params = [{transform_indices = @transform_0, window_bounds = array<i64: 1, 8, 96>}, {transform_indices = @transform_1, window_bounds = array<i64: 1, 8, 32>}]} {
    %c0 = arith.constant 0 : index
    %c0_0 = arith.constant 0 : index
    %c0_1 = arith.constant 0 : index
    %0 = vector.load %arg1[%c0, %c0_0, %c0_1] : memref<1x8x96xbf16, #tpu.memory_space<vmem>>, vector<1x8x96xbf16>
    %1 = vector.shape_cast %0 : vector<1x8x96xbf16> to vector<8x96xbf16>
    %2 = arith.extf %1 : vector<8x96xbf16> to vector<8x96xf32>
    %3 = vector.extract_strided_slice %2 {offsets = [0, 0], sizes = [8, 32], strides = [1, 1]} : vector<8x96xf32> to vector<8x32xf32>
    %4 = vector.extract_strided_slice %2 {offsets = [0, 32], sizes = [8, 32], strides = [1, 1]} : vector<8x96xf32> to vector<8x32xf32>
    %5 = vector.extract_strided_slice %2 {offsets = [0, 64], sizes = [8, 32], strides = [1, 1]} : vector<8x96xf32> to vector<8x32xf32>
    %6 = tpu.iota {dimensions = array<i32: 0>} : vector<8x8xi32>
    %7 = tpu.iota {dimensions = array<i32: 1>} : vector<8x8xi32>
    %8 = arith.cmpi sge, %6, %7 : vector<8x8xi32>
    %cst = arith.constant 0.000000e+00 : f32
    %cst_2 = arith.constant -1.000000e+09 : f32
    %9 = vector.broadcast %cst : f32 to vector<8x8xf32>
    %10 = vector.broadcast %cst_2 : f32 to vector<8x8xf32>
    %11 = arith.select %8, %9, %10 : vector<8x8xi1>, vector<8x8xf32>
    %12 = vector.extract_strided_slice %3 {offsets = [0, 0], sizes = [8, 8], strides = [1, 1]} : vector<8x32xf32> to vector<8x8xf32>
    %13 = arith.truncf %12 : vector<8x8xf32> to vector<8x8xbf16>
    %14 = vector.extract_strided_slice %4 {offsets = [0, 0], sizes = [8, 8], strides = [1, 1]} : vector<8x32xf32> to vector<8x8xf32>
    %15 = arith.truncf %14 : vector<8x8xf32> to vector<8x8xbf16>
    %16 = vector.extract_strided_slice %5 {offsets = [0, 0], sizes = [8, 8], strides = [1, 1]} : vector<8x32xf32> to vector<8x8xf32>
    %17 = arith.truncf %16 : vector<8x8xf32> to vector<8x8xbf16>
    %cst_3 = arith.constant dense<0.000000e+00> : vector<8x8xf32>
    %18 = tpu.matmul %13, %15, %cst_3 {dimension_numbers = #tpu.dot_dimension_numbers<[1], [1], [0], [0], [0, 0, 1, 0], [], []>} : vector<8x8xbf16>, vector<8x8xbf16>, vector<8x8xf32> -> vector<8x8xf32>
    %cst_4 = arith.constant 0.353553385 : f32
    %19 = vector.broadcast %cst_4 : f32 to vector<8x8xf32>
    %20 = arith.mulf %18, %19 : vector<8x8xf32>
    %21 = arith.addf %20, %11 : vector<8x8xf32>
    %cst_5 = arith.constant dense<0xFF800000> : vector<8xf32>
    %22 = vector.multi_reduction <maximumf>, %21, %cst_5 [1] : vector<8x8xf32> to vector<8xf32>
    %23 = vector.shape_cast %22 : vector<8xf32> to vector<8x1xf32>
    %24 = vector.broadcast %23 : vector<8x1xf32> to vector<8x8xf32>
    %25 = arith.subf %21, %24 : vector<8x8xf32>
    %26 = math.exp %25 : vector<8x8xf32>
    %cst_6 = arith.constant dense<0.000000e+00> : vector<8xf32>
    %27 = vector.multi_reduction <add>, %26, %cst_6 [1] : vector<8x8xf32> to vector<8xf32>
    %28 = vector.shape_cast %27 : vector<8xf32> to vector<8x1xf32>
    %29 = arith.truncf %26 : vector<8x8xf32> to vector<8x8xbf16>
    %cst_7 = arith.constant dense<0.000000e+00> : vector<8x8xf32>
    %30 = tpu.matmul %29, %17, %cst_7 {dimension_numbers = #tpu.dot_dimension_numbers<[1], [0], [0], [1], [0, 0, 1, 1], [], []>} : vector<8x8xbf16>, vector<8x8xbf16>, vector<8x8xf32> -> vector<8x8xf32>
    %31 = tpu.reciprocal %28 {approx = true} : vector<8x1xf32> -> vector<8x1xf32>
    %32 = vector.broadcast %31 : vector<8x1xf32> to vector<8x8xf32>
    %33 = arith.mulf %30, %32 : vector<8x8xf32>
    %34 = vector.extract_strided_slice %3 {offsets = [0, 8], sizes = [8, 8], strides = [1, 1]} : vector<8x32xf32> to vector<8x8xf32>
    %35 = arith.truncf %34 : vector<8x8xf32> to vector<8x8xbf16>
    %36 = vector.extract_strided_slice %4 {offsets = [0, 8], sizes = [8, 8], strides = [1, 1]} : vector<8x32xf32> to vector<8x8xf32>
    %37 = arith.truncf %36 : vector<8x8xf32> to vector<8x8xbf16>
    %38 = vector.extract_strided_slice %5 {offsets = [0, 8], sizes = [8, 8], strides = [1, 1]} : vector<8x32xf32> to vector<8x8xf32>
    %39 = arith.truncf %38 : vector<8x8xf32> to vector<8x8xbf16>
    %cst_8 = arith.constant dense<0.000000e+00> : vector<8x8xf32>
    %40 = tpu.matmul %35, %37, %cst_8 {dimension_numbers = #tpu.dot_dimension_numbers<[1], [1], [0], [0], [0, 0, 1, 0], [], []>} : vector<8x8xbf16>, vector<8x8xbf16>, vector<8x8xf32> -> vector<8x8xf32>
    %cst_9 = arith.constant 0.353553385 : f32
    %41 = vector.broadcast %cst_9 : f32 to vector<8x8xf32>
    %42 = arith.mulf %40, %41 : vector<8x8xf32>
    %43 = arith.addf %42, %11 : vector<8x8xf32>
    %cst_10 = arith.constant dense<0xFF800000> : vector<8xf32>
    %44 = vector.multi_reduction <maximumf>, %43, %cst_10 [1] : vector<8x8xf32> to vector<8xf32>
    %45 = vector.shape_cast %44 : vector<8xf32> to vector<8x1xf32>
    %46 = vector.broadcast %45 : vector<8x1xf32> to vector<8x8xf32>
    %47 = arith.subf %43, %46 : vector<8x8xf32>
    %48 = math.exp %47 : vector<8x8xf32>
    %cst_11 = arith.constant dense<0.000000e+00> : vector<8xf32>
    %49 = vector.multi_reduction <add>, %48, %cst_11 [1] : vector<8x8xf32> to vector<8xf32>
    %50 = vector.shape_cast %49 : vector<8xf32> to vector<8x1xf32>
    %51 = arith.truncf %48 : vector<8x8xf32> to vector<8x8xbf16>
    %cst_12 = arith.constant dense<0.000000e+00> : vector<8x8xf32>
    %52 = tpu.matmul %51, %39, %cst_12 {dimension_numbers = #tpu.dot_dimension_numbers<[1], [0], [0], [1], [0, 0, 1, 1], [], []>} : vector<8x8xbf16>, vector<8x8xbf16>, vector<8x8xf32> -> vector<8x8xf32>
    %53 = tpu.reciprocal %50 {approx = true} : vector<8x1xf32> -> vector<8x1xf32>
    %54 = vector.broadcast %53 : vector<8x1xf32> to vector<8x8xf32>
    %55 = arith.mulf %52, %54 : vector<8x8xf32>
    %56 = vector.extract_strided_slice %3 {offsets = [0, 16], sizes = [8, 8], strides = [1, 1]} : vector<8x32xf32> to vector<8x8xf32>
    %57 = arith.truncf %56 : vector<8x8xf32> to vector<8x8xbf16>
    %58 = vector.extract_strided_slice %4 {offsets = [0, 16], sizes = [8, 8], strides = [1, 1]} : vector<8x32xf32> to vector<8x8xf32>
    %59 = arith.truncf %58 : vector<8x8xf32> to vector<8x8xbf16>
    %60 = vector.extract_strided_slice %5 {offsets = [0, 16], sizes = [8, 8], strides = [1, 1]} : vector<8x32xf32> to vector<8x8xf32>
    %61 = arith.truncf %60 : vector<8x8xf32> to vector<8x8xbf16>
    %cst_13 = arith.constant dense<0.000000e+00> : vector<8x8xf32>
    %62 = tpu.matmul %57, %59, %cst_13 {dimension_numbers = #tpu.dot_dimension_numbers<[1], [1], [0], [0], [0, 0, 1, 0], [], []>} : vector<8x8xbf16>, vector<8x8xbf16>, vector<8x8xf32> -> vector<8x8xf32>
    %cst_14 = arith.constant 0.353553385 : f32
    %63 = vector.broadcast %cst_14 : f32 to vector<8x8xf32>
    %64 = arith.mulf %62, %63 : vector<8x8xf32>
    %65 = arith.addf %64, %11 : vector<8x8xf32>
    %cst_15 = arith.constant dense<0xFF800000> : vector<8xf32>
    %66 = vector.multi_reduction <maximumf>, %65, %cst_15 [1] : vector<8x8xf32> to vector<8xf32>
    %67 = vector.shape_cast %66 : vector<8xf32> to vector<8x1xf32>
    %68 = vector.broadcast %67 : vector<8x1xf32> to vector<8x8xf32>
    %69 = arith.subf %65, %68 : vector<8x8xf32>
    %70 = math.exp %69 : vector<8x8xf32>
    %cst_16 = arith.constant dense<0.000000e+00> : vector<8xf32>
    %71 = vector.multi_reduction <add>, %70, %cst_16 [1] : vector<8x8xf32> to vector<8xf32>
    %72 = vector.shape_cast %71 : vector<8xf32> to vector<8x1xf32>
    %73 = arith.truncf %70 : vector<8x8xf32> to vector<8x8xbf16>
    %cst_17 = arith.constant dense<0.000000e+00> : vector<8x8xf32>
    %74 = tpu.matmul %73, %61, %cst_17 {dimension_numbers = #tpu.dot_dimension_numbers<[1], [0], [0], [1], [0, 0, 1, 1], [], []>} : vector<8x8xbf16>, vector<8x8xbf16>, vector<8x8xf32> -> vector<8x8xf32>
    %75 = tpu.reciprocal %72 {approx = true} : vector<8x1xf32> -> vector<8x1xf32>
    %76 = vector.broadcast %75 : vector<8x1xf32> to vector<8x8xf32>
    %77 = arith.mulf %74, %76 : vector<8x8xf32>
    %78 = vector.extract_strided_slice %3 {offsets = [0, 24], sizes = [8, 8], strides = [1, 1]} : vector<8x32xf32> to vector<8x8xf32>
    %79 = arith.truncf %78 : vector<8x8xf32> to vector<8x8xbf16>
    %80 = vector.extract_strided_slice %4 {offsets = [0, 24], sizes = [8, 8], strides = [1, 1]} : vector<8x32xf32> to vector<8x8xf32>
    %81 = arith.truncf %80 : vector<8x8xf32> to vector<8x8xbf16>
    %82 = vector.extract_strided_slice %5 {offsets = [0, 24], sizes = [8, 8], strides = [1, 1]} : vector<8x32xf32> to vector<8x8xf32>
    %83 = arith.truncf %82 : vector<8x8xf32> to vector<8x8xbf16>
    %cst_18 = arith.constant dense<0.000000e+00> : vector<8x8xf32>
    %84 = tpu.matmul %79, %81, %cst_18 {dimension_numbers = #tpu.dot_dimension_numbers<[1], [1], [0], [0], [0, 0, 1, 0], [], []>} : vector<8x8xbf16>, vector<8x8xbf16>, vector<8x8xf32> -> vector<8x8xf32>
    %cst_19 = arith.constant 0.353553385 : f32
    %85 = vector.broadcast %cst_19 : f32 to vector<8x8xf32>
    %86 = arith.mulf %84, %85 : vector<8x8xf32>
    %87 = arith.addf %86, %11 : vector<8x8xf32>
    %cst_20 = arith.constant dense<0xFF800000> : vector<8xf32>
    %88 = vector.multi_reduction <maximumf>, %87, %cst_20 [1] : vector<8x8xf32> to vector<8xf32>
    %89 = vector.shape_cast %88 : vector<8xf32> to vector<8x1xf32>
    %90 = vector.broadcast %89 : vector<8x1xf32> to vector<8x8xf32>
    %91 = arith.subf %87, %90 : vector<8x8xf32>
    %92 = math.exp %91 : vector<8x8xf32>
    %cst_21 = arith.constant dense<0.000000e+00> : vector<8xf32>
    %93 = vector.multi_reduction <add>, %92, %cst_21 [1] : vector<8x8xf32> to vector<8xf32>
    %94 = vector.shape_cast %93 : vector<8xf32> to vector<8x1xf32>
    %95 = arith.truncf %92 : vector<8x8xf32> to vector<8x8xbf16>
    %cst_22 = arith.constant dense<0.000000e+00> : vector<8x8xf32>
    %96 = tpu.matmul %95, %83, %cst_22 {dimension_numbers = #tpu.dot_dimension_numbers<[1], [0], [0], [1], [0, 0, 1, 1], [], []>} : vector<8x8xbf16>, vector<8x8xbf16>, vector<8x8xf32> -> vector<8x8xf32>
    %97 = tpu.reciprocal %94 {approx = true} : vector<8x1xf32> -> vector<8x1xf32>
    %98 = vector.broadcast %97 : vector<8x1xf32> to vector<8x8xf32>
    %99 = arith.mulf %96, %98 : vector<8x8xf32>
    %100 = tpu.concatenate %33, %55, %77, %99 in 1 : vector<8x8xf32>, vector<8x8xf32>, vector<8x8xf32>, vector<8x8xf32> -> vector<8x32xf32>
    %101 = arith.truncf %100 : vector<8x32xf32> to vector<8x32xbf16>
    %c0_23 = arith.constant 0 : index
    %c0_24 = arith.constant 0 : index
    %c0_25 = arith.constant 0 : index
    %102 = vector.load %arg2[%c0_23, %c0_24, %c0_25] : memref<1x8x32xbf16, #tpu.memory_space<vmem>>, vector<1x8x32xbf16>
    %103 = vector.shape_cast %102 : vector<1x8x32xbf16> to vector<8x32xbf16>
    %104 = vector.shape_cast %101 : vector<8x32xbf16> to vector<1x8x32xbf16>
    tpu.vector_store %arg2[%c0_23, %c0_24, %c0_25], %104 {strides = array<i32>} : memref<1x8x32xbf16, #tpu.memory_space<vmem>>, vector<1x8x32xbf16>,
    return
  }
  func.func @transform_0(%arg0: i32) -> (i32, i32, i32) {
    %c0_i32 = arith.constant 0 : i32
    %c0_i32_0 = arith.constant 0 : i32
    %c0_i32_1 = arith.constant 0 : i32
    return %arg0, %c0_i32, %c0_i32_0 : i32, i32, i32
  }
  func.func @transform_1(%arg0: i32) -> (i32, i32, i32) {
    %c0_i32 = arith.constant 0 : i32
    %c0_i32_0 = arith.constant 0 : i32
    %c0_i32_1 = arith.constant 0 : i32
    return %arg0, %c0_i32, %c0_i32_0 : i32, i32, i32
  }
}

module attributes {stable_mosaic.version = 11 : i64} {
  func.func @kernel(%arg0: i32, %arg1: memref<1x8x32xbf16, #tpu.memory_space<vmem>>, %arg2: memref<1x8x64xbf16, #tpu.memory_space<vmem>>, %arg3: memref<1x1x8xf32, #tpu.memory_space<vmem>>, %arg4: memref<1x8x32xbf16, #tpu.memory_space<vmem>>) attributes {dimension_semantics = [#tpu.dimension_semantics<parallel>], iteration_bounds = array<i64: 2>, scalar_prefetch = 0 : i64, scratch_operands = 0 : i64, tpu.core_type = #tpu.core_type<tc>, window_params = [{transform_indices = @transform_0, window_bounds = array<i64: 1, 8, 32>}, {transform_indices = @transform_1, window_bounds = array<i64: 1, 8, 64>}, {transform_indices = @transform_2, window_bounds = array<i64: 1, 1, 8>}, {transform_indices = @transform_3, window_bounds = array<i64: 1, 8, 32>}]} {
    %c0 = arith.constant 0 : index
    %c0_0 = arith.constant 0 : index
    %c0_1 = arith.constant 0 : index
    %0 = vector.load %arg1[%c0, %c0_0, %c0_1] : memref<1x8x32xbf16, #tpu.memory_space<vmem>>, vector<1x8x32xbf16>
    %1 = vector.shape_cast %0 : vector<1x8x32xbf16> to vector<8x32xbf16>
    %2 = arith.extf %1 : vector<8x32xbf16> to vector<8x32xf32>
    %c0_2 = arith.constant 0 : index
    %c0_3 = arith.constant 0 : index
    %c0_4 = arith.constant 0 : index
    %3 = vector.load %arg2[%c0_2, %c0_3, %c0_4] : memref<1x8x64xbf16, #tpu.memory_space<vmem>>, vector<1x8x64xbf16>
    %4 = vector.shape_cast %3 : vector<1x8x64xbf16> to vector<8x64xbf16>
    %5 = arith.extf %4 : vector<8x64xbf16> to vector<8x64xf32>
    %6 = vector.extract_strided_slice %5 {offsets = [0, 0], sizes = [8, 32], strides = [1, 1]} : vector<8x64xf32> to vector<8x32xf32>
    %7 = vector.extract_strided_slice %5 {offsets = [0, 32], sizes = [8, 32], strides = [1, 1]} : vector<8x64xf32> to vector<8x32xf32>
    %c0_5 = arith.constant 0 : index
    %c0_6 = arith.constant 0 : index
    %c0_7 = arith.constant 0 : index
    %8 = vector.load %arg3[%c0_5, %c0_6, %c0_7] : memref<1x1x8xf32, #tpu.memory_space<vmem>>, vector<1x1x8xf32>
    %9 = vector.shape_cast %8 : vector<1x1x8xf32> to vector<1x8xf32>
    %10 = vector.extract_strided_slice %2 {offsets = [0, 0], sizes = [8, 8], strides = [1, 1]} : vector<8x32xf32> to vector<8x8xf32>
    %11 = arith.truncf %10 : vector<8x8xf32> to vector<8x8xbf16>
    %12 = vector.extract_strided_slice %6 {offsets = [0, 0], sizes = [8, 8], strides = [1, 1]} : vector<8x32xf32> to vector<8x8xf32>
    %13 = arith.truncf %12 : vector<8x8xf32> to vector<8x8xbf16>
    %14 = vector.extract_strided_slice %7 {offsets = [0, 0], sizes = [8, 8], strides = [1, 1]} : vector<8x32xf32> to vector<8x8xf32>
    %15 = arith.truncf %14 : vector<8x8xf32> to vector<8x8xbf16>
    %cst = arith.constant dense<0.000000e+00> : vector<8x8xf32>
    %16 = tpu.matmul %11, %13, %cst {dimension_numbers = #tpu.dot_dimension_numbers<[1], [1], [0], [0], [0, 0, 1, 0], [], []>} : vector<8x8xbf16>, vector<8x8xbf16>, vector<8x8xf32> -> vector<8x8xf32>
    %cst_8 = arith.constant 0.353553385 : f32
    %17 = vector.broadcast %cst_8 : f32 to vector<8x8xf32>
    %18 = arith.mulf %16, %17 : vector<8x8xf32>
    %19 = vector.broadcast %9 : vector<1x8xf32> to vector<8x8xf32>
    %20 = arith.addf %18, %19 : vector<8x8xf32>
    %cst_9 = arith.constant dense<0xFF800000> : vector<8xf32>
    %21 = vector.multi_reduction <maximumf>, %20, %cst_9 [1] : vector<8x8xf32> to vector<8xf32>
    %22 = vector.shape_cast %21 : vector<8xf32> to vector<8x1xf32>
    %23 = vector.broadcast %22 : vector<8x1xf32> to vector<8x8xf32>
    %24 = arith.subf %20, %23 : vector<8x8xf32>
    %25 = math.exp %24 : vector<8x8xf32>
    %cst_10 = arith.constant dense<0.000000e+00> : vector<8xf32>
    %26 = vector.multi_reduction <add>, %25, %cst_10 [1] : vector<8x8xf32> to vector<8xf32>
    %27 = vector.shape_cast %26 : vector<8xf32> to vector<8x1xf32>
    %28 = arith.truncf %25 : vector<8x8xf32> to vector<8x8xbf16>
    %cst_11 = arith.constant dense<0.000000e+00> : vector<8x8xf32>
    %29 = tpu.matmul %28, %15, %cst_11 {dimension_numbers = #tpu.dot_dimension_numbers<[1], [0], [0], [1], [0, 0, 1, 1], [], []>} : vector<8x8xbf16>, vector<8x8xbf16>, vector<8x8xf32> -> vector<8x8xf32>
    %30 = tpu.reciprocal %27 {approx = true} : vector<8x1xf32> -> vector<8x1xf32>
    %31 = vector.broadcast %30 : vector<8x1xf32> to vector<8x8xf32>
    %32 = arith.mulf %29, %31 : vector<8x8xf32>
    %33 = vector.extract_strided_slice %2 {offsets = [0, 8], sizes = [8, 8], strides = [1, 1]} : vector<8x32xf32> to vector<8x8xf32>
    %34 = arith.truncf %33 : vector<8x8xf32> to vector<8x8xbf16>
    %35 = vector.extract_strided_slice %6 {offsets = [0, 8], sizes = [8, 8], strides = [1, 1]} : vector<8x32xf32> to vector<8x8xf32>
    %36 = arith.truncf %35 : vector<8x8xf32> to vector<8x8xbf16>
    %37 = vector.extract_strided_slice %7 {offsets = [0, 8], sizes = [8, 8], strides = [1, 1]} : vector<8x32xf32> to vector<8x8xf32>
    %38 = arith.truncf %37 : vector<8x8xf32> to vector<8x8xbf16>
    %cst_12 = arith.constant dense<0.000000e+00> : vector<8x8xf32>
    %39 = tpu.matmul %34, %36, %cst_12 {dimension_numbers = #tpu.dot_dimension_numbers<[1], [1], [0], [0], [0, 0, 1, 0], [], []>} : vector<8x8xbf16>, vector<8x8xbf16>, vector<8x8xf32> -> vector<8x8xf32>
    %cst_13 = arith.constant 0.353553385 : f32
    %40 = vector.broadcast %cst_13 : f32 to vector<8x8xf32>
    %41 = arith.mulf %39, %40 : vector<8x8xf32>
    %42 = vector.broadcast %9 : vector<1x8xf32> to vector<8x8xf32>
    %43 = arith.addf %41, %42 : vector<8x8xf32>
    %cst_14 = arith.constant dense<0xFF800000> : vector<8xf32>
    %44 = vector.multi_reduction <maximumf>, %43, %cst_14 [1] : vector<8x8xf32> to vector<8xf32>
    %45 = vector.shape_cast %44 : vector<8xf32> to vector<8x1xf32>
    %46 = vector.broadcast %45 : vector<8x1xf32> to vector<8x8xf32>
    %47 = arith.subf %43, %46 : vector<8x8xf32>
    %48 = math.exp %47 : vector<8x8xf32>
    %cst_15 = arith.constant dense<0.000000e+00> : vector<8xf32>
    %49 = vector.multi_reduction <add>, %48, %cst_15 [1] : vector<8x8xf32> to vector<8xf32>
    %50 = vector.shape_cast %49 : vector<8xf32> to vector<8x1xf32>
    %51 = arith.truncf %48 : vector<8x8xf32> to vector<8x8xbf16>
    %cst_16 = arith.constant dense<0.000000e+00> : vector<8x8xf32>
    %52 = tpu.matmul %51, %38, %cst_16 {dimension_numbers = #tpu.dot_dimension_numbers<[1], [0], [0], [1], [0, 0, 1, 1], [], []>} : vector<8x8xbf16>, vector<8x8xbf16>, vector<8x8xf32> -> vector<8x8xf32>
    %53 = tpu.reciprocal %50 {approx = true} : vector<8x1xf32> -> vector<8x1xf32>
    %54 = vector.broadcast %53 : vector<8x1xf32> to vector<8x8xf32>
    %55 = arith.mulf %52, %54 : vector<8x8xf32>
    %56 = vector.extract_strided_slice %2 {offsets = [0, 16], sizes = [8, 8], strides = [1, 1]} : vector<8x32xf32> to vector<8x8xf32>
    %57 = arith.truncf %56 : vector<8x8xf32> to vector<8x8xbf16>
    %58 = vector.extract_strided_slice %6 {offsets = [0, 16], sizes = [8, 8], strides = [1, 1]} : vector<8x32xf32> to vector<8x8xf32>
    %59 = arith.truncf %58 : vector<8x8xf32> to vector<8x8xbf16>
    %60 = vector.extract_strided_slice %7 {offsets = [0, 16], sizes = [8, 8], strides = [1, 1]} : vector<8x32xf32> to vector<8x8xf32>
    %61 = arith.truncf %60 : vector<8x8xf32> to vector<8x8xbf16>
    %cst_17 = arith.constant dense<0.000000e+00> : vector<8x8xf32>
    %62 = tpu.matmul %57, %59, %cst_17 {dimension_numbers = #tpu.dot_dimension_numbers<[1], [1], [0], [0], [0, 0, 1, 0], [], []>} : vector<8x8xbf16>, vector<8x8xbf16>, vector<8x8xf32> -> vector<8x8xf32>
    %cst_18 = arith.constant 0.353553385 : f32
    %63 = vector.broadcast %cst_18 : f32 to vector<8x8xf32>
    %64 = arith.mulf %62, %63 : vector<8x8xf32>
    %65 = vector.broadcast %9 : vector<1x8xf32> to vector<8x8xf32>
    %66 = arith.addf %64, %65 : vector<8x8xf32>
    %cst_19 = arith.constant dense<0xFF800000> : vector<8xf32>
    %67 = vector.multi_reduction <maximumf>, %66, %cst_19 [1] : vector<8x8xf32> to vector<8xf32>
    %68 = vector.shape_cast %67 : vector<8xf32> to vector<8x1xf32>
    %69 = vector.broadcast %68 : vector<8x1xf32> to vector<8x8xf32>
    %70 = arith.subf %66, %69 : vector<8x8xf32>
    %71 = math.exp %70 : vector<8x8xf32>
    %cst_20 = arith.constant dense<0.000000e+00> : vector<8xf32>
    %72 = vector.multi_reduction <add>, %71, %cst_20 [1] : vector<8x8xf32> to vector<8xf32>
    %73 = vector.shape_cast %72 : vector<8xf32> to vector<8x1xf32>
    %74 = arith.truncf %71 : vector<8x8xf32> to vector<8x8xbf16>
    %cst_21 = arith.constant dense<0.000000e+00> : vector<8x8xf32>
    %75 = tpu.matmul %74, %61, %cst_21 {dimension_numbers = #tpu.dot_dimension_numbers<[1], [0], [0], [1], [0, 0, 1, 1], [], []>} : vector<8x8xbf16>, vector<8x8xbf16>, vector<8x8xf32> -> vector<8x8xf32>
    %76 = tpu.reciprocal %73 {approx = true} : vector<8x1xf32> -> vector<8x1xf32>
    %77 = vector.broadcast %76 : vector<8x1xf32> to vector<8x8xf32>
    %78 = arith.mulf %75, %77 : vector<8x8xf32>
    %79 = vector.extract_strided_slice %2 {offsets = [0, 24], sizes = [8, 8], strides = [1, 1]} : vector<8x32xf32> to vector<8x8xf32>
    %80 = arith.truncf %79 : vector<8x8xf32> to vector<8x8xbf16>
    %81 = vector.extract_strided_slice %6 {offsets = [0, 24], sizes = [8, 8], strides = [1, 1]} : vector<8x32xf32> to vector<8x8xf32>
    %82 = arith.truncf %81 : vector<8x8xf32> to vector<8x8xbf16>
    %83 = vector.extract_strided_slice %7 {offsets = [0, 24], sizes = [8, 8], strides = [1, 1]} : vector<8x32xf32> to vector<8x8xf32>
    %84 = arith.truncf %83 : vector<8x8xf32> to vector<8x8xbf16>
    %cst_22 = arith.constant dense<0.000000e+00> : vector<8x8xf32>
    %85 = tpu.matmul %80, %82, %cst_22 {dimension_numbers = #tpu.dot_dimension_numbers<[1], [1], [0], [0], [0, 0, 1, 0], [], []>} : vector<8x8xbf16>, vector<8x8xbf16>, vector<8x8xf32> -> vector<8x8xf32>
    %cst_23 = arith.constant 0.353553385 : f32
    %86 = vector.broadcast %cst_23 : f32 to vector<8x8xf32>
    %87 = arith.mulf %85, %86 : vector<8x8xf32>
    %88 = vector.broadcast %9 : vector<1x8xf32> to vector<8x8xf32>
    %89 = arith.addf %87, %88 : vector<8x8xf32>
    %cst_24 = arith.constant dense<0xFF800000> : vector<8xf32>
    %90 = vector.multi_reduction <maximumf>, %89, %cst_24 [1] : vector<8x8xf32> to vector<8xf32>
    %91 = vector.shape_cast %90 : vector<8xf32> to vector<8x1xf32>
    %92 = vector.broadcast %91 : vector<8x1xf32> to vector<8x8xf32>
    %93 = arith.subf %89, %92 : vector<8x8xf32>
    %94 = math.exp %93 : vector<8x8xf32>
    %cst_25 = arith.constant dense<0.000000e+00> : vector<8xf32>
    %95 = vector.multi_reduction <add>, %94, %cst_25 [1] : vector<8x8xf32> to vector<8xf32>
    %96 = vector.shape_cast %95 : vector<8xf32> to vector<8x1xf32>
    %97 = arith.truncf %94 : vector<8x8xf32> to vector<8x8xbf16>
    %cst_26 = arith.constant dense<0.000000e+00> : vector<8x8xf32>
    %98 = tpu.matmul %97, %84, %cst_26 {dimension_numbers = #tpu.dot_dimension_numbers<[1], [0], [0], [1], [0, 0, 1, 1], [], []>} : vector<8x8xbf16>, vector<8x8xbf16>, vector<8x8xf32> -> vector<8x8xf32>
    %99 = tpu.reciprocal %96 {approx = true} : vector<8x1xf32> -> vector<8x1xf32>
    %100 = vector.broadcast %99 : vector<8x1xf32> to vector<8x8xf32>
    %101 = arith.mulf %98, %100 : vector<8x8xf32>
    %102 = tpu.concatenate %32, %55, %78, %101 in 1 : vector<8x8xf32>, vector<8x8xf32>, vector<8x8xf32>, vector<8x8xf32> -> vector<8x32xf32>
    %103 = arith.truncf %102 : vector<8x32xf32> to vector<8x32xbf16>
    %c0_27 = arith.constant 0 : index
    %c0_28 = arith.constant 0 : index
    %c0_29 = arith.constant 0 : index
    %104 = vector.load %arg4[%c0_27, %c0_28, %c0_29] : memref<1x8x32xbf16, #tpu.memory_space<vmem>>, vector<1x8x32xbf16>
    %105 = vector.shape_cast %104 : vector<1x8x32xbf16> to vector<8x32xbf16>
    %106 = vector.shape_cast %103 : vector<8x32xbf16> to vector<1x8x32xbf16>
    tpu.vector_store %arg4[%c0_27, %c0_28, %c0_29], %106 {strides = array<i32>} : memref<1x8x32xbf16, #tpu.memory_space<vmem>>, vector<1x8x32xbf16>,
    return
  }
  func.func @transform_0(%arg0: i32) -> (i32, i32, i32) {
    %c0_i32 = arith.constant 0 : i32
    %c0_i32_0 = arith.constant 0 : i32
    %c0_i32_1 = arith.constant 0 : i32
    return %arg0, %c0_i32, %c0_i32_0 : i32, i32, i32
  }
  func.func @transform_1(%arg0: i32) -> (i32, i32, i32) {
    %c0_i32 = arith.constant 0 : i32
    %c0_i32_0 = arith.constant 0 : i32
    %c0_i32_1 = arith.constant 0 : i32
    return %arg0, %c0_i32, %c0_i32_0 : i32, i32, i32
  }
  func.func @transform_2(%arg0: i32) -> (i32, i32, i32) {
    %c0_i32 = arith.constant 0 : i32
    %c0_i32_0 = arith.constant 0 : i32
    %c0_i32_1 = arith.constant 0 : i32
    return %arg0, %c0_i32, %c0_i32_0 : i32, i32, i32
  }
  func.func @transform_3(%arg0: i32) -> (i32, i32, i32) {
    %c0_i32 = arith.constant 0 : i32
    %c0_i32_0 = arith.constant 0 : i32
    %c0_i32_1 = arith.constant 0 : i32
    return %arg0, %c0_i32, %c0_i32_0 : i32, i32, i32
  }
}

module attributes {stable_mosaic.version = 11 : i64} {
  func.func @kernel(%arg0: i32, %arg1: i32, %arg2: memref<16x32xbf16, #tpu.memory_space<vmem>>, %arg3: memref<1x32xf32, #tpu.memory_space<vmem>>, %arg4: memref<1x32xf32, #tpu.memory_space<vmem>>, %arg5: memref<32x32xbf16, #tpu.memory_space<vmem>>, %arg6: memref<1x32xf32, #tpu.memory_space<vmem>>, %arg7: memref<16x32xbf16, #tpu.memory_space<vmem>>) attributes {dimension_semantics = [#tpu.dimension_semantics<parallel>, #tpu.dimension_semantics<parallel>], iteration_bounds = array<i64: 1, 1>, scalar_prefetch = 0 : i64, scratch_operands = 0 : i64, tpu.core_type = #tpu.core_type<tc>, window_params = [{transform_indices = @transform_0, window_bounds = array<i64: 16, 32>}, {pipeline_mode = #tpu.pipeline_mode<synchronous>, transform_indices = @transform_1, window_bounds = array<i64: 1, 32>}, {pipeline_mode = #tpu.pipeline_mode<synchronous>, transform_indices = @transform_2, window_bounds = array<i64: 1, 32>}, {transform_indices = @transform_3, window_bounds = array<i64: 32, 32>}, {transform_indices = @transform_4, window_bounds = array<i64: 1, 32>}, {transform_indices = @transform_5, window_bounds = array<i64: 16, 32>}]} {
    %c0 = arith.constant 0 : index
    %c0_0 = arith.constant 0 : index
    %0 = vector.load %arg2[%c0, %c0_0] : memref<16x32xbf16, #tpu.memory_space<vmem>>, vector<16x32xbf16>
    %1 = arith.extf %0 : vector<16x32xbf16> to vector<16x32xf32>
    %cst = arith.constant dense<0.000000e+00> : vector<16xf32>
    %2 = vector.multi_reduction <add>, %1, %cst [1] : vector<16x32xf32> to vector<16xf32>
    %3 = vector.shape_cast %2 : vector<16xf32> to vector<16x1xf32>
    %cst_1 = arith.constant 3.200000e+01 : f32
    %4 = vector.broadcast %cst_1 : f32 to vector<16x1xf32>
    %5 = arith.divf %3, %4 : vector<16x1xf32>
    %6 = vector.broadcast %5 : vector<16x1xf32> to vector<16x32xf32>
    %7 = arith.subf %1, %6 : vector<16x32xf32>
    %8 = arith.mulf %7, %7 : vector<16x32xf32>
    %cst_2 = arith.constant dense<0.000000e+00> : vector<16xf32>
    %9 = vector.multi_reduction <add>, %8, %cst_2 [1] : vector<16x32xf32> to vector<16xf32>
    %10 = vector.shape_cast %9 : vector<16xf32> to vector<16x1xf32>
    %cst_3 = arith.constant 3.200000e+01 : f32
    %11 = vector.broadcast %cst_3 : f32 to vector<16x1xf32>
    %12 = arith.divf %10, %11 : vector<16x1xf32>
    %cst_4 = arith.constant 9.99999974E-6 : f32
    %13 = vector.broadcast %cst_4 : f32 to vector<16x1xf32>
    %14 = arith.addf %12, %13 : vector<16x1xf32>
    %15 = math.rsqrt %14 : vector<16x1xf32>
    %16 = vector.broadcast %15 : vector<16x1xf32> to vector<16x32xf32>
    %17 = arith.mulf %7, %16 : vector<16x32xf32>
    %c0_5 = arith.constant 0 : index
    %c0_6 = arith.constant 0 : index
    %18 = vector.load %arg3[%c0_5, %c0_6] : memref<1x32xf32, #tpu.memory_space<vmem>>, vector<1x32xf32>
    %19 = vector.broadcast %18 : vector<1x32xf32> to vector<16x32xf32>
    %20 = arith.mulf %17, %19 : vector<16x32xf32>
    %c0_7 = arith.constant 0 : index
    %c0_8 = arith.constant 0 : index
    %21 = vector.load %arg4[%c0_7, %c0_8] : memref<1x32xf32, #tpu.memory_space<vmem>>, vector<1x32xf32>
    %22 = vector.broadcast %21 : vector<1x32xf32> to vector<16x32xf32>
    %23 = arith.addf %20, %22 : vector<16x32xf32>
    %24 = arith.truncf %23 : vector<16x32xf32> to vector<16x32xbf16>
    %c0_9 = arith.constant 0 : index
    %c0_10 = arith.constant 0 : index
    %25 = vector.load %arg5[%c0_9, %c0_10] : memref<32x32xbf16, #tpu.memory_space<vmem>>, vector<32x32xbf16>
    %cst_11 = arith.constant dense<0.000000e+00> : vector<16x32xf32>
    %26 = tpu.matmul %24, %25, %cst_11 {dimension_numbers = #tpu.dot_dimension_numbers<[1], [0], [0], [1], [0, 0, 1, 1], [], []>} : vector<16x32xbf16>, vector<32x32xbf16>, vector<16x32xf32> -> vector<16x32xf32>
    %c0_12 = arith.constant 0 : index
    %c0_13 = arith.constant 0 : index
    %27 = vector.load %arg6[%c0_12, %c0_13] : memref<1x32xf32, #tpu.memory_space<vmem>>, vector<1x32xf32>
    %28 = vector.broadcast %27 : vector<1x32xf32> to vector<16x32xf32>
    %29 = arith.addf %26, %28 : vector<16x32xf32>
    %30 = arith.truncf %29 : vector<16x32xf32> to vector<16x32xbf16>
    %c0_14 = arith.constant 0 : index
    %c0_15 = arith.constant 0 : index
    %31 = vector.load %arg7[%c0_14, %c0_15] : memref<16x32xbf16, #tpu.memory_space<vmem>>, vector<16x32xbf16>
    tpu.vector_store %arg7[%c0_14, %c0_15], %30 {strides = array<i32>} : memref<16x32xbf16, #tpu.memory_space<vmem>>, vector<16x32xbf16>,
    return
  }
  func.func @transform_0(%arg0: i32, %arg1: i32) -> (i32, i32) {
    %c0_i32 = arith.constant 0 : i32
    %c0_i32_0 = arith.constant 0 : i32
    return %arg0, %c0_i32 : i32, i32
  }
  func.func @transform_1(%arg0: i32, %arg1: i32) -> (i32, i32) {
    %c0_i32 = arith.constant 0 : i32
    %c0_i32_0 = arith.constant 0 : i32
    %c0_i32_1 = arith.constant 0 : i32
    return %c0_i32, %c0_i32_0 : i32, i32
  }
  func.func @transform_2(%arg0: i32, %arg1: i32) -> (i32, i32) {
    %c0_i32 = arith.constant 0 : i32
    %c0_i32_0 = arith.constant 0 : i32
    %c0_i32_1 = arith.constant 0 : i32
    return %c0_i32, %c0_i32_0 : i32, i32
  }
  func.func @transform_3(%arg0: i32, %arg1: i32) -> (i32, i32) {
    %c0_i32 = arith.constant 0 : i32
    %c0_i32_0 = arith.constant 0 : i32
    return %c0_i32, %arg1 : i32, i32
  }
  func.func @transform_4(%arg0: i32, %arg1: i32) -> (i32, i32) {
    %c0_i32 = arith.constant 0 : i32
    %c0_i32_0 = arith.constant 0 : i32
    return %c0_i32, %arg1 : i32, i32
  }
  func.func @transform_5(%arg0: i32, %arg1: i32) -> (i32, i32) {
    %c0_i32 = arith.constant 0 : i32
    return %arg0, %arg1 : i32, i32
  }
}

module attributes {stable_mosaic.version = 11 : i64} {
  func.func @kernel(%arg0: i32, %arg1: i32, %arg2: memref<16x32xbf16, #tpu.memory_space<vmem>>, %arg3: memref<1x32xf32, #tpu.memory_space<vmem>>, %arg4: memref<1x32xf32, #tpu.memory_space<vmem>>, %arg5: memref<32x32xbf16, #tpu.memory_space<vmem>>, %arg6: memref<16x32xf32, #tpu.memory_space<vmem>>) attributes {dimension_semantics = [#tpu.dimension_semantics<parallel>, #tpu.dimension_semantics<parallel>], iteration_bounds = array<i64: 1, 1>, scalar_prefetch = 0 : i64, scratch_operands = 0 : i64, tpu.core_type = #tpu.core_type<tc>, window_params = [{transform_indices = @transform_0, window_bounds = array<i64: 16, 32>}, {pipeline_mode = #tpu.pipeline_mode<synchronous>, transform_indices = @transform_1, window_bounds = array<i64: 1, 32>}, {pipeline_mode = #tpu.pipeline_mode<synchronous>, transform_indices = @transform_2, window_bounds = array<i64: 1, 32>}, {transform_indices = @transform_3, window_bounds = array<i64: 32, 32>}, {transform_indices = @transform_4, window_bounds = array<i64: 16, 32>}]} {
    %c0 = arith.constant 0 : index
    %c0_0 = arith.constant 0 : index
    %0 = vector.load %arg2[%c0, %c0_0] : memref<16x32xbf16, #tpu.memory_space<vmem>>, vector<16x32xbf16>
    %1 = arith.extf %0 : vector<16x32xbf16> to vector<16x32xf32>
    %cst = arith.constant dense<0.000000e+00> : vector<16xf32>
    %2 = vector.multi_reduction <add>, %1, %cst [1] : vector<16x32xf32> to vector<16xf32>
    %3 = vector.shape_cast %2 : vector<16xf32> to vector<16x1xf32>
    %cst_1 = arith.constant 3.200000e+01 : f32
    %4 = vector.broadcast %cst_1 : f32 to vector<16x1xf32>
    %5 = arith.divf %3, %4 : vector<16x1xf32>
    %6 = vector.broadcast %5 : vector<16x1xf32> to vector<16x32xf32>
    %7 = arith.subf %1, %6 : vector<16x32xf32>
    %8 = arith.mulf %7, %7 : vector<16x32xf32>
    %cst_2 = arith.constant dense<0.000000e+00> : vector<16xf32>
    %9 = vector.multi_reduction <add>, %8, %cst_2 [1] : vector<16x32xf32> to vector<16xf32>
    %10 = vector.shape_cast %9 : vector<16xf32> to vector<16x1xf32>
    %cst_3 = arith.constant 3.200000e+01 : f32
    %11 = vector.broadcast %cst_3 : f32 to vector<16x1xf32>
    %12 = arith.divf %10, %11 : vector<16x1xf32>
    %cst_4 = arith.constant 9.99999974E-6 : f32
    %13 = vector.broadcast %cst_4 : f32 to vector<16x1xf32>
    %14 = arith.addf %12, %13 : vector<16x1xf32>
    %15 = math.rsqrt %14 : vector<16x1xf32>
    %16 = vector.broadcast %15 : vector<16x1xf32> to vector<16x32xf32>
    %17 = arith.mulf %7, %16 : vector<16x32xf32>
    %c0_5 = arith.constant 0 : index
    %c0_6 = arith.constant 0 : index
    %18 = vector.load %arg3[%c0_5, %c0_6] : memref<1x32xf32, #tpu.memory_space<vmem>>, vector<1x32xf32>
    %19 = vector.broadcast %18 : vector<1x32xf32> to vector<16x32xf32>
    %20 = arith.mulf %17, %19 : vector<16x32xf32>
    %c0_7 = arith.constant 0 : index
    %c0_8 = arith.constant 0 : index
    %21 = vector.load %arg4[%c0_7, %c0_8] : memref<1x32xf32, #tpu.memory_space<vmem>>, vector<1x32xf32>
    %22 = vector.broadcast %21 : vector<1x32xf32> to vector<16x32xf32>
    %23 = arith.addf %20, %22 : vector<16x32xf32>
    %24 = arith.truncf %23 : vector<16x32xf32> to vector<16x32xbf16>
    %c0_9 = arith.constant 0 : index
    %c0_10 = arith.constant 0 : index
    %25 = vector.load %arg5[%c0_9, %c0_10] : memref<32x32xbf16, #tpu.memory_space<vmem>>, vector<32x32xbf16>
    %cst_11 = arith.constant dense<0.000000e+00> : vector<16x32xf32>
    %26 = tpu.matmul %24, %25, %cst_11 {dimension_numbers = #tpu.dot_dimension_numbers<[1], [1], [0], [0], [0, 0, 1, 0], [], []>} : vector<16x32xbf16>, vector<32x32xbf16>, vector<16x32xf32> -> vector<16x32xf32>
    %c0_12 = arith.constant 0 : index
    %c0_13 = arith.constant 0 : index
    %27 = vector.load %arg6[%c0_12, %c0_13] : memref<16x32xf32, #tpu.memory_space<vmem>>, vector<16x32xf32>
    tpu.vector_store %arg6[%c0_12, %c0_13], %26 {strides = array<i32>} : memref<16x32xf32, #tpu.memory_space<vmem>>, vector<16x32xf32>,
    return
  }
  func.func @transform_0(%arg0: i32, %arg1: i32) -> (i32, i32) {
    %c0_i32 = arith.constant 0 : i32
    %c0_i32_0 = arith.constant 0 : i32
    return %arg0, %c0_i32 : i32, i32
  }
  func.func @transform_1(%arg0: i32, %arg1: i32) -> (i32, i32) {
    %c0_i32 = arith.constant 0 : i32
    %c0_i32_0 = arith.constant 0 : i32
    %c0_i32_1 = arith.constant 0 : i32
    return %c0_i32, %c0_i32_0 : i32, i32
  }
  func.func @transform_2(%arg0: i32, %arg1: i32) -> (i32, i32) {
    %c0_i32 = arith.constant 0 : i32
    %c0_i32_0 = arith.constant 0 : i32
    %c0_i32_1 = arith.constant 0 : i32
    return %c0_i32, %c0_i32_0 : i32, i32
  }
  func.func @transform_3(%arg0: i32, %arg1: i32) -> (i32, i32) {
    %c0_i32 = arith.constant 0 : i32
    %c0_i32_0 = arith.constant 0 : i32
    return %arg1, %c0_i32 : i32, i32
  }
  func.func @transform_4(%arg0: i32, %arg1: i32) -> (i32, i32) {
    %c0_i32 = arith.constant 0 : i32
    return %arg0, %arg1 : i32, i32
  }
}

</mosaic_0001>

<llo_original>
// kernel: encoder_decoder_forward.32
$region0: #{encoder_decoder_forward.32}
  #allocation0 [shape = 'u32[]', space=smem, size = 0x4, offset = 0x4, fixed_abs, tag = 'smem constant byte address 0x4 - core index']
  #allocation1 [shape = 'u32[144,128]{1,0:T(1,128)}', space=vmem, size = 0x12000, scoped, tag = 'internal scratch']
  #allocation2 [shape = 'f32[16,32]{1,0:T(8,128)}', space=vmem, size = 0x2000, scoped, tag = 'scratch operand']
  %s0 = inlined_call_operand.vmem [shape: bf16[16,32], index: 0, kind: input, shape index: {}]
  %s1 = inlined_call_operand.vmem [shape: bf16[32,32], index: 1, kind: input, shape index: {}]
  %s2 = inlined_call_operand.vmem [shape: f32[1,32], index: 2, kind: input, shape index: {}]
  %s3 = inlined_call_operand.vmem [shape: bf16[16,32], index: 3, kind: input, shape index: {}]
  %s4 = inlined_call_operand.vmem [shape: bf16[16,32], index: 4, kind: output, shape index: {}]
  %s5 = sld [smem:[#allocation0]]
  $region34: #{encoder_decoder_forward.32} parent=0
    _
  %s7 = ssub.s32 1, %s5
  %s8 = scalar_select 0, %s7, %s5
  // Predicated region
  $region2: #{encoder_decoder_forward.32} parent=0 // pred_check
    _
  $region3: #{encoder_decoder_forward.32} parent=0 // pred_check_branch
    %10 = sbr.rel (0) target = $region5
  $region4: #{encoder_decoder_forward.32} parent=0 // pred_region
    _
  $region5: #{encoder_decoder_forward.32} parent=0 // pred_fallthru
    _
  // Predicated region
  $region6: #{encoder_decoder_forward.32} parent=0 // pred_check
    _
  $region7: #{encoder_decoder_forward.32} parent=0 // pred_check_branch
    %12 = sbr.rel (0) target = $region9
  $region8: #{encoder_decoder_forward.32} parent=0 // pred_region
    _
  $region9: #{encoder_decoder_forward.32} parent=0 // pred_fallthru
    _
  // Predicated region
  $region10: #{encoder_decoder_forward.32} parent=0 // pred_check
    _
  $region11: #{encoder_decoder_forward.32} parent=0 // pred_check_branch
    %14 = sbr.rel (0) target = $region13
  $region12: #{encoder_decoder_forward.32} parent=0 // pred_region
    _
  $region13: #{encoder_decoder_forward.32} parent=0 // pred_fallthru
    _
  // Predicated region
  $region14: #{encoder_decoder_forward.32} parent=0 // pred_check
    _
  $region15: #{encoder_decoder_forward.32} parent=0 // pred_check_branch
    %16 = sbr.rel (0) target = $region17
  $region16: #{encoder_decoder_forward.32} parent=0 // pred_region
    _
  $region17: #{encoder_decoder_forward.32} parent=0 // pred_fallthru
    _
  %p18 = scmp.eq.s32.totalorder 0, 0
  // Predicated region
  $region18: #{encoder_decoder_forward.32} parent=0 // pred_check
    %p19 = pneg %p18
  $region19: #{encoder_decoder_forward.32} parent=0 // pred_check_branch
    %21 = sbr.rel (%p19) target = $region21
  $region20: #{encoder_decoder_forward.32} parent=0 // pred_region
    %vm22 = vcmask 261120
    %23 = vst.msk [vmem:[#allocation2] sm:$0xff] %vm22, 0.0
    %24 = vst.msk [vmem:[#allocation2 + $0x8] sm:$0xff] %vm22, 0.0
  $region21: #{encoder_decoder_forward.32} parent=0 // pred_fallthru
    _
  %v25 = vld [vmem:[%s0] sm:$0xf]
  %v26 = vld [vmem:[%s0 + $0x4] sm:$0xf]
  %v27 = vld [vmem:[%s1] sm:$0xf]
  %v28 = vld [vmem:[%s1 + $0x4] sm:$0xf]
  %v29 = vld [vmem:[%s1 + $0x8] sm:$0xf]
  %v30 = vld [vmem:[%s1 + $0xc] sm:$0xf]
  %v31 = vld [vmem:[#allocation2] sm:$0xff]
  %v32 = vld [vmem:[#allocation2 + $0x8] sm:$0xff]
  %v35 = vunpack.c.l.b16 %v25
  %v36 = vunpack.c.l.b16 %v26
  %v37 = vpack.c.b16 %v36, %v35
  %v42 = vunpack.c.l.b16 %v27
  %v43 = vunpack.c.l.b16 %v28
  %v44 = vunpack.c.l.b16 %v29
  %v45 = vunpack.c.l.b16 %v30
  %v46 = vpack.c.b16 %v43, %v42
  %v47 = vpack.c.b16 %v45, %v44
  %vm50 = vcmask 261120
  %v52 = vsel %vm50, %v37, 0
  %54 = vmatprep.subr.bf16.mxu0 0
  %55 = vmatpush1.bf16.msra.mxu0 0
  %56 = vmatprep.subr.bf16.mxu0 0
  %57 = vmatpush1.bf16.msra.mxu0 0
  %58 = vmatprep.subr.bf16.mxu0 0
  %59 = vmatpush1.bf16.msra.mxu0 0
  %60 = vmatprep.subr.bf16.mxu0 0
  %61 = vmatpush1.bf16.msra.mxu0 0
  %62 = vmatprep.subr.bf16.mxu0 0
  %63 = vmatpush1.bf16.msra.mxu0 0
  %64 = vmatprep.subr.bf16.mxu0 0
  %65 = vmatpush1.bf16.msra.mxu0 0
  %66 = vmatprep.subr.bf16.mxu0 0
  %67 = vmatpush1.bf16.msra.mxu0 %v47
  %68 = vmatprep.subr.bf16.mxu0 0
  %69 = vmatpush1.bf16.msra.mxu0 %v46
  %70 = vmatprep.subr.bf16.mxu0 0
  %71 = vmatpush2.bf16.msra.mxu0 0
  %72 = vmatprep.subr.bf16.mxu0 0
  %73 = vmatpush2.bf16.msra.mxu0 0
  %74 = vmatprep.subr.bf16.mxu0 0
  %75 = vmatpush2.bf16.msra.mxu0 0
  %76 = vmatprep.subr.bf16.mxu0 0
  %77 = vmatpush2.bf16.msra.mxu0 0
  %78 = vmatprep.subr.bf16.mxu0 0
  %79 = vmatpush2.bf16.msra.mxu0 0
  %80 = vmatprep.subr.bf16.mxu0 0
  %81 = vmatpush2.bf16.msra.mxu0 0
  %82 = vmatprep.subr.bf16.mxu0 0
  %83 = vmatpush2.bf16.msra.mxu0 0
  %84 = vmatprep.subr.bf16.mxu0 0
  %85 = vmatpush2.bf16.msra.mxu0 0
  %86 = vmatprep.mubr.bf16.mxu0 0
  %87 = vmatmul.mubr.bf16.gmra.mxu0 %v52
  %v88 = vpop.f32.mrf.mxu0
  %v89 = vadd.f32 0.0, %v88
  %v90 = vpop.f32.mrf.mxu0
  %v91 = vpop.f32.mrf.mxu0
  %v92 = vadd.f32 0.0, %v91
  %v93 = vpop.f32.mrf.mxu0
  %94 = vdwg.mxu0
  %v95 = vadd.f32 %v31, %v89
  %v96 = vadd.f32 %v32, %v92
  %97 = vst.msk [vmem:[#allocation2] sm:$0xff] %vm50, %v95
  %98 = vst.msk [vmem:[#allocation2 + $0x8] sm:$0xff] %vm50, %v96
  // Predicated region
  $region22: #{encoder_decoder_forward.32} parent=0 // pred_check
    %p99 = pneg %p18
  $region23: #{encoder_decoder_forward.32} parent=0 // pred_check_branch
    %101 = sbr.rel (%p99) target = $region25
  $region24: #{encoder_decoder_forward.32} parent=0 // pred_region
    %v102 = vld [vmem:[#allocation2] sm:$0xff]
    %v103 = vld [vmem:[#allocation2 + $0x8] sm:$0xff]
    %v104 = vld [vmem:[%s2] sm:$0x1]
    %v106 = vlaneseq
    %v107 = vshrl.u32 %v106, 7
    %v108 = vsub.s32 0, %v107
    %v109 = vrot.slane %v104, %v108
    %v111 = vadd.f32 %v102, %v109
    %v112 = vadd.f32 %v103, %v109
    %v113 = vld [vmem:[%s3] sm:$0xf]
    %v114 = vld [vmem:[%s3 + $0x4] sm:$0xf]
    %v115 = vunpack.c.l.bf16 %v113
    %v116 = vunpack.c.l.bf16 %v114
    %v117 = vadd.f32 %v111, %v115
    %v118 = vadd.f32 %v112, %v116
    %v119 = vpack.c.bf16 %v118, %v117
    %v121 = vunpack.c.l.b16 %v119
    %v122 = vunpack.c.h.b16 %v119
    %v123 = vpack.c.b16 %v121, %v121
    %v124 = vpack.c.b16 %v122, %v122
    %vm127 = vcmask 257024
    %128 = vst.msk [vmem:[%s4] sm:$0xf] %vm127, %v123
    %129 = vst.msk [vmem:[%s4 + $0x4] sm:$0xf] %vm127, %v124
  $region25: #{encoder_decoder_forward.32} parent=0 // pred_fallthru
    _
  // Predicated region
  $region26: #{encoder_decoder_forward.32} parent=0 // pred_check
    _
  $region27: #{encoder_decoder_forward.32} parent=0 // pred_check_branch
    %131 = sbr.rel (0) target = $region29
  $region28: #{encoder_decoder_forward.32} parent=0 // pred_region
    _
  $region29: #{encoder_decoder_forward.32} parent=0 // pred_fallthru
    _
  // Predicated region
  $region30: #{encoder_decoder_forward.32} parent=0 // pred_check
    _
  $region31: #{encoder_decoder_forward.32} parent=0 // pred_check_branch
    %133 = sbr.rel (0) target = $region33
  $region32: #{encoder_decoder_forward.32} parent=0 // pred_region
    _
  $region33: #{encoder_decoder_forward.32} parent=0 // pred_fallthru
    _

// kernel: encoder_decoder_forward.30
$region0: #{encoder_decoder_forward.30}
  #allocation0 [shape = 'u32[]', space=smem, size = 0x4, offset = 0x4, fixed_abs, tag = 'smem constant byte address 0x4 - core index']
  #allocation1 [shape = 'u32[144,128]{1,0:T(1,128)}', space=vmem, size = 0x12000, scoped, tag = 'internal scratch']
  %s0 = inlined_call_operand.vmem [shape: bf16[16,32], index: 0, kind: input, shape index: {}]
  %s1 = inlined_call_operand.vmem [shape: f32[1,32], index: 1, kind: input, shape index: {}]
  %s2 = inlined_call_operand.vmem [shape: f32[1,32], index: 2, kind: input, shape index: {}]
  %s3 = inlined_call_operand.vmem [shape: bf16[32,96], index: 3, kind: input, shape index: {}]
  %s4 = inlined_call_operand.vmem [shape: f32[1,96], index: 4, kind: input, shape index: {}]
  %s5 = inlined_call_operand.vmem [shape: bf16[16,96], index: 5, kind: output, shape index: {}]
  %s6 = sld [smem:[#allocation0]]
  $region30: #{encoder_decoder_forward.30} parent=0
    _
  %s8 = ssub.s32 1, %s6
  %s9 = scalar_select 0, %s8, %s6
  // Predicated region
  $region2: #{encoder_decoder_forward.30} parent=0 // pred_check
    _
  $region3: #{encoder_decoder_forward.30} parent=0 // pred_check_branch
    %11 = sbr.rel (0) target = $region5
  $region4: #{encoder_decoder_forward.30} parent=0 // pred_region
    _
  $region5: #{encoder_decoder_forward.30} parent=0 // pred_fallthru
    _
  // Predicated region
  $region6: #{encoder_decoder_forward.30} parent=0 // pred_check
    _
  $region7: #{encoder_decoder_forward.30} parent=0 // pred_check_branch
    %13 = sbr.rel (0) target = $region9
  $region8: #{encoder_decoder_forward.30} parent=0 // pred_region
    _
  $region9: #{encoder_decoder_forward.30} parent=0 // pred_fallthru
    _
  // Predicated region
  $region10: #{encoder_decoder_forward.30} parent=0 // pred_check
    _
  $region11: #{encoder_decoder_forward.30} parent=0 // pred_check_branch
    %15 = sbr.rel (0) target = $region13
  $region12: #{encoder_decoder_forward.30} parent=0 // pred_region
    _
  $region13: #{encoder_decoder_forward.30} parent=0 // pred_fallthru
    _
  // Predicated region
  $region14: #{encoder_decoder_forward.30} parent=0 // pred_check
    _
  $region15: #{encoder_decoder_forward.30} parent=0 // pred_check_branch
    %17 = sbr.rel (0) target = $region17
  $region16: #{encoder_decoder_forward.30} parent=0 // pred_region
    _
  $region17: #{encoder_decoder_forward.30} parent=0 // pred_fallthru
    _
  // Predicated region
  $region18: #{encoder_decoder_forward.30} parent=0 // pred_check
    _
  $region19: #{encoder_decoder_forward.30} parent=0 // pred_check_branch
    %19 = sbr.rel (0) target = $region21
  $region20: #{encoder_decoder_forward.30} parent=0 // pred_region
    _
  $region21: #{encoder_decoder_forward.30} parent=0 // pred_fallthru
    _
  %v21 = vld [vmem:[%s0] sm:$0xf]
  %v22 = vld [vmem:[%s0 + $0x4] sm:$0xf]
  %v23 = vunpack.c.l.bf16 %v21
  %v24 = vunpack.c.l.bf16 %v22
  %vm25 = vcmask 261120
  %v26 = vsel %vm25, %v23, 0.0
  %27 = vadd.xlane.f32.xlu0 %v26
  %v28 = vpop.xlane.xlu0 %27
  %v29 = vsel %vm25, %v24, 0.0
  %30 = vadd.xlane.f32.xlu0 %v29
  %v31 = vpop.xlane.xlu0 %30
  %v32 = vrcp.pop 32.0
  %v33 = vmul.f32 %v28, %v32
  %v34 = vmul.f32 %v31, %v32
  %v35 = vsub.f32 %v23, %v33
  %v36 = vsub.f32 %v24, %v34
  %v37 = vmul.f32 %v35, %v35
  %v38 = vmul.f32 %v36, %v36
  %v39 = vsel %vm25, %v37, 0.0
  %40 = vadd.xlane.f32.xlu0 %v39
  %v41 = vpop.xlane.xlu0 %40
  %v42 = vsel %vm25, %v38, 0.0
  %43 = vadd.xlane.f32.xlu0 %v42
  %v44 = vpop.xlane.xlu0 %43
  %v45 = vmul.f32 %v41, %v32
  %v46 = vmul.f32 %v44, %v32
  %v47 = vadd.f32 %v45, 1e-05
  %v48 = vadd.f32 %v46, 1e-05
  %v49 = vrsqrt.pop %v47
  %v50 = vrsqrt.pop %v48
  %v51 = vmul.f32 %v35, %v49
  %v52 = vmul.f32 %v36, %v50
  %v53 = vld [vmem:[%s1] sm:$0x1]
  %v55 = vlaneseq
  %v56 = vshrl.u32 %v55, 7
  %v57 = vsub.s32 0, %v56
  %v58 = vrot.slane %v53, %v57
  %v60 = vmul.f32 %v51, %v58
  %v61 = vmul.f32 %v52, %v58
  %v62 = vld [vmem:[%s2] sm:$0x1]
  %v64 = vlaneseq
  %v65 = vshrl.u32 %v64, 7
  %v66 = vsub.s32 0, %v65
  %v67 = vrot.slane %v62, %v66
  %v69 = vadd.f32 %v60, %v67
  %v70 = vadd.f32 %v61, %v67
  %v71 = vpack.c.bf16 %v70, %v69
  %v72 = vld [vmem:[%s3] sm:$0xf]
  %v73 = vld [vmem:[%s3 + $0x4] sm:$0xf]
  %v74 = vld [vmem:[%s3 + $0x8] sm:$0xf]
  %v75 = vld [vmem:[%s3 + $0xc] sm:$0xf]
  %v76 = vld [vmem:[%s4] sm:$0x1]
  %v78 = vlaneseq
  %v79 = vshrl.u32 %v78, 7
  %v80 = vsub.s32 0, %v79
  %v81 = vrot.slane %v76, %v80
  %v87 = vunpack.c.l.b16 %v72
  %v88 = vunpack.c.l.b16 %v73
  %v89 = vunpack.c.l.b16 %v74
  %v90 = vunpack.c.l.b16 %v75
  %v91 = vpack.c.b16 %v88, %v87
  %v92 = vpack.c.b16 %v90, %v89
  %v96 = vsel %vm25, %v71, 0
  %98 = vmatprep.subr.bf16.mxu0 0
  %99 = vmatpush1.bf16.msra.mxu0 0
  %100 = vmatprep.subr.bf16.mxu0 0
  %101 = vmatpush1.bf16.msra.mxu0 0
  %102 = vmatprep.subr.bf16.mxu0 0
  %103 = vmatpush1.bf16.msra.mxu0 0
  %104 = vmatprep.subr.bf16.mxu0 0
  %105 = vmatpush1.bf16.msra.mxu0 0
  %106 = vmatprep.subr.bf16.mxu0 0
  %107 = vmatpush1.bf16.msra.mxu0 0
  %108 = vmatprep.subr.bf16.mxu0 0
  %109 = vmatpush1.bf16.msra.mxu0 0
  %110 = vmatprep.subr.bf16.mxu0 0
  %111 = vmatpush1.bf16.msra.mxu0 %v92
  %112 = vmatprep.subr.bf16.mxu0 0
  %113 = vmatpush1.bf16.msra.mxu0 %v91
  %114 = vmatprep.subr.bf16.mxu0 0
  %115 = vmatpush2.bf16.msra.mxu0 0
  %116 = vmatprep.subr.bf16.mxu0 0
  %117 = vmatpush2.bf16.msra.mxu0 0
  %118 = vmatprep.subr.bf16.mxu0 0
  %119 = vmatpush2.bf16.msra.mxu0 0
  %120 = vmatprep.subr.bf16.mxu0 0
  %121 = vmatpush2.bf16.msra.mxu0 0
  %122 = vmatprep.subr.bf16.mxu0 0
  %123 = vmatpush2.bf16.msra.mxu0 0
  %124 = vmatprep.subr.bf16.mxu0 0
  %125 = vmatpush2.bf16.msra.mxu0 0
  %126 = vmatprep.subr.bf16.mxu0 0
  %127 = vmatpush2.bf16.msra.mxu0 0
  %128 = vmatprep.subr.bf16.mxu0 0
  %129 = vmatpush2.bf16.msra.mxu0 0
  %130 = vmatprep.mubr.bf16.mxu0 0
  %131 = vmatmul.mubr.bf16.gmra.mxu0 %v96
  %v132 = vpop.f32.mrf.mxu0
  %v133 = vadd.f32 %v81, %v132
  %v134 = vpop.f32.mrf.mxu0
  %v135 = vpop.f32.mrf.mxu0
  %v136 = vadd.f32 %v81, %v135
  %v137 = vpop.f32.mrf.mxu0
  %138 = vdwg.mxu0
  %v139 = vpack.c.bf16 %v136, %v133
  %v141 = vunpack.c.l.b16 %v139
  %v142 = vunpack.c.h.b16 %v139
  %v143 = vpack.c.b16 %v141, %v141
  %v144 = vpack.c.b16 %v142, %v142
  %vm147 = vcmask 781312
  %148 = vst.msk [vmem:[%s5] sm:$0xf] %vm147, %v143
  %149 = vst.msk [vmem:[%s5 + $0x4] sm:$0xf] %vm147, %v144
  // Predicated region
  $region22: #{encoder_decoder_forward.30} parent=0 // pred_check
    _
  $region23: #{encoder_decoder_forward.30} parent=0 // pred_check_branch
    %151 = sbr.rel (0) target = $region25
  $region24: #{encoder_decoder_forward.30} parent=0 // pred_region
    _
  $region25: #{encoder_decoder_forward.30} parent=0 // pred_fallthru
    _
  // Predicated region
  $region26: #{encoder_decoder_forward.30} parent=0 // pred_check
    _
  $region27: #{encoder_decoder_forward.30} parent=0 // pred_check_branch
    %153 = sbr.rel (0) target = $region29
  $region28: #{encoder_decoder_forward.30} parent=0 // pred_region
    _
  $region29: #{encoder_decoder_forward.30} parent=0 // pred_fallthru
    _

// kernel: encoder_decoder_forward.33
$region0: #{encoder_decoder_forward.33}
  #allocation0 [shape = 'u32[]', space=smem, size = 0x4, offset = 0x4, fixed_abs, tag = 'smem constant byte address 0x4 - core index']
  #allocation1 [shape = 'u32[144,128]{1,0:T(1,128)}', space=vmem, size = 0x12000, scoped, tag = 'internal scratch']
  %s0 = inlined_call_operand.vmem [shape: bf16[16,32], index: 0, kind: input, shape index: {}]
  %s1 = inlined_call_operand.vmem [shape: f32[1,32], index: 1, kind: input, shape index: {}]
  %s2 = inlined_call_operand.vmem [shape: f32[1,32], index: 2, kind: input, shape index: {}]
  %s3 = inlined_call_operand.vmem [shape: bf16[32,64], index: 3, kind: input, shape index: {}]
  %s4 = inlined_call_operand.vmem [shape: f32[1,64], index: 4, kind: input, shape index: {}]
  %s5 = inlined_call_operand.vmem [shape: bf16[16,64], index: 5, kind: output, shape index: {}]
  %s6 = sld [smem:[#allocation0]]
  $region30: #{encoder_decoder_forward.33} parent=0
    _
  %s8 = ssub.s32 1, %s6
  %s9 = scalar_select 0, %s8, %s6
  // Predicated region
  $region2: #{encoder_decoder_forward.33} parent=0 // pred_check
    _
  $region3: #{encoder_decoder_forward.33} parent=0 // pred_check_branch
    %11 = sbr.rel (0) target = $region5
  $region4: #{encoder_decoder_forward.33} parent=0 // pred_region
    _
  $region5: #{encoder_decoder_forward.33} parent=0 // pred_fallthru
    _
  // Predicated region
  $region6: #{encoder_decoder_forward.33} parent=0 // pred_check
    _
  $region7: #{encoder_decoder_forward.33} parent=0 // pred_check_branch
    %13 = sbr.rel (0) target = $region9
  $region8: #{encoder_decoder_forward.33} parent=0 // pred_region
    _
  $region9: #{encoder_decoder_forward.33} parent=0 // pred_fallthru
    _
  // Predicated region
  $region10: #{encoder_decoder_forward.33} parent=0 // pred_check
    _
  $region11: #{encoder_decoder_forward.33} parent=0 // pred_check_branch
    %15 = sbr.rel (0) target = $region13
  $region12: #{encoder_decoder_forward.33} parent=0 // pred_region
    _
  $region13: #{encoder_decoder_forward.33} parent=0 // pred_fallthru
    _
  // Predicated region
  $region14: #{encoder_decoder_forward.33} parent=0 // pred_check
    _
  $region15: #{encoder_decoder_forward.33} parent=0 // pred_check_branch
    %17 = sbr.rel (0) target = $region17
  $region16: #{encoder_decoder_forward.33} parent=0 // pred_region
    _
  $region17: #{encoder_decoder_forward.33} parent=0 // pred_fallthru
    _
  // Predicated region
  $region18: #{encoder_decoder_forward.33} parent=0 // pred_check
    _
  $region19: #{encoder_decoder_forward.33} parent=0 // pred_check_branch
    %19 = sbr.rel (0) target = $region21
  $region20: #{encoder_decoder_forward.33} parent=0 // pred_region
    _
  $region21: #{encoder_decoder_forward.33} parent=0 // pred_fallthru
    _
  %v21 = vld [vmem:[%s0] sm:$0xf]
  %v22 = vld [vmem:[%s0 + $0x4] sm:$0xf]
  %v23 = vunpack.c.l.bf16 %v21
  %v24 = vunpack.c.l.bf16 %v22
  %vm25 = vcmask 261120
  %v26 = vsel %vm25, %v23, 0.0
  %27 = vadd.xlane.f32.xlu0 %v26
  %v28 = vpop.xlane.xlu0 %27
  %v29 = vsel %vm25, %v24, 0.0
  %30 = vadd.xlane.f32.xlu0 %v29
  %v31 = vpop.xlane.xlu0 %30
  %v32 = vrcp.pop 32.0
  %v33 = vmul.f32 %v28, %v32
  %v34 = vmul.f32 %v31, %v32
  %v35 = vsub.f32 %v23, %v33
  %v36 = vsub.f32 %v24, %v34
  %v37 = vmul.f32 %v35, %v35
  %v38 = vmul.f32 %v36, %v36
  %v39 = vsel %vm25, %v37, 0.0
  %40 = vadd.xlane.f32.xlu0 %v39
  %v41 = vpop.xlane.xlu0 %40
  %v42 = vsel %vm25, %v38, 0.0
  %43 = vadd.xlane.f32.xlu0 %v42
  %v44 = vpop.xlane.xlu0 %43
  %v45 = vmul.f32 %v41, %v32
  %v46 = vmul.f32 %v44, %v32
  %v47 = vadd.f32 %v45, 1e-05
  %v48 = vadd.f32 %v46, 1e-05
  %v49 = vrsqrt.pop %v47
  %v50 = vrsqrt.pop %v48
  %v51 = vmul.f32 %v35, %v49
  %v52 = vmul.f32 %v36, %v50
  %v53 = vld [vmem:[%s1] sm:$0x1]
  %v55 = vlaneseq
  %v56 = vshrl.u32 %v55, 7
  %v57 = vsub.s32 0, %v56
  %v58 = vrot.slane %v53, %v57
  %v60 = vmul.f32 %v51, %v58
  %v61 = vmul.f32 %v52, %v58
  %v62 = vld [vmem:[%s2] sm:$0x1]
  %v64 = vlaneseq
  %v65 = vshrl.u32 %v64, 7
  %v66 = vsub.s32 0, %v65
  %v67 = vrot.slane %v62, %v66
  %v69 = vadd.f32 %v60, %v67
  %v70 = vadd.f32 %v61, %v67
  %v71 = vpack.c.bf16 %v70, %v69
  %v72 = vld [vmem:[%s3] sm:$0xf]
  %v73 = vld [vmem:[%s3 + $0x4] sm:$0xf]
  %v74 = vld [vmem:[%s3 + $0x8] sm:$0xf]
  %v75 = vld [vmem:[%s3 + $0xc] sm:$0xf]
  %v76 = vld [vmem:[%s4] sm:$0x1]
  %v78 = vlaneseq
  %v79 = vshrl.u32 %v78, 7
  %v80 = vsub.s32 0, %v79
  %v81 = vrot.slane %v76, %v80
  %v87 = vunpack.c.l.b16 %v72
  %v88 = vunpack.c.l.b16 %v73
  %v89 = vunpack.c.l.b16 %v74
  %v90 = vunpack.c.l.b16 %v75
  %v91 = vpack.c.b16 %v88, %v87
  %v92 = vpack.c.b16 %v90, %v89
  %v96 = vsel %vm25, %v71, 0
  %98 = vmatprep.subr.bf16.mxu0 0
  %99 = vmatpush1.bf16.msra.mxu0 0
  %100 = vmatprep.subr.bf16.mxu0 0
  %101 = vmatpush1.bf16.msra.mxu0 0
  %102 = vmatprep.subr.bf16.mxu0 0
  %103 = vmatpush1.bf16.msra.mxu0 0
  %104 = vmatprep.subr.bf16.mxu0 0
  %105 = vmatpush1.bf16.msra.mxu0 0
  %106 = vmatprep.subr.bf16.mxu0 0
  %107 = vmatpush1.bf16.msra.mxu0 0
  %108 = vmatprep.subr.bf16.mxu0 0
  %109 = vmatpush1.bf16.msra.mxu0 0
  %110 = vmatprep.subr.bf16.mxu0 0
  %111 = vmatpush1.bf16.msra.mxu0 %v92
  %112 = vmatprep.subr.bf16.mxu0 0
  %113 = vmatpush1.bf16.msra.mxu0 %v91
  %114 = vmatprep.subr.bf16.mxu0 0
  %115 = vmatpush2.bf16.msra.mxu0 0
  %116 = vmatprep.subr.bf16.mxu0 0
  %117 = vmatpush2.bf16.msra.mxu0 0
  %118 = vmatprep.subr.bf16.mxu0 0
  %119 = vmatpush2.bf16.msra.mxu0 0
  %120 = vmatprep.subr.bf16.mxu0 0
  %121 = vmatpush2.bf16.msra.mxu0 0
  %122 = vmatprep.subr.bf16.mxu0 0
  %123 = vmatpush2.bf16.msra.mxu0 0
  %124 = vmatprep.subr.bf16.mxu0 0
  %125 = vmatpush2.bf16.msra.mxu0 0
  %126 = vmatprep.subr.bf16.mxu0 0
  %127 = vmatpush2.bf16.msra.mxu0 0
  %128 = vmatprep.subr.bf16.mxu0 0
  %129 = vmatpush2.bf16.msra.mxu0 0
  %130 = vmatprep.mubr.bf16.mxu0 0
  %131 = vmatmul.mubr.bf16.gmra.mxu0 %v96
  %v132 = vpop.f32.mrf.mxu0
  %v133 = vadd.f32 %v81, %v132
  %v134 = vpop.f32.mrf.mxu0
  %v135 = vpop.f32.mrf.mxu0
  %v136 = vadd.f32 %v81, %v135
  %v137 = vpop.f32.mrf.mxu0
  %138 = vdwg.mxu0
  %v139 = vmul.f32 %v133, %v133
  %v140 = vmul.f32 %v136, %v136
  %v141 = vmul.f32 %v133, %v139
  %v142 = vmul.f32 %v136, %v140
  %v143 = vmul.f32 %v141, 0.044715
  %v144 = vmul.f32 %v142, 0.044715
  %v145 = vadd.f32 %v133, %v143
  %v146 = vadd.f32 %v136, %v144
  %v147 = vmul.f32 %v145, 0.7978846
  %v148 = vmul.f32 %v146, 0.7978846
  %v149 = vtanh.pop %v147
  %v150 = vtanh.pop %v148
  %v151 = vadd.f32 %v149, 1.0
  %v152 = vadd.f32 %v150, 1.0
  %v153 = vmul.f32 %v151, 0.5
  %v154 = vmul.f32 %v152, 0.5
  %v155 = vmul.f32 %v133, %v153
  %v156 = vmul.f32 %v136, %v154
  %v157 = vpack.c.bf16 %v156, %v155
  %v159 = vunpack.c.l.b16 %v157
  %v160 = vunpack.c.h.b16 %v157
  %v161 = vpack.c.b16 %v159, %v159
  %v162 = vpack.c.b16 %v160, %v160
  %vm165 = vcmask 519168
  %166 = vst.msk [vmem:[%s5] sm:$0xf] %vm165, %v161
  %167 = vst.msk [vmem:[%s5 + $0x4] sm:$0xf] %vm165, %v162
  // Predicated region
  $region22: #{encoder_decoder_forward.33} parent=0 // pred_check
    _
  $region23: #{encoder_decoder_forward.33} parent=0 // pred_check_branch
    %169 = sbr.rel (0) target = $region25
  $region24: #{encoder_decoder_forward.33} parent=0 // pred_region
    _
  $region25: #{encoder_decoder_forward.33} parent=0 // pred_fallthru
    _
  // Predicated region
  $region26: #{encoder_decoder_forward.33} parent=0 // pred_check
    _
  $region27: #{encoder_decoder_forward.33} parent=0 // pred_check_branch
    %171 = sbr.rel (0) target = $region29
  $region28: #{encoder_decoder_forward.33} parent=0 // pred_region
    _
  $region29: #{encoder_decoder_forward.33} parent=0 // pred_fallthru
    _

// kernel: encoder_decoder_forward.31
$region0: #{encoder_decoder_forward.31}
  #allocation0 [shape = 'u32[]', space=smem, size = 0x4, offset = 0x4, fixed_abs, tag = 'smem constant byte address 0x4 - core index']
  #allocation1 [shape = 'u32[144,128]{1,0:T(1,128)}', space=vmem, size = 0x12000, scoped, tag = 'internal scratch']
  %s0 = inlined_call_operand.vmem [shape: bf16[2,8,96], index: 0, kind: input, shape index: {}]
  %s1 = inlined_call_operand.vmem [shape: f32[2,1,8], index: 1, kind: input, shape index: {}]
  %s2 = inlined_call_operand.vmem [shape: bf16[2,8,32], index: 2, kind: output, shape index: {}]
  %s3 = sld [smem:[#allocation0]]
  $region41: #{encoder_decoder_forward.31} parent=0
    _
  %s5 = ssub.s32 1, %s3
  %s6 = scalar_select 0, %s5, %s3
  loop: start=0, step=1, limit=4
  $region2: #{encoder_decoder_forward.31} parent=0 // loop_pre_header
    _
  $region3: #{encoder_decoder_forward.31} parent=0 // loop_header
    %s8 = sphi 0, %s12
    %p9 = scmp.ge.s32.totalorder %s8, 4
    %s18 = sphi 0, %s20
    %s21 = sphi 0, %s18
    %s22 = sphi 0, %s21
    %s38 = sphi 0, %s22
    %s44 = sphi 0, %s46
    %s47 = sphi 0, %s44
    %s48 = sphi 0, %s47
    %s64 = sphi 0, %s48
    %s70 = sphi 0, %s72
    %s73 = sphi 0, %s70
    %s74 = sphi 0, %s73
    %s90 = sphi 0, %s74
  $region4: #{encoder_decoder_forward.31} parent=0 // loop_header_branch
    %11 = sbr.rel (%p9) target = $region8
  $region5: #{encoder_decoder_forward.31} parent=0 // loop_body
    %s13 = ssub.s32 %s8, 1
    %s14 = ssub.s32 %s8, 2
    %s15 = sadd.s32 %s8, 1
    %s16 = ssub.s32 %s8, %s15
    %p17 = scmp.eq.s32.totalorder %s16, 0
    %s19 = sadd.s32 %s18, 1
    %s20 = scalar_select %p17, %s18, %s19
    %p23 = pneg %p17
    %p24 = scmp.eq.s32.totalorder %s8, 1
    %p25 = por %p23, %p24
    %p26 = scmp.ne.s32.totalorder %s18, %s21
    %p27 = scmp.eq.s32.totalorder %s8, 0
    %p28 = por %p26, %p27
    %p29 = scmp.ne.s32.totalorder %s18, %s21
    %p30 = scmp.eq.s32.totalorder %s13, 1
    %p31 = por %p29, %p30
    %p32 = scmp.ne.s32.totalorder %s21, %s22
    %p33 = scmp.eq.s32.totalorder %s13, 0
    %p34 = por %p32, %p33
    %p35 = scmp.ne.s32.totalorder %s21, %s22
    %p36 = scmp.eq.s32.totalorder %s14, 1
    %p37 = por %p35, %p36
    %p39 = scmp.ne.s32.totalorder %s22, %s38
    %p40 = scmp.eq.s32.totalorder %s14, 0
    %p41 = por %p39, %p40
    %s42 = ssub.s32 %s8, %s15
    %p43 = scmp.eq.s32.totalorder %s42, 0
    %s45 = sadd.s32 %s44, 1
    %s46 = scalar_select %p43, %s44, %s45
    %p49 = pneg %p43
    %p50 = scmp.eq.s32.totalorder %s8, 1
    %p51 = por %p49, %p50
    %p52 = scmp.ne.s32.totalorder %s44, %s47
    %p53 = scmp.eq.s32.totalorder %s8, 0
    %p54 = por %p52, %p53
    %p55 = scmp.ne.s32.totalorder %s44, %s47
    %p56 = scmp.eq.s32.totalorder %s13, 1
    %p57 = por %p55, %p56
    %p58 = scmp.ne.s32.totalorder %s47, %s48
    %p59 = scmp.eq.s32.totalorder %s13, 0
    %p60 = por %p58, %p59
    %p61 = scmp.ne.s32.totalorder %s47, %s48
    %p62 = scmp.eq.s32.totalorder %s14, 1
    %p63 = por %p61, %p62
    %p65 = scmp.ne.s32.totalorder %s48, %s64
    %p66 = scmp.eq.s32.totalorder %s14, 0
    %p67 = por %p65, %p66
    %s68 = ssub.s32 %s8, %s15
    %p69 = scmp.eq.s32.totalorder %s68, 0
    %s71 = sadd.s32 %s70, 1
    %s72 = scalar_select %p69, %s70, %s71
    %p75 = pneg %p69
    %p76 = scmp.eq.s32.totalorder %s8, 1
    %p77 = por %p75, %p76
    %p78 = scmp.ne.s32.totalorder %s70, %s73
    %p79 = scmp.eq.s32.totalorder %s8, 0
    %p80 = por %p78, %p79
    %p81 = scmp.ne.s32.totalorder %s70, %s73
    %p82 = scmp.eq.s32.totalorder %s13, 1
    %p83 = por %p81, %p82
    %p84 = scmp.ne.s32.totalorder %s73, %s74
    %p85 = scmp.eq.s32.totalorder %s13, 0
    %p86 = por %p84, %p85
    %p87 = scmp.ne.s32.totalorder %s73, %s74
    %p88 = scmp.eq.s32.totalorder %s14, 1
    %p89 = por %p87, %p88
    %p91 = scmp.ne.s32.totalorder %s74, %s90
    %p92 = scmp.eq.s32.totalorder %s14, 0
    %p93 = por %p91, %p92
    %p94 = scmp.le.s32.totalorder 1, %s8
    %p95 = scmp.lt.s32.totalorder %s8, 3
    %p96 = pnand %p94, %p95
    %p97 = pneg %p96
    // Predicated region
    $region9: #{encoder_decoder_forward.31} parent=5 // pred_check
      _
    $region10: #{encoder_decoder_forward.31} parent=5 // pred_check_branch
      %99 = sbr.rel (%p96) target = $region12
    $region11: #{encoder_decoder_forward.31} parent=5 // pred_region
      %s100 = ssub.s32 %s8, 1
    $region12: #{encoder_decoder_forward.31} parent=5 // pred_fallthru
      _
    %p101 = scmp.lt.s32.totalorder %s8, 2
    // Predicated region
    $region13: #{encoder_decoder_forward.31} parent=5 // pred_check
      %p102 = pneg %p101
    $region14: #{encoder_decoder_forward.31} parent=5 // pred_check_branch
      %104 = sbr.rel (%p102) target = $region16
    $region15: #{encoder_decoder_forward.31} parent=5 // pred_region
      // Predicated region
      $region17: #{encoder_decoder_forward.31} parent=15 // pred_check
        %p105 = pneg %p28
      $region18: #{encoder_decoder_forward.31} parent=15 // pred_check_branch
        %107 = sbr.rel (%p105) target = $region20
      $region19: #{encoder_decoder_forward.31} parent=15 // pred_region
        %p108 = scmp.lt.s32.totalorder %s8, 1
        %s109 = scalar_select %p108, %s8, 1
        %s110 = smul.addr %s109, 4
        %s111 = scalar_lea.vmem %s0, %s110
      $region20: #{encoder_decoder_forward.31} parent=15 // pred_fallthru
        _
      // Predicated region
      $region21: #{encoder_decoder_forward.31} parent=15 // pred_check
        %p112 = pneg %p54
      $region22: #{encoder_decoder_forward.31} parent=15 // pred_check_branch
        %114 = sbr.rel (%p112) target = $region24
      $region23: #{encoder_decoder_forward.31} parent=15 // pred_region
        %p115 = scmp.lt.s32.totalorder %s8, 1
        %s116 = scalar_select %p115, %s8, 1
        %s117 = scalar_lea.vmem %s1, %s116
      $region24: #{encoder_decoder_forward.31} parent=15 // pred_fallthru
        _
    $region16: #{encoder_decoder_forward.31} parent=5 // pred_fallthru
      _
    %p118 = scmp.le.s32.totalorder 1, %s8
    %p119 = scmp.lt.s32.totalorder %s8, 3
    %p120 = pnand %p118, %p119
    %p121 = pneg %p120
    // Predicated region
    $region25: #{encoder_decoder_forward.31} parent=5 // pred_check
      _
    $region26: #{encoder_decoder_forward.31} parent=5 // pred_check_branch
      %123 = sbr.rel (%p120) target = $region28
    $region27: #{encoder_decoder_forward.31} parent=5 // pred_region
      %s124 = ssub.s32 %s8, 1
      %p125 = scmp.lt.s32.totalorder %s13, 1
      %s126 = scalar_select %p125, %s13, 1
      %s127 = smul.addr %s126, 4
      %s128 = scalar_lea.vmem %s0, %s127
      %p129 = pneg %p34
      %p130 = pneg %p31
      %p131 = scmp.lt.s32.totalorder %s13, 1
      %s132 = scalar_select %p131, %s13, 1
      %s133 = scalar_lea.vmem %s1, %s132
      %p134 = pneg %p60
      %p135 = pneg %p57
      %p136 = pneg %p86
      %p137 = pneg %p83
      %p138 = scmp.lt.s32.totalorder %s13, 1
      %s139 = scalar_select %p138, %s13, 1
      %s140 = smul.addr %s139, 4
      %s141 = scalar_lea.vmem %s2, %s140
      %p142 = scmp.lt.s32.totalorder %s13, 1
      %s143 = scalar_select %p142, %s13, 1
      %s144 = smul.addr %s143, 4
      %s145 = scalar_lea.vmem %s0, %s144
      %p146 = scmp.lt.s32.totalorder %s13, 1
      %s147 = scalar_select %p146, %s13, 1
      %s148 = scalar_lea.vmem %s1, %s147
      %p149 = scmp.lt.s32.totalorder %s13, 1
      %s150 = scalar_select %p149, %s13, 1
      %s151 = smul.addr %s150, 4
      %s152 = scalar_lea.vmem %s2, %s151
      %v154 = vld [vmem:[%s145] sm:$0xf]
      %v155 = vunpack.c.l.bf16 %v154
      %v156 = vld [vmem:[%s148] sm:$0x1]
      %v157 = vpack.c.bf16 %v155, %v155
      %159 = vrot.lane.b32.xlu0 %v157, 96
      %v160 = vpop.permute.xlu0 %159
      %vm161 = vcmask 64512
      %v163 = vsel %vm161, %v157, 0
      %v166 = vsel %vm161, %v160, 0
      %168 = vmatprep.subr.bf16.mxu0 0
      %169 = vmatpush1.bf16.xpose.msra.mxu0 0
      %170 = vmatprep.subr.bf16.mxu0 0
      %171 = vmatpush1.bf16.xpose.msra.mxu0 0
      %172 = vmatprep.subr.bf16.mxu0 0
      %173 = vmatpush1.bf16.xpose.msra.mxu0 0
      %174 = vmatprep.subr.bf16.mxu0 0
      %175 = vmatpush1.bf16.xpose.msra.mxu0 0
      %176 = vmatprep.subr.bf16.mxu0 0
      %177 = vmatpush1.bf16.xpose.msra.mxu0 0
      %178 = vmatprep.subr.bf16.mxu0 0
      %179 = vmatpush1.bf16.xpose.msra.mxu0 0
      %180 = vmatprep.subr.bf16.mxu0 0
      %181 = vmatpush1.bf16.xpose.msra.mxu0 0
      %182 = vmatprep.subr.bf16.mxu0 0
      %183 = vmatpush1.bf16.xpose.msra.mxu0 %v166
      %184 = vmatprep.subr.bf16.mxu0 0
      %185 = vmatpush2.bf16.xpose.msra.mxu0 0
      %186 = vmatprep.subr.bf16.mxu0 0
      %187 = vmatpush2.bf16.xpose.msra.mxu0 0
      %188 = vmatprep.subr.bf16.mxu0 0
      %189 = vmatpush2.bf16.xpose.msra.mxu0 0
      %190 = vmatprep.subr.bf16.mxu0 0
      %191 = vmatpush2.bf16.xpose.msra.mxu0 0
      %192 = vmatprep.subr.bf16.mxu0 0
      %193 = vmatpush2.bf16.xpose.msra.mxu0 0
      %194 = vmatprep.subr.bf16.mxu0 0
      %195 = vmatpush2.bf16.xpose.msra.mxu0 0
      %196 = vmatprep.subr.bf16.mxu0 0
      %197 = vmatpush2.bf16.xpose.msra.mxu0 0
      %198 = vmatprep.subr.bf16.mxu0 0
      %199 = vmatpush2.bf16.xpose.msra.mxu0 0
      %200 = vmatprep.mubr.bf16.mxu0 0
      %201 = vmatmul.mubr.bf16.gmra.mxu0 %v163
      %v202 = vpop.f32.mrf.mxu0
      %v203 = vadd.f32 0.0, %v202
      %v204 = vpop.f32.mrf.mxu0
      %v205 = vpop.f32.mrf.mxu0
      %v206 = vpop.f32.mrf.mxu0
      %207 = vdwg.mxu0
      %v208 = vmul.f32 %v203, 0.35355338
      %v210 = vlaneseq
      %v211 = vshrl.u32 %v210, 7
      %v212 = vsub.s32 0, %v211
      %v213 = vrot.slane %v156, %v212
      %v215 = vadd.f32 %v208, %v213
      %v216 = vsel %vm161, %v215, -inf
      %217 = vmax.xlane.f32.xlu0 %v216
      %v218 = vpop.xlane.xlu0 %217
      %v219 = vsub.f32 %v215, %v218
      %v220 = vmul.f32 %v219, 1.442695
      %v221 = vpow.pop %v220
      %v222 = vsel %vm161, %v221, 0.0
      %223 = vadd.xlane.f32.xlu0 %v222
      %v224 = vpop.xlane.xlu0 %223
      %v225 = vpack.c.bf16 %v221, %v221
      %226 = vrot.lane.b32.xlu0 %v157, 64
      %v227 = vpop.permute.xlu0 %226
      %v229 = vsel %vm161, %v225, 0
      %vm231 = vcmask 1043456
      %v233 = vsel %vm231, %v227, 0
      %235 = vmatprep.subr.bf16.mxu0 0
      %236 = vmatpush1.bf16.msra.mxu0 0
      %237 = vmatprep.subr.bf16.mxu0 0
      %238 = vmatpush1.bf16.msra.mxu0 0
      %239 = vmatprep.subr.bf16.mxu0 0
      %240 = vmatpush1.bf16.msra.mxu0 0
      %241 = vmatprep.subr.bf16.mxu0 0
      %242 = vmatpush1.bf16.msra.mxu0 0
      %243 = vmatprep.subr.bf16.mxu0 0
      %244 = vmatpush1.bf16.msra.mxu0 0
      %245 = vmatprep.subr.bf16.mxu0 0
      %246 = vmatpush1.bf16.msra.mxu0 0
      %247 = vmatprep.subr.bf16.mxu0 0
      %248 = vmatpush1.bf16.msra.mxu0 0
      %249 = vmatprep.subr.bf16.mxu0 0
      %250 = vmatpush1.bf16.msra.mxu0 %v233
      %251 = vmatprep.subr.bf16.mxu0 0
      %252 = vmatpush2.bf16.msra.mxu0 0
      %253 = vmatprep.subr.bf16.mxu0 0
      %254 = vmatpush2.bf16.msra.mxu0 0
      %255 = vmatprep.subr.bf16.mxu0 0
      %256 = vmatpush2.bf16.msra.mxu0 0
      %257 = vmatprep.subr.bf16.mxu0 0
      %258 = vmatpush2.bf16.msra.mxu0 0
      %259 = vmatprep.subr.bf16.mxu0 0
      %260 = vmatpush2.bf16.msra.mxu0 0
      %261 = vmatprep.subr.bf16.mxu0 0
      %262 = vmatpush2.bf16.msra.mxu0 0
      %263 = vmatprep.subr.bf16.mxu0 0
      %264 = vmatpush2.bf16.msra.mxu0 0
      %265 = vmatprep.subr.bf16.mxu0 0
      %266 = vmatpush2.bf16.msra.mxu0 0
      %267 = vmatprep.mubr.bf16.mxu0 0
      %268 = vmatmul.mubr.bf16.gmra.mxu0 %v229
      %v269 = vpop.f32.mrf.mxu0
      %v270 = vadd.f32 0.0, %v269
      %v271 = vpop.f32.mrf.mxu0
      %v272 = vpop.f32.mrf.mxu0
      %v273 = vpop.f32.mrf.mxu0
      %274 = vdwg.mxu0
      %v275 = vrcp.pop %v224
      %v276 = vmul.f32 %v270, %v275
      %277 = vrot.lane.b32.xlu0 %v157, 120
      %v278 = vpop.permute.xlu0 %277
      %279 = vrot.lane.b32.xlu0 %v157, 88
      %v280 = vpop.permute.xlu0 %279
      %v282 = vsel %vm161, %v278, 0
      %v285 = vsel %vm161, %v280, 0
      %287 = vmatprep.subr.bf16.mxu0 0
      %288 = vmatpush1.bf16.xpose.msra.mxu0 0
      %289 = vmatprep.subr.bf16.mxu0 0
      %290 = vmatpush1.bf16.xpose.msra.mxu0 0
      %291 = vmatprep.subr.bf16.mxu0 0
      %292 = vmatpush1.bf16.xpose.msra.mxu0 0
      %293 = vmatprep.subr.bf16.mxu0 0
      %294 = vmatpush1.bf16.xpose.msra.mxu0 0
      %295 = vmatprep.subr.bf16.mxu0 0
      %296 = vmatpush1.bf16.xpose.msra.mxu0 0
      %297 = vmatprep.subr.bf16.mxu0 0
      %298 = vmatpush1.bf16.xpose.msra.mxu0 0
      %299 = vmatprep.subr.bf16.mxu0 0
      %300 = vmatpush1.bf16.xpose.msra.mxu0 0
      %301 = vmatprep.subr.bf16.mxu0 0
      %302 = vmatpush1.bf16.xpose.msra.mxu0 %v285
      %303 = vmatprep.subr.bf16.mxu0 0
      %304 = vmatpush2.bf16.xpose.msra.mxu0 0
      %305 = vmatprep.subr.bf16.mxu0 0
      %306 = vmatpush2.bf16.xpose.msra.mxu0 0
      %307 = vmatprep.subr.bf16.mxu0 0
      %308 = vmatpush2.bf16.xpose.msra.mxu0 0
      %309 = vmatprep.subr.bf16.mxu0 0
      %310 = vmatpush2.bf16.xpose.msra.mxu0 0
      %311 = vmatprep.subr.bf16.mxu0 0
      %312 = vmatpush2.bf16.xpose.msra.mxu0 0
      %313 = vmatprep.subr.bf16.mxu0 0
      %314 = vmatpush2.bf16.xpose.msra.mxu0 0
      %315 = vmatprep.subr.bf16.mxu0 0
      %316 = vmatpush2.bf16.xpose.msra.mxu0 0
      %317 = vmatprep.subr.bf16.mxu0 0
      %318 = vmatpush2.bf16.xpose.msra.mxu0 0
      %319 = vmatprep.mubr.bf16.mxu0 0
      %320 = vmatmul.mubr.bf16.gmra.mxu0 %v282
      %v321 = vpop.f32.mrf.mxu0
      %v322 = vadd.f32 0.0, %v321
      %v323 = vpop.f32.mrf.mxu0
      %v324 = vpop.f32.mrf.mxu0
      %v325 = vpop.f32.mrf.mxu0
      %326 = vdwg.mxu0
      %v327 = vmul.f32 %v322, 0.35355338
      %v328 = vadd.f32 %v327, %v213
      %v329 = vsel %vm161, %v328, -inf
      %330 = vmax.xlane.f32.xlu0 %v329
      %v331 = vpop.xlane.xlu0 %330
      %v332 = vsub.f32 %v328, %v331
      %v333 = vmul.f32 %v332, 1.442695
      %v334 = vpow.pop %v333
      %v335 = vsel %vm161, %v334, 0.0
      %336 = vadd.xlane.f32.xlu0 %v335
      %v337 = vpop.xlane.xlu0 %336
      %v338 = vpack.c.bf16 %v334, %v334
      %339 = vrot.lane.b32.xlu0 %v157, 56
      %v340 = vpop.permute.xlu0 %339
      %v342 = vsel %vm161, %v338, 0
      %v345 = vsel %vm231, %v340, 0
      %347 = vmatprep.subr.bf16.mxu0 0
      %348 = vmatpush1.bf16.msra.mxu0 0
      %349 = vmatprep.subr.bf16.mxu0 0
      %350 = vmatpush1.bf16.msra.mxu0 0
      %351 = vmatprep.subr.bf16.mxu0 0
      %352 = vmatpush1.bf16.msra.mxu0 0
      %353 = vmatprep.subr.bf16.mxu0 0
      %354 = vmatpush1.bf16.msra.mxu0 0
      %355 = vmatprep.subr.bf16.mxu0 0
      %356 = vmatpush1.bf16.msra.mxu0 0
      %357 = vmatprep.subr.bf16.mxu0 0
      %358 = vmatpush1.bf16.msra.mxu0 0
      %359 = vmatprep.subr.bf16.mxu0 0
      %360 = vmatpush1.bf16.msra.mxu0 0
      %361 = vmatprep.subr.bf16.mxu0 0
      %362 = vmatpush1.bf16.msra.mxu0 %v345
      %363 = vmatprep.subr.bf16.mxu0 0
      %364 = vmatpush2.bf16.msra.mxu0 0
      %365 = vmatprep.subr.bf16.mxu0 0
      %366 = vmatpush2.bf16.msra.mxu0 0
      %367 = vmatprep.subr.bf16.mxu0 0
      %368 = vmatpush2.bf16.msra.mxu0 0
      %369 = vmatprep.subr.bf16.mxu0 0
      %370 = vmatpush2.bf16.msra.mxu0 0
      %371 = vmatprep.subr.bf16.mxu0 0
      %372 = vmatpush2.bf16.msra.mxu0 0
      %373 = vmatprep.subr.bf16.mxu0 0
      %374 = vmatpush2.bf16.msra.mxu0 0
      %375 = vmatprep.subr.bf16.mxu0 0
      %376 = vmatpush2.bf16.msra.mxu0 0
      %377 = vmatprep.subr.bf16.mxu0 0
      %378 = vmatpush2.bf16.msra.mxu0 0
      %379 = vmatprep.mubr.bf16.mxu0 0
      %380 = vmatmul.mubr.bf16.gmra.mxu0 %v342
      %v381 = vpop.f32.mrf.mxu0
      %v382 = vadd.f32 0.0, %v381
      %v383 = vpop.f32.mrf.mxu0
      %v384 = vpop.f32.mrf.mxu0
      %v385 = vpop.f32.mrf.mxu0
      %386 = vdwg.mxu0
      %v387 = vrcp.pop %v337
      %v388 = vmul.f32 %v382, %v387
      %389 = vrot.lane.b32.xlu0 %v157, 112
      %v390 = vpop.permute.xlu0 %389
      %391 = vrot.lane.b32.xlu0 %v157, 80
      %v392 = vpop.permute.xlu0 %391
      %v394 = vsel %vm161, %v390, 0
      %v397 = vsel %vm161, %v392, 0
      %399 = vmatprep.subr.bf16.mxu0 0
      %400 = vmatpush1.bf16.xpose.msra.mxu0 0
      %401 = vmatprep.subr.bf16.mxu0 0
      %402 = vmatpush1.bf16.xpose.msra.mxu0 0
      %403 = vmatprep.subr.bf16.mxu0 0
      %404 = vmatpush1.bf16.xpose.msra.mxu0 0
      %405 = vmatprep.subr.bf16.mxu0 0
      %406 = vmatpush1.bf16.xpose.msra.mxu0 0
      %407 = vmatprep.subr.bf16.mxu0 0
      %408 = vmatpush1.bf16.xpose.msra.mxu0 0
      %409 = vmatprep.subr.bf16.mxu0 0
      %410 = vmatpush1.bf16.xpose.msra.mxu0 0
      %411 = vmatprep.subr.bf16.mxu0 0
      %412 = vmatpush1.bf16.xpose.msra.mxu0 0
      %413 = vmatprep.subr.bf16.mxu0 0
      %414 = vmatpush1.bf16.xpose.msra.mxu0 %v397
      %415 = vmatprep.subr.bf16.mxu0 0
      %416 = vmatpush2.bf16.xpose.msra.mxu0 0
      %417 = vmatprep.subr.bf16.mxu0 0
      %418 = vmatpush2.bf16.xpose.msra.mxu0 0
      %419 = vmatprep.subr.bf16.mxu0 0
      %420 = vmatpush2.bf16.xpose.msra.mxu0 0
      %421 = vmatprep.subr.bf16.mxu0 0
      %422 = vmatpush2.bf16.xpose.msra.mxu0 0
      %423 = vmatprep.subr.bf16.mxu0 0
      %424 = vmatpush2.bf16.xpose.msra.mxu0 0
      %425 = vmatprep.subr.bf16.mxu0 0
      %426 = vmatpush2.bf16.xpose.msra.mxu0 0
      %427 = vmatprep.subr.bf16.mxu0 0
      %428 = vmatpush2.bf16.xpose.msra.mxu0 0
      %429 = vmatprep.subr.bf16.mxu0 0
      %430 = vmatpush2.bf16.xpose.msra.mxu0 0
      %431 = vmatprep.mubr.bf16.mxu0 0
      %432 = vmatmul.mubr.bf16.gmra.mxu0 %v394
      %v433 = vpop.f32.mrf.mxu0
      %v434 = vadd.f32 0.0, %v433
      %v435 = vpop.f32.mrf.mxu0
      %v436 = vpop.f32.mrf.mxu0
      %v437 = vpop.f32.mrf.mxu0
      %438 = vdwg.mxu0
      %v439 = vmul.f32 %v434, 0.35355338
      %v440 = vadd.f32 %v439, %v213
      %v441 = vsel %vm161, %v440, -inf
      %442 = vmax.xlane.f32.xlu0 %v441
      %v443 = vpop.xlane.xlu0 %442
      %v444 = vsub.f32 %v440, %v443
      %v445 = vmul.f32 %v444, 1.442695
      %v446 = vpow.pop %v445
      %v447 = vsel %vm161, %v446, 0.0
      %448 = vadd.xlane.f32.xlu0 %v447
      %v449 = vpop.xlane.xlu0 %448
      %v450 = vpack.c.bf16 %v446, %v446
      %451 = vrot.lane.b32.xlu0 %v157, 48
      %v452 = vpop.permute.xlu0 %451
      %v454 = vsel %vm161, %v450, 0
      %v457 = vsel %vm231, %v452, 0
      %459 = vmatprep.subr.bf16.mxu0 0
      %460 = vmatpush1.bf16.msra.mxu0 0
      %461 = vmatprep.subr.bf16.mxu0 0
      %462 = vmatpush1.bf16.msra.mxu0 0
      %463 = vmatprep.subr.bf16.mxu0 0
      %464 = vmatpush1.bf16.msra.mxu0 0
      %465 = vmatprep.subr.bf16.mxu0 0
      %466 = vmatpush1.bf16.msra.mxu0 0
      %467 = vmatprep.subr.bf16.mxu0 0
      %468 = vmatpush1.bf16.msra.mxu0 0
      %469 = vmatprep.subr.bf16.mxu0 0
      %470 = vmatpush1.bf16.msra.mxu0 0
      %471 = vmatprep.subr.bf16.mxu0 0
      %472 = vmatpush1.bf16.msra.mxu0 0
      %473 = vmatprep.subr.bf16.mxu0 0
      %474 = vmatpush1.bf16.msra.mxu0 %v457
      %475 = vmatprep.subr.bf16.mxu0 0
      %476 = vmatpush2.bf16.msra.mxu0 0
      %477 = vmatprep.subr.bf16.mxu0 0
      %478 = vmatpush2.bf16.msra.mxu0 0
      %479 = vmatprep.subr.bf16.mxu0 0
      %480 = vmatpush2.bf16.msra.mxu0 0
      %481 = vmatprep.subr.bf16.mxu0 0
      %482 = vmatpush2.bf16.msra.mxu0 0
      %483 = vmatprep.subr.bf16.mxu0 0
      %484 = vmatpush2.bf16.msra.mxu0 0
      %485 = vmatprep.subr.bf16.mxu0 0
      %486 = vmatpush2.bf16.msra.mxu0 0
      %487 = vmatprep.subr.bf16.mxu0 0
      %488 = vmatpush2.bf16.msra.mxu0 0
      %489 = vmatprep.subr.bf16.mxu0 0
      %490 = vmatpush2.bf16.msra.mxu0 0
      %491 = vmatprep.mubr.bf16.mxu0 0
      %492 = vmatmul.mubr.bf16.gmra.mxu0 %v454
      %v493 = vpop.f32.mrf.mxu0
      %v494 = vadd.f32 0.0, %v493
      %v495 = vpop.f32.mrf.mxu0
      %v496 = vpop.f32.mrf.mxu0
      %v497 = vpop.f32.mrf.mxu0
      %498 = vdwg.mxu0
      %v499 = vrcp.pop %v449
      %v500 = vmul.f32 %v494, %v499
      %501 = vrot.lane.b32.xlu0 %v157, 104
      %v502 = vpop.permute.xlu0 %501
      %503 = vrot.lane.b32.xlu0 %v157, 72
      %v504 = vpop.permute.xlu0 %503
      %v506 = vsel %vm161, %v502, 0
      %v509 = vsel %vm161, %v504, 0
      %511 = vmatprep.subr.bf16.mxu0 0
      %512 = vmatpush1.bf16.xpose.msra.mxu0 0
      %513 = vmatprep.subr.bf16.mxu0 0
      %514 = vmatpush1.bf16.xpose.msra.mxu0 0
      %515 = vmatprep.subr.bf16.mxu0 0
      %516 = vmatpush1.bf16.xpose.msra.mxu0 0
      %517 = vmatprep.subr.bf16.mxu0 0
      %518 = vmatpush1.bf16.xpose.msra.mxu0 0
      %519 = vmatprep.subr.bf16.mxu0 0
      %520 = vmatpush1.bf16.xpose.msra.mxu0 0
      %521 = vmatprep.subr.bf16.mxu0 0
      %522 = vmatpush1.bf16.xpose.msra.mxu0 0
      %523 = vmatprep.subr.bf16.mxu0 0
      %524 = vmatpush1.bf16.xpose.msra.mxu0 0
      %525 = vmatprep.subr.bf16.mxu0 0
      %526 = vmatpush1.bf16.xpose.msra.mxu0 %v509
      %527 = vmatprep.subr.bf16.mxu0 0
      %528 = vmatpush2.bf16.xpose.msra.mxu0 0
      %529 = vmatprep.subr.bf16.mxu0 0
      %530 = vmatpush2.bf16.xpose.msra.mxu0 0
      %531 = vmatprep.subr.bf16.mxu0 0
      %532 = vmatpush2.bf16.xpose.msra.mxu0 0
      %533 = vmatprep.subr.bf16.mxu0 0
      %534 = vmatpush2.bf16.xpose.msra.mxu0 0
      %535 = vmatprep.subr.bf16.mxu0 0
      %536 = vmatpush2.bf16.xpose.msra.mxu0 0
      %537 = vmatprep.subr.bf16.mxu0 0
      %538 = vmatpush2.bf16.xpose.msra.mxu0 0
      %539 = vmatprep.subr.bf16.mxu0 0
      %540 = vmatpush2.bf16.xpose.msra.mxu0 0
      %541 = vmatprep.subr.bf16.mxu0 0
      %542 = vmatpush2.bf16.xpose.msra.mxu0 0
      %543 = vmatprep.mubr.bf16.mxu0 0
      %544 = vmatmul.mubr.bf16.gmra.mxu0 %v506
      %v545 = vpop.f32.mrf.mxu0
      %v546 = vadd.f32 0.0, %v545
      %v547 = vpop.f32.mrf.mxu0
      %v548 = vpop.f32.mrf.mxu0
      %v549 = vpop.f32.mrf.mxu0
      %550 = vdwg.mxu0
      %v551 = vmul.f32 %v546, 0.35355338
      %v552 = vadd.f32 %v551, %v213
      %v553 = vsel %vm161, %v552, -inf
      %554 = vmax.xlane.f32.xlu0 %v553
      %v555 = vpop.xlane.xlu0 %554
      %v556 = vsub.f32 %v552, %v555
      %v557 = vmul.f32 %v556, 1.442695
      %v558 = vpow.pop %v557
      %v559 = vsel %vm161, %v558, 0.0
      %560 = vadd.xlane.f32.xlu0 %v559
      %v561 = vpop.xlane.xlu0 %560
      %v562 = vpack.c.bf16 %v558, %v558
      %563 = vrot.lane.b32.xlu0 %v157, 40
      %v564 = vpop.permute.xlu0 %563
      %v566 = vsel %vm161, %v562, 0
      %v569 = vsel %vm231, %v564, 0
      %571 = vmatprep.subr.bf16.mxu0 0
      %572 = vmatpush1.bf16.msra.mxu0 0
      %573 = vmatprep.subr.bf16.mxu0 0
      %574 = vmatpush1.bf16.msra.mxu0 0
      %575 = vmatprep.subr.bf16.mxu0 0
      %576 = vmatpush1.bf16.msra.mxu0 0
      %577 = vmatprep.subr.bf16.mxu0 0
      %578 = vmatpush1.bf16.msra.mxu0 0
      %579 = vmatprep.subr.bf16.mxu0 0
      %580 = vmatpush1.bf16.msra.mxu0 0
      %581 = vmatprep.subr.bf16.mxu0 0
      %582 = vmatpush1.bf16.msra.mxu0 0
      %583 = vmatprep.subr.bf16.mxu0 0
      %584 = vmatpush1.bf16.msra.mxu0 0
      %585 = vmatprep.subr.bf16.mxu0 0
      %586 = vmatpush1.bf16.msra.mxu0 %v569
      %587 = vmatprep.subr.bf16.mxu0 0
      %588 = vmatpush2.bf16.msra.mxu0 0
      %589 = vmatprep.subr.bf16.mxu0 0
      %590 = vmatpush2.bf16.msra.mxu0 0
      %591 = vmatprep.subr.bf16.mxu0 0
      %592 = vmatpush2.bf16.msra.mxu0 0
      %593 = vmatprep.subr.bf16.mxu0 0
      %594 = vmatpush2.bf16.msra.mxu0 0
      %595 = vmatprep.subr.bf16.mxu0 0
      %596 = vmatpush2.bf16.msra.mxu0 0
      %597 = vmatprep.subr.bf16.mxu0 0
      %598 = vmatpush2.bf16.msra.mxu0 0
      %599 = vmatprep.subr.bf16.mxu0 0
      %600 = vmatpush2.bf16.msra.mxu0 0
      %601 = vmatprep.subr.bf16.mxu0 0
      %602 = vmatpush2.bf16.msra.mxu0 0
      %603 = vmatprep.mubr.bf16.mxu0 0
      %604 = vmatmul.mubr.bf16.gmra.mxu0 %v566
      %v605 = vpop.f32.mrf.mxu0
      %v606 = vadd.f32 0.0, %v605
      %v607 = vpop.f32.mrf.mxu0
      %v608 = vpop.f32.mrf.mxu0
      %v609 = vpop.f32.mrf.mxu0
      %610 = vdwg.mxu0
      %v611 = vrcp.pop %v561
      %v612 = vmul.f32 %v606, %v611
      %614 = vrot.lane.b32.xlu0 %v388, 8
      %v615 = vpop.permute.xlu0 %614
      %618 = vrot.lane.b32.xlu0 %v500, 16
      %v619 = vpop.permute.xlu0 %618
      %622 = vrot.lane.b32.xlu0 %v612, 24
      %v623 = vpop.permute.xlu0 %622
      %v625 = vsel %vm161, %v276, %v615
      %vm626 = vcmask 130048
      %v627 = vsel %vm626, %v625, %v619
      %vm628 = vcmask 195584
      %v629 = vsel %vm628, %v627, %v623
      %v630 = vpack.c.bf16 %v629, %v629
      %vm631 = vcmask 257024
      %632 = vst.msk [vmem:[%s152] sm:$0xf] %vm631, %v630
      %p633 = scmp.lt.s32.totalorder %s13, 1
      %s634 = scalar_select %p633, %s13, 1
      %s635 = smul.addr %s634, 4
      %s636 = scalar_lea.vmem %s2, %s635
      // Predicated region
      $region29: #{encoder_decoder_forward.31} parent=27 // pred_check
        %p637 = pneg %p83
      $region30: #{encoder_decoder_forward.31} parent=27 // pred_check_branch
        %639 = sbr.rel (%p637) target = $region32
      $region31: #{encoder_decoder_forward.31} parent=27 // pred_region
        _
      $region32: #{encoder_decoder_forward.31} parent=27 // pred_fallthru
        _
    $region28: #{encoder_decoder_forward.31} parent=5 // pred_fallthru
      _
    %p640 = scmp.le.s32.totalorder 2, %s8
    // Predicated region
    $region33: #{encoder_decoder_forward.31} parent=5 // pred_check
      %p641 = pneg %p640
    $region34: #{encoder_decoder_forward.31} parent=5 // pred_check_branch
      %643 = sbr.rel (%p641) target = $region36
    $region35: #{encoder_decoder_forward.31} parent=5 // pred_region
      %s644 = ssub.s32 %s8, 2
      // Predicated region
      $region37: #{encoder_decoder_forward.31} parent=35 // pred_check
        %p645 = pneg %p89
      $region38: #{encoder_decoder_forward.31} parent=35 // pred_check_branch
        %647 = sbr.rel (%p645) target = $region40
      $region39: #{encoder_decoder_forward.31} parent=35 // pred_region
        %p648 = scmp.lt.s32.totalorder %s14, 1
        %s649 = scalar_select %p648, %s14, 1
        %s650 = smul.addr %s649, 4
        %s651 = scalar_lea.vmem %s2, %s650
      $region40: #{encoder_decoder_forward.31} parent=35 // pred_fallthru
        _
    $region36: #{encoder_decoder_forward.31} parent=5 // pred_fallthru
      _
  $region6: #{encoder_decoder_forward.31} parent=0 // loop_footer
    %s12 = sadd.s32 1, %s8
  $region7: #{encoder_decoder_forward.31} parent=0 // loop_footer_branch
    %7 = sbr.rel target = $region3
  $region8: #{encoder_decoder_forward.31} parent=0 // loop_exit
    _

// kernel: encoder_decoder_forward.40
$region0: #{encoder_decoder_forward.40}
  #allocation0 [shape = 'u32[]', space=smem, size = 0x4, offset = 0x4, fixed_abs, tag = 'smem constant byte address 0x4 - core index']
  #allocation1 [shape = 'u32[144,128]{1,0:T(1,128)}', space=vmem, size = 0x12000, scoped, tag = 'internal scratch']
  %s0 = inlined_call_operand.vmem [shape: bf16[16,32], index: 0, kind: input, shape index: {}]
  %s1 = inlined_call_operand.vmem [shape: f32[1,32], index: 1, kind: input, shape index: {}]
  %s2 = inlined_call_operand.vmem [shape: f32[1,32], index: 2, kind: input, shape index: {}]
  %s3 = inlined_call_operand.vmem [shape: bf16[16,32], index: 3, kind: output, shape index: {}]
  %s4 = sld [smem:[#allocation0]]
  $region22: #{encoder_decoder_forward.40} parent=0
    _
  %s6 = ssub.s32 1, %s4
  %s7 = scalar_select 0, %s6, %s4
  // Predicated region
  $region2: #{encoder_decoder_forward.40} parent=0 // pred_check
    _
  $region3: #{encoder_decoder_forward.40} parent=0 // pred_check_branch
    %9 = sbr.rel (0) target = $region5
  $region4: #{encoder_decoder_forward.40} parent=0 // pred_region
    _
  $region5: #{encoder_decoder_forward.40} parent=0 // pred_fallthru
    _
  // Predicated region
  $region6: #{encoder_decoder_forward.40} parent=0 // pred_check
    _
  $region7: #{encoder_decoder_forward.40} parent=0 // pred_check_branch
    %11 = sbr.rel (0) target = $region9
  $region8: #{encoder_decoder_forward.40} parent=0 // pred_region
    _
  $region9: #{encoder_decoder_forward.40} parent=0 // pred_fallthru
    _
  // Predicated region
  $region10: #{encoder_decoder_forward.40} parent=0 // pred_check
    _
  $region11: #{encoder_decoder_forward.40} parent=0 // pred_check_branch
    %13 = sbr.rel (0) target = $region13
  $region12: #{encoder_decoder_forward.40} parent=0 // pred_region
    _
  $region13: #{encoder_decoder_forward.40} parent=0 // pred_fallthru
    _
  %v14 = vld [vmem:[%s0] sm:$0xf]
  %v15 = vld [vmem:[%s0 + $0x4] sm:$0xf]
  %v16 = vunpack.c.l.bf16 %v14
  %v17 = vunpack.c.l.bf16 %v15
  %vm18 = vcmask 261120
  %v19 = vsel %vm18, %v16, 0.0
  %20 = vadd.xlane.f32.xlu0 %v19
  %v21 = vpop.xlane.xlu0 %20
  %v22 = vsel %vm18, %v17, 0.0
  %23 = vadd.xlane.f32.xlu0 %v22
  %v24 = vpop.xlane.xlu0 %23
  %v25 = vrcp.pop 32.0
  %v26 = vmul.f32 %v21, %v25
  %v27 = vmul.f32 %v24, %v25
  %v28 = vsub.f32 %v16, %v26
  %v29 = vsub.f32 %v17, %v27
  %v30 = vmul.f32 %v28, %v28
  %v31 = vmul.f32 %v29, %v29
  %v32 = vsel %vm18, %v30, 0.0
  %33 = vadd.xlane.f32.xlu0 %v32
  %v34 = vpop.xlane.xlu0 %33
  %v35 = vsel %vm18, %v31, 0.0
  %36 = vadd.xlane.f32.xlu0 %v35
  %v37 = vpop.xlane.xlu0 %36
  %v38 = vmul.f32 %v34, %v25
  %v39 = vmul.f32 %v37, %v25
  %v40 = vadd.f32 %v38, 1e-05
  %v41 = vadd.f32 %v39, 1e-05
  %v42 = vrsqrt.pop %v40
  %v43 = vrsqrt.pop %v41
  %v44 = vmul.f32 %v28, %v42
  %v45 = vmul.f32 %v29, %v43
  %v46 = vld [vmem:[%s1] sm:$0x1]
  %v48 = vlaneseq
  %v49 = vshrl.u32 %v48, 7
  %v50 = vsub.s32 0, %v49
  %v51 = vrot.slane %v46, %v50
  %v53 = vmul.f32 %v44, %v51
  %v54 = vmul.f32 %v45, %v51
  %v55 = vld [vmem:[%s2] sm:$0x1]
  %v57 = vlaneseq
  %v58 = vshrl.u32 %v57, 7
  %v59 = vsub.s32 0, %v58
  %v60 = vrot.slane %v55, %v59
  %v62 = vadd.f32 %v53, %v60
  %v63 = vadd.f32 %v54, %v60
  %v64 = vpack.c.bf16 %v63, %v62
  %v66 = vunpack.c.l.b16 %v64
  %v67 = vunpack.c.h.b16 %v64
  %v68 = vpack.c.b16 %v66, %v66
  %v69 = vpack.c.b16 %v67, %v67
  %vm72 = vcmask 257024
  %73 = vst.msk [vmem:[%s3] sm:$0xf] %vm72, %v68
  %74 = vst.msk [vmem:[%s3 + $0x4] sm:$0xf] %vm72, %v69
  // Predicated region
  $region14: #{encoder_decoder_forward.40} parent=0 // pred_check
    _
  $region15: #{encoder_decoder_forward.40} parent=0 // pred_check_branch
    %76 = sbr.rel (0) target = $region17
  $region16: #{encoder_decoder_forward.40} parent=0 // pred_region
    _
  $region17: #{encoder_decoder_forward.40} parent=0 // pred_fallthru
    _
  // Predicated region
  $region18: #{encoder_decoder_forward.40} parent=0 // pred_check
    _
  $region19: #{encoder_decoder_forward.40} parent=0 // pred_check_branch
    %78 = sbr.rel (0) target = $region21
  $region20: #{encoder_decoder_forward.40} parent=0 // pred_region
    _
  $region21: #{encoder_decoder_forward.40} parent=0 // pred_fallthru
    _

// kernel: encoder_decoder_forward.34
$region0: #{encoder_decoder_forward.34}
  #allocation0 [shape = 'u32[]', space=smem, size = 0x4, offset = 0x4, fixed_abs, tag = 'smem constant byte address 0x4 - core index']
  #allocation1 [shape = 'u32[144,128]{1,0:T(1,128)}', space=vmem, size = 0x12000, scoped, tag = 'internal scratch']
  #allocation2 [shape = 'f32[16,32]{1,0:T(8,128)}', space=vmem, size = 0x2000, scoped, tag = 'scratch operand']
  %s0 = inlined_call_operand.vmem [shape: bf16[16,64], index: 0, kind: input, shape index: {}]
  %s1 = inlined_call_operand.vmem [shape: bf16[64,32], index: 1, kind: input, shape index: {}]
  %s2 = inlined_call_operand.vmem [shape: f32[1,32], index: 2, kind: input, shape index: {}]
  %s3 = inlined_call_operand.vmem [shape: bf16[16,32], index: 3, kind: input, shape index: {}]
  %s4 = inlined_call_operand.vmem [shape: bf16[16,32], index: 4, kind: output, shape index: {}]
  %s5 = sld [smem:[#allocation0]]
  $region34: #{encoder_decoder_forward.34} parent=0
    _
  %s7 = ssub.s32 1, %s5
  %s8 = scalar_select 0, %s7, %s5
  // Predicated region
  $region2: #{encoder_decoder_forward.34} parent=0 // pred_check
    _
  $region3: #{encoder_decoder_forward.34} parent=0 // pred_check_branch
    %10 = sbr.rel (0) target = $region5
  $region4: #{encoder_decoder_forward.34} parent=0 // pred_region
    _
  $region5: #{encoder_decoder_forward.34} parent=0 // pred_fallthru
    _
  // Predicated region
  $region6: #{encoder_decoder_forward.34} parent=0 // pred_check
    _
  $region7: #{encoder_decoder_forward.34} parent=0 // pred_check_branch
    %12 = sbr.rel (0) target = $region9
  $region8: #{encoder_decoder_forward.34} parent=0 // pred_region
    _
  $region9: #{encoder_decoder_forward.34} parent=0 // pred_fallthru
    _
  // Predicated region
  $region10: #{encoder_decoder_forward.34} parent=0 // pred_check
    _
  $region11: #{encoder_decoder_forward.34} parent=0 // pred_check_branch
    %14 = sbr.rel (0) target = $region13
  $region12: #{encoder_decoder_forward.34} parent=0 // pred_region
    _
  $region13: #{encoder_decoder_forward.34} parent=0 // pred_fallthru
    _
  // Predicated region
  $region14: #{encoder_decoder_forward.34} parent=0 // pred_check
    _
  $region15: #{encoder_decoder_forward.34} parent=0 // pred_check_branch
    %16 = sbr.rel (0) target = $region17
  $region16: #{encoder_decoder_forward.34} parent=0 // pred_region
    _
  $region17: #{encoder_decoder_forward.34} parent=0 // pred_fallthru
    _
  %p18 = scmp.eq.s32.totalorder 0, 0
  // Predicated region
  $region18: #{encoder_decoder_forward.34} parent=0 // pred_check
    %p19 = pneg %p18
  $region19: #{encoder_decoder_forward.34} parent=0 // pred_check_branch
    %21 = sbr.rel (%p19) target = $region21
  $region20: #{encoder_decoder_forward.34} parent=0 // pred_region
    %vm22 = vcmask 261120
    %23 = vst.msk [vmem:[#allocation2] sm:$0xff] %vm22, 0.0
    %24 = vst.msk [vmem:[#allocation2 + $0x8] sm:$0xff] %vm22, 0.0
  $region21: #{encoder_decoder_forward.34} parent=0 // pred_fallthru
    _
  %v25 = vld [vmem:[%s0] sm:$0xf]
  %v26 = vld [vmem:[%s0 + $0x4] sm:$0xf]
  %v27 = vld [vmem:[%s1] sm:$0xf]
  %v28 = vld [vmem:[%s1 + $0x4] sm:$0xf]
  %v29 = vld [vmem:[%s1 + $0x8] sm:$0xf]
  %v30 = vld [vmem:[%s1 + $0xc] sm:$0xf]
  %v31 = vld [vmem:[%s1 + $0x10] sm:$0xf]
  %v32 = vld [vmem:[%s1 + $0x14] sm:$0xf]
  %v33 = vld [vmem:[%s1 + $0x18] sm:$0xf]
  %v34 = vld [vmem:[%s1 + $0x1c] sm:$0xf]
  %v35 = vld [vmem:[#allocation2] sm:$0xff]
  %v36 = vld [vmem:[#allocation2 + $0x8] sm:$0xff]
  %v39 = vunpack.c.l.b16 %v25
  %v40 = vunpack.c.l.b16 %v26
  %v41 = vpack.c.b16 %v40, %v39
  %v50 = vunpack.c.l.b16 %v27
  %v51 = vunpack.c.l.b16 %v28
  %v52 = vunpack.c.l.b16 %v29
  %v53 = vunpack.c.l.b16 %v30
  %v54 = vunpack.c.l.b16 %v31
  %v55 = vunpack.c.l.b16 %v32
  %v56 = vunpack.c.l.b16 %v33
  %v57 = vunpack.c.l.b16 %v34
  %v58 = vpack.c.b16 %v51, %v50
  %v59 = vpack.c.b16 %v53, %v52
  %v60 = vpack.c.b16 %v55, %v54
  %v61 = vpack.c.b16 %v57, %v56
  %vm66 = vcmask 523264
  %v68 = vsel %vm66, %v41, 0
  %70 = vmatprep.subr.bf16.mxu0 0
  %71 = vmatpush1.bf16.msra.mxu0 0
  %72 = vmatprep.subr.bf16.mxu0 0
  %73 = vmatpush1.bf16.msra.mxu0 0
  %74 = vmatprep.subr.bf16.mxu0 0
  %75 = vmatpush1.bf16.msra.mxu0 0
  %76 = vmatprep.subr.bf16.mxu0 0
  %77 = vmatpush1.bf16.msra.mxu0 0
  %78 = vmatprep.subr.bf16.mxu0 0
  %79 = vmatpush1.bf16.msra.mxu0 %v61
  %80 = vmatprep.subr.bf16.mxu0 0
  %81 = vmatpush1.bf16.msra.mxu0 %v60
  %82 = vmatprep.subr.bf16.mxu0 0
  %83 = vmatpush1.bf16.msra.mxu0 %v59
  %84 = vmatprep.subr.bf16.mxu0 0
  %85 = vmatpush1.bf16.msra.mxu0 %v58
  %86 = vmatprep.subr.bf16.mxu0 0
  %87 = vmatpush2.bf16.msra.mxu0 0
  %88 = vmatprep.subr.bf16.mxu0 0
  %89 = vmatpush2.bf16.msra.mxu0 0
  %90 = vmatprep.subr.bf16.mxu0 0
  %91 = vmatpush2.bf16.msra.mxu0 0
  %92 = vmatprep.subr.bf16.mxu0 0
  %93 = vmatpush2.bf16.msra.mxu0 0
  %94 = vmatprep.subr.bf16.mxu0 0
  %95 = vmatpush2.bf16.msra.mxu0 0
  %96 = vmatprep.subr.bf16.mxu0 0
  %97 = vmatpush2.bf16.msra.mxu0 0
  %98 = vmatprep.subr.bf16.mxu0 0
  %99 = vmatpush2.bf16.msra.mxu0 0
  %100 = vmatprep.subr.bf16.mxu0 0
  %101 = vmatpush2.bf16.msra.mxu0 0
  %102 = vmatprep.mubr.bf16.mxu0 0
  %103 = vmatmul.mubr.bf16.gmra.mxu0 %v68
  %v104 = vpop.f32.mrf.mxu0
  %v105 = vadd.f32 0.0, %v104
  %v106 = vpop.f32.mrf.mxu0
  %v107 = vpop.f32.mrf.mxu0
  %v108 = vadd.f32 0.0, %v107
  %v109 = vpop.f32.mrf.mxu0
  %110 = vdwg.mxu0
  %v111 = vadd.f32 %v35, %v105
  %v112 = vadd.f32 %v36, %v108
  %vm113 = vcmask 261120
  %114 = vst.msk [vmem:[#allocation2] sm:$0xff] %vm113, %v111
  %115 = vst.msk [vmem:[#allocation2 + $0x8] sm:$0xff] %vm113, %v112
  // Predicated region
  $region22: #{encoder_decoder_forward.34} parent=0 // pred_check
    %p116 = pneg %p18
  $region23: #{encoder_decoder_forward.34} parent=0 // pred_check_branch
    %118 = sbr.rel (%p116) target = $region25
  $region24: #{encoder_decoder_forward.34} parent=0 // pred_region
    %v119 = vld [vmem:[#allocation2] sm:$0xff]
    %v120 = vld [vmem:[#allocation2 + $0x8] sm:$0xff]
    %v121 = vld [vmem:[%s2] sm:$0x1]
    %v123 = vlaneseq
    %v124 = vshrl.u32 %v123, 7
    %v125 = vsub.s32 0, %v124
    %v126 = vrot.slane %v121, %v125
    %v128 = vadd.f32 %v119, %v126
    %v129 = vadd.f32 %v120, %v126
    %v130 = vld [vmem:[%s3] sm:$0xf]
    %v131 = vld [vmem:[%s3 + $0x4] sm:$0xf]
    %v132 = vunpack.c.l.bf16 %v130
    %v133 = vunpack.c.l.bf16 %v131
    %v134 = vadd.f32 %v128, %v132
    %v135 = vadd.f32 %v129, %v133
    %v136 = vpack.c.bf16 %v135, %v134
    %v138 = vunpack.c.l.b16 %v136
    %v139 = vunpack.c.h.b16 %v136
    %v140 = vpack.c.b16 %v138, %v138
    %v141 = vpack.c.b16 %v139, %v139
    %vm144 = vcmask 257024
    %145 = vst.msk [vmem:[%s4] sm:$0xf] %vm144, %v140
    %146 = vst.msk [vmem:[%s4 + $0x4] sm:$0xf] %vm144, %v141
  $region25: #{encoder_decoder_forward.34} parent=0 // pred_fallthru
    _
  // Predicated region
  $region26: #{encoder_decoder_forward.34} parent=0 // pred_check
    _
  $region27: #{encoder_decoder_forward.34} parent=0 // pred_check_branch
    %148 = sbr.rel (0) target = $region29
  $region28: #{encoder_decoder_forward.34} parent=0 // pred_region
    _
  $region29: #{encoder_decoder_forward.34} parent=0 // pred_fallthru
    _
  // Predicated region
  $region30: #{encoder_decoder_forward.34} parent=0 // pred_check
    _
  $region31: #{encoder_decoder_forward.34} parent=0 // pred_check_branch
    %150 = sbr.rel (0) target = $region33
  $region32: #{encoder_decoder_forward.34} parent=0 // pred_region
    _
  $region33: #{encoder_decoder_forward.34} parent=0 // pred_fallthru
    _

// kernel: encoder_decoder_forward.45
$region0: #{encoder_decoder_forward.45}
  #allocation0 [shape = 'u32[]', space=smem, size = 0x4, offset = 0x4, fixed_abs, tag = 'smem constant byte address 0x4 - core index']
  #allocation1 [shape = 'u32[144,128]{1,0:T(1,128)}', space=vmem, size = 0x12000, scoped, tag = 'internal scratch']
  #allocation2 [shape = 'f32[16,64]{1,0:T(8,128)}', space=vmem, size = 0x2000, scoped, tag = 'scratch operand']
  %s0 = inlined_call_operand.vmem [shape: bf16[16,32], index: 0, kind: input, shape index: {}]
  %s1 = inlined_call_operand.vmem [shape: bf16[32,64], index: 1, kind: input, shape index: {}]
  %s2 = inlined_call_operand.vmem [shape: f32[1,64], index: 2, kind: input, shape index: {}]
  %s3 = inlined_call_operand.vmem [shape: bf16[16,64], index: 3, kind: output, shape index: {}]
  %s4 = sld [smem:[#allocation0]]
  $region30: #{encoder_decoder_forward.45} parent=0
    _
  %s6 = ssub.s32 1, %s4
  %s7 = scalar_select 0, %s6, %s4
  // Predicated region
  $region2: #{encoder_decoder_forward.45} parent=0 // pred_check
    _
  $region3: #{encoder_decoder_forward.45} parent=0 // pred_check_branch
    %9 = sbr.rel (0) target = $region5
  $region4: #{encoder_decoder_forward.45} parent=0 // pred_region
    _
  $region5: #{encoder_decoder_forward.45} parent=0 // pred_fallthru
    _
  // Predicated region
  $region6: #{encoder_decoder_forward.45} parent=0 // pred_check
    _
  $region7: #{encoder_decoder_forward.45} parent=0 // pred_check_branch
    %11 = sbr.rel (0) target = $region9
  $region8: #{encoder_decoder_forward.45} parent=0 // pred_region
    _
  $region9: #{encoder_decoder_forward.45} parent=0 // pred_fallthru
    _
  // Predicated region
  $region10: #{encoder_decoder_forward.45} parent=0 // pred_check
    _
  $region11: #{encoder_decoder_forward.45} parent=0 // pred_check_branch
    %13 = sbr.rel (0) target = $region13
  $region12: #{encoder_decoder_forward.45} parent=0 // pred_region
    _
  $region13: #{encoder_decoder_forward.45} parent=0 // pred_fallthru
    _
  %p15 = scmp.eq.s32.totalorder 0, 0
  // Predicated region
  $region14: #{encoder_decoder_forward.45} parent=0 // pred_check
    %p16 = pneg %p15
  $region15: #{encoder_decoder_forward.45} parent=0 // pred_check_branch
    %18 = sbr.rel (%p16) target = $region17
  $region16: #{encoder_decoder_forward.45} parent=0 // pred_region
    %vm19 = vcmask 523264
    %20 = vst.msk [vmem:[#allocation2] sm:$0xff] %vm19, 0.0
    %21 = vst.msk [vmem:[#allocation2 + $0x8] sm:$0xff] %vm19, 0.0
  $region17: #{encoder_decoder_forward.45} parent=0 // pred_fallthru
    _
  %v22 = vld [vmem:[%s0] sm:$0xf]
  %v23 = vld [vmem:[%s0 + $0x4] sm:$0xf]
  %v24 = vld [vmem:[%s1] sm:$0xf]
  %v25 = vld [vmem:[%s1 + $0x4] sm:$0xf]
  %v26 = vld [vmem:[%s1 + $0x8] sm:$0xf]
  %v27 = vld [vmem:[%s1 + $0xc] sm:$0xf]
  %v28 = vld [vmem:[#allocation2] sm:$0xff]
  %v29 = vld [vmem:[#allocation2 + $0x8] sm:$0xff]
  %v32 = vunpack.c.l.b16 %v22
  %v33 = vunpack.c.l.b16 %v23
  %v34 = vpack.c.b16 %v33, %v32
  %v39 = vunpack.c.l.b16 %v24
  %v40 = vunpack.c.l.b16 %v25
  %v41 = vunpack.c.l.b16 %v26
  %v42 = vunpack.c.l.b16 %v27
  %v43 = vpack.c.b16 %v40, %v39
  %v44 = vpack.c.b16 %v42, %v41
  %vm47 = vcmask 261120
  %v49 = vsel %vm47, %v34, 0
  %51 = vmatprep.subr.bf16.mxu0 0
  %52 = vmatpush1.bf16.msra.mxu0 0
  %53 = vmatprep.subr.bf16.mxu0 0
  %54 = vmatpush1.bf16.msra.mxu0 0
  %55 = vmatprep.subr.bf16.mxu0 0
  %56 = vmatpush1.bf16.msra.mxu0 0
  %57 = vmatprep.subr.bf16.mxu0 0
  %58 = vmatpush1.bf16.msra.mxu0 0
  %59 = vmatprep.subr.bf16.mxu0 0
  %60 = vmatpush1.bf16.msra.mxu0 0
  %61 = vmatprep.subr.bf16.mxu0 0
  %62 = vmatpush1.bf16.msra.mxu0 0
  %63 = vmatprep.subr.bf16.mxu0 0
  %64 = vmatpush1.bf16.msra.mxu0 %v44
  %65 = vmatprep.subr.bf16.mxu0 0
  %66 = vmatpush1.bf16.msra.mxu0 %v43
  %67 = vmatprep.subr.bf16.mxu0 0
  %68 = vmatpush2.bf16.msra.mxu0 0
  %69 = vmatprep.subr.bf16.mxu0 0
  %70 = vmatpush2.bf16.msra.mxu0 0
  %71 = vmatprep.subr.bf16.mxu0 0
  %72 = vmatpush2.bf16.msra.mxu0 0
  %73 = vmatprep.subr.bf16.mxu0 0
  %74 = vmatpush2.bf16.msra.mxu0 0
  %75 = vmatprep.subr.bf16.mxu0 0
  %76 = vmatpush2.bf16.msra.mxu0 0
  %77 = vmatprep.subr.bf16.mxu0 0
  %78 = vmatpush2.bf16.msra.mxu0 0
  %79 = vmatprep.subr.bf16.mxu0 0
  %80 = vmatpush2.bf16.msra.mxu0 0
  %81 = vmatprep.subr.bf16.mxu0 0
  %82 = vmatpush2.bf16.msra.mxu0 0
  %83 = vmatprep.mubr.bf16.mxu0 0
  %84 = vmatmul.mubr.bf16.gmra.mxu0 %v49
  %v85 = vpop.f32.mrf.mxu0
  %v86 = vadd.f32 0.0, %v85
  %v87 = vpop.f32.mrf.mxu0
  %v88 = vpop.f32.mrf.mxu0
  %v89 = vadd.f32 0.0, %v88
  %v90 = vpop.f32.mrf.mxu0
  %91 = vdwg.mxu0
  %v92 = vadd.f32 %v28, %v86
  %v93 = vadd.f32 %v29, %v89
  %vm94 = vcmask 523264
  %95 = vst.msk [vmem:[#allocation2] sm:$0xff] %vm94, %v92
  %96 = vst.msk [vmem:[#allocation2 + $0x8] sm:$0xff] %vm94, %v93
  // Predicated region
  $region18: #{encoder_decoder_forward.45} parent=0 // pred_check
    %p97 = pneg %p15
  $region19: #{encoder_decoder_forward.45} parent=0 // pred_check_branch
    %99 = sbr.rel (%p97) target = $region21
  $region20: #{encoder_decoder_forward.45} parent=0 // pred_region
    %v100 = vld [vmem:[#allocation2] sm:$0xff]
    %v101 = vld [vmem:[#allocation2 + $0x8] sm:$0xff]
    %v102 = vld [vmem:[%s2] sm:$0x1]
    %v104 = vlaneseq
    %v105 = vshrl.u32 %v104, 7
    %v106 = vsub.s32 0, %v105
    %v107 = vrot.slane %v102, %v106
    %v109 = vadd.f32 %v100, %v107
    %v110 = vadd.f32 %v101, %v107
    %v111 = vpack.c.bf16 %v110, %v109
    %v113 = vunpack.c.l.b16 %v111
    %v114 = vunpack.c.h.b16 %v111
    %v115 = vpack.c.b16 %v113, %v113
    %v116 = vpack.c.b16 %v114, %v114
    %vm119 = vcmask 519168
    %120 = vst.msk [vmem:[%s3] sm:$0xf] %vm119, %v115
    %121 = vst.msk [vmem:[%s3 + $0x4] sm:$0xf] %vm119, %v116
  $region21: #{encoder_decoder_forward.45} parent=0 // pred_fallthru
    _
  // Predicated region
  $region22: #{encoder_decoder_forward.45} parent=0 // pred_check
    _
  $region23: #{encoder_decoder_forward.45} parent=0 // pred_check_branch
    %123 = sbr.rel (0) target = $region25
  $region24: #{encoder_decoder_forward.45} parent=0 // pred_region
    _
  $region25: #{encoder_decoder_forward.45} parent=0 // pred_fallthru
    _
  // Predicated region
  $region26: #{encoder_decoder_forward.45} parent=0 // pred_check
    _
  $region27: #{encoder_decoder_forward.45} parent=0 // pred_check_branch
    %125 = sbr.rel (0) target = $region29
  $region28: #{encoder_decoder_forward.45} parent=0 // pred_region
    _
  $region29: #{encoder_decoder_forward.45} parent=0 // pred_fallthru
    _

// kernel: encoder_decoder_forward.42
$region0: #{encoder_decoder_forward.42}
  #allocation0 [shape = 'u32[]', space=smem, size = 0x4, offset = 0x4, fixed_abs, tag = 'smem constant byte address 0x4 - core index']
  #allocation1 [shape = 'u32[144,128]{1,0:T(1,128)}', space=vmem, size = 0x12000, scoped, tag = 'internal scratch']
  %s0 = inlined_call_operand.vmem [shape: bf16[2,8,96], index: 0, kind: input, shape index: {}]
  %s1 = inlined_call_operand.vmem [shape: bf16[2,8,32], index: 1, kind: output, shape index: {}]
  %s2 = sld [smem:[#allocation0]]
  $region37: #{encoder_decoder_forward.42} parent=0
    _
  %s4 = ssub.s32 1, %s2
  %s5 = scalar_select 0, %s4, %s2
  loop: start=0, step=1, limit=4
  $region2: #{encoder_decoder_forward.42} parent=0 // loop_pre_header
    _
  $region3: #{encoder_decoder_forward.42} parent=0 // loop_header
    %s7 = sphi 0, %s11
    %p8 = scmp.ge.s32.totalorder %s7, 4
    %s17 = sphi 0, %s19
    %s20 = sphi 0, %s17
    %s21 = sphi 0, %s20
    %s37 = sphi 0, %s21
    %s43 = sphi 0, %s45
    %s46 = sphi 0, %s43
    %s47 = sphi 0, %s46
    %s63 = sphi 0, %s47
  $region4: #{encoder_decoder_forward.42} parent=0 // loop_header_branch
    %10 = sbr.rel (%p8) target = $region8
  $region5: #{encoder_decoder_forward.42} parent=0 // loop_body
    %s12 = ssub.s32 %s7, 1
    %s13 = ssub.s32 %s7, 2
    %s14 = sadd.s32 %s7, 1
    %s15 = ssub.s32 %s7, %s14
    %p16 = scmp.eq.s32.totalorder %s15, 0
    %s18 = sadd.s32 %s17, 1
    %s19 = scalar_select %p16, %s17, %s18
    %p22 = pneg %p16
    %p23 = scmp.eq.s32.totalorder %s7, 1
    %p24 = por %p22, %p23
    %p25 = scmp.ne.s32.totalorder %s17, %s20
    %p26 = scmp.eq.s32.totalorder %s7, 0
    %p27 = por %p25, %p26
    %p28 = scmp.ne.s32.totalorder %s17, %s20
    %p29 = scmp.eq.s32.totalorder %s12, 1
    %p30 = por %p28, %p29
    %p31 = scmp.ne.s32.totalorder %s20, %s21
    %p32 = scmp.eq.s32.totalorder %s12, 0
    %p33 = por %p31, %p32
    %p34 = scmp.ne.s32.totalorder %s20, %s21
    %p35 = scmp.eq.s32.totalorder %s13, 1
    %p36 = por %p34, %p35
    %p38 = scmp.ne.s32.totalorder %s21, %s37
    %p39 = scmp.eq.s32.totalorder %s13, 0
    %p40 = por %p38, %p39
    %s41 = ssub.s32 %s7, %s14
    %p42 = scmp.eq.s32.totalorder %s41, 0
    %s44 = sadd.s32 %s43, 1
    %s45 = scalar_select %p42, %s43, %s44
    %p48 = pneg %p42
    %p49 = scmp.eq.s32.totalorder %s7, 1
    %p50 = por %p48, %p49
    %p51 = scmp.ne.s32.totalorder %s43, %s46
    %p52 = scmp.eq.s32.totalorder %s7, 0
    %p53 = por %p51, %p52
    %p54 = scmp.ne.s32.totalorder %s43, %s46
    %p55 = scmp.eq.s32.totalorder %s12, 1
    %p56 = por %p54, %p55
    %p57 = scmp.ne.s32.totalorder %s46, %s47
    %p58 = scmp.eq.s32.totalorder %s12, 0
    %p59 = por %p57, %p58
    %p60 = scmp.ne.s32.totalorder %s46, %s47
    %p61 = scmp.eq.s32.totalorder %s13, 1
    %p62 = por %p60, %p61
    %p64 = scmp.ne.s32.totalorder %s47, %s63
    %p65 = scmp.eq.s32.totalorder %s13, 0
    %p66 = por %p64, %p65
    %p67 = scmp.le.s32.totalorder 1, %s7
    %p68 = scmp.lt.s32.totalorder %s7, 3
    %p69 = pnand %p67, %p68
    %p70 = pneg %p69
    // Predicated region
    $region9: #{encoder_decoder_forward.42} parent=5 // pred_check
      _
    $region10: #{encoder_decoder_forward.42} parent=5 // pred_check_branch
      %72 = sbr.rel (%p69) target = $region12
    $region11: #{encoder_decoder_forward.42} parent=5 // pred_region
      %s73 = ssub.s32 %s7, 1
    $region12: #{encoder_decoder_forward.42} parent=5 // pred_fallthru
      _
    %p74 = scmp.lt.s32.totalorder %s7, 2
    // Predicated region
    $region13: #{encoder_decoder_forward.42} parent=5 // pred_check
      %p75 = pneg %p74
    $region14: #{encoder_decoder_forward.42} parent=5 // pred_check_branch
      %77 = sbr.rel (%p75) target = $region16
    $region15: #{encoder_decoder_forward.42} parent=5 // pred_region
      // Predicated region
      $region17: #{encoder_decoder_forward.42} parent=15 // pred_check
        %p78 = pneg %p27
      $region18: #{encoder_decoder_forward.42} parent=15 // pred_check_branch
        %80 = sbr.rel (%p78) target = $region20
      $region19: #{encoder_decoder_forward.42} parent=15 // pred_region
        %p81 = scmp.lt.s32.totalorder %s7, 1
        %s82 = scalar_select %p81, %s7, 1
        %s83 = smul.addr %s82, 4
        %s84 = scalar_lea.vmem %s0, %s83
      $region20: #{encoder_decoder_forward.42} parent=15 // pred_fallthru
        _
    $region16: #{encoder_decoder_forward.42} parent=5 // pred_fallthru
      _
    %p85 = scmp.le.s32.totalorder 1, %s7
    %p86 = scmp.lt.s32.totalorder %s7, 3
    %p87 = pnand %p85, %p86
    %p88 = pneg %p87
    // Predicated region
    $region21: #{encoder_decoder_forward.42} parent=5 // pred_check
      _
    $region22: #{encoder_decoder_forward.42} parent=5 // pred_check_branch
      %90 = sbr.rel (%p87) target = $region24
    $region23: #{encoder_decoder_forward.42} parent=5 // pred_region
      %s91 = ssub.s32 %s7, 1
      %p92 = scmp.lt.s32.totalorder %s12, 1
      %s93 = scalar_select %p92, %s12, 1
      %s94 = smul.addr %s93, 4
      %s95 = scalar_lea.vmem %s0, %s94
      %p96 = pneg %p33
      %p97 = pneg %p30
      %p98 = pneg %p59
      %p99 = pneg %p56
      %p100 = scmp.lt.s32.totalorder %s12, 1
      %s101 = scalar_select %p100, %s12, 1
      %s102 = smul.addr %s101, 4
      %s103 = scalar_lea.vmem %s1, %s102
      %p104 = scmp.lt.s32.totalorder %s12, 1
      %s105 = scalar_select %p104, %s12, 1
      %s106 = smul.addr %s105, 4
      %s107 = scalar_lea.vmem %s0, %s106
      %p108 = scmp.lt.s32.totalorder %s12, 1
      %s109 = scalar_select %p108, %s12, 1
      %s110 = smul.addr %s109, 4
      %s111 = scalar_lea.vmem %s1, %s110
      %v113 = vld [vmem:[%s107] sm:$0xf]
      %v114 = vunpack.c.l.bf16 %v113
      %v115 = vlaneseq
      %v116 = vshrl.u32 %v115, 7
      %v117 = vlaneseq
      %v118 = vand.u32 %v117, 127
      %vm119 = vcmp.ge.s32.totalorder %v116, %v118
      %v120 = vsel %vm119, 0.0, -1e+09
      %v121 = vpack.c.bf16 %v114, %v114
      %123 = vrot.lane.b32.xlu0 %v121, 96
      %v124 = vpop.permute.xlu0 %123
      %vm125 = vcmask 64512
      %v127 = vsel %vm125, %v121, 0
      %v130 = vsel %vm125, %v124, 0
      %132 = vmatprep.subr.bf16.mxu0 0
      %133 = vmatpush1.bf16.xpose.msra.mxu0 0
      %134 = vmatprep.subr.bf16.mxu0 0
      %135 = vmatpush1.bf16.xpose.msra.mxu0 0
      %136 = vmatprep.subr.bf16.mxu0 0
      %137 = vmatpush1.bf16.xpose.msra.mxu0 0
      %138 = vmatprep.subr.bf16.mxu0 0
      %139 = vmatpush1.bf16.xpose.msra.mxu0 0
      %140 = vmatprep.subr.bf16.mxu0 0
      %141 = vmatpush1.bf16.xpose.msra.mxu0 0
      %142 = vmatprep.subr.bf16.mxu0 0
      %143 = vmatpush1.bf16.xpose.msra.mxu0 0
      %144 = vmatprep.subr.bf16.mxu0 0
      %145 = vmatpush1.bf16.xpose.msra.mxu0 0
      %146 = vmatprep.subr.bf16.mxu0 0
      %147 = vmatpush1.bf16.xpose.msra.mxu0 %v130
      %148 = vmatprep.subr.bf16.mxu0 0
      %149 = vmatpush2.bf16.xpose.msra.mxu0 0
      %150 = vmatprep.subr.bf16.mxu0 0
      %151 = vmatpush2.bf16.xpose.msra.mxu0 0
      %152 = vmatprep.subr.bf16.mxu0 0
      %153 = vmatpush2.bf16.xpose.msra.mxu0 0
      %154 = vmatprep.subr.bf16.mxu0 0
      %155 = vmatpush2.bf16.xpose.msra.mxu0 0
      %156 = vmatprep.subr.bf16.mxu0 0
      %157 = vmatpush2.bf16.xpose.msra.mxu0 0
      %158 = vmatprep.subr.bf16.mxu0 0
      %159 = vmatpush2.bf16.xpose.msra.mxu0 0
      %160 = vmatprep.subr.bf16.mxu0 0
      %161 = vmatpush2.bf16.xpose.msra.mxu0 0
      %162 = vmatprep.subr.bf16.mxu0 0
      %163 = vmatpush2.bf16.xpose.msra.mxu0 0
      %164 = vmatprep.mubr.bf16.mxu0 0
      %165 = vmatmul.mubr.bf16.gmra.mxu0 %v127
      %v166 = vpop.f32.mrf.mxu0
      %v167 = vadd.f32 0.0, %v166
      %v168 = vpop.f32.mrf.mxu0
      %v169 = vpop.f32.mrf.mxu0
      %v170 = vpop.f32.mrf.mxu0
      %171 = vdwg.mxu0
      %v172 = vmul.f32 %v167, 0.35355338
      %v173 = vadd.f32 %v172, %v120
      %v174 = vsel %vm125, %v173, -inf
      %175 = vmax.xlane.f32.xlu0 %v174
      %v176 = vpop.xlane.xlu0 %175
      %v177 = vsub.f32 %v173, %v176
      %v178 = vmul.f32 %v177, 1.442695
      %v179 = vpow.pop %v178
      %v180 = vsel %vm125, %v179, 0.0
      %181 = vadd.xlane.f32.xlu0 %v180
      %v182 = vpop.xlane.xlu0 %181
      %v183 = vpack.c.bf16 %v179, %v179
      %184 = vrot.lane.b32.xlu0 %v121, 64
      %v185 = vpop.permute.xlu0 %184
      %v187 = vsel %vm125, %v183, 0
      %vm189 = vcmask 1043456
      %v191 = vsel %vm189, %v185, 0
      %193 = vmatprep.subr.bf16.mxu0 0
      %194 = vmatpush1.bf16.msra.mxu0 0
      %195 = vmatprep.subr.bf16.mxu0 0
      %196 = vmatpush1.bf16.msra.mxu0 0
      %197 = vmatprep.subr.bf16.mxu0 0
      %198 = vmatpush1.bf16.msra.mxu0 0
      %199 = vmatprep.subr.bf16.mxu0 0
      %200 = vmatpush1.bf16.msra.mxu0 0
      %201 = vmatprep.subr.bf16.mxu0 0
      %202 = vmatpush1.bf16.msra.mxu0 0
      %203 = vmatprep.subr.bf16.mxu0 0
      %204 = vmatpush1.bf16.msra.mxu0 0
      %205 = vmatprep.subr.bf16.mxu0 0
      %206 = vmatpush1.bf16.msra.mxu0 0
      %207 = vmatprep.subr.bf16.mxu0 0
      %208 = vmatpush1.bf16.msra.mxu0 %v191
      %209 = vmatprep.subr.bf16.mxu0 0
      %210 = vmatpush2.bf16.msra.mxu0 0
      %211 = vmatprep.subr.bf16.mxu0 0
      %212 = vmatpush2.bf16.msra.mxu0 0
      %213 = vmatprep.subr.bf16.mxu0 0
      %214 = vmatpush2.bf16.msra.mxu0 0
      %215 = vmatprep.subr.bf16.mxu0 0
      %216 = vmatpush2.bf16.msra.mxu0 0
      %217 = vmatprep.subr.bf16.mxu0 0
      %218 = vmatpush2.bf16.msra.mxu0 0
      %219 = vmatprep.subr.bf16.mxu0 0
      %220 = vmatpush2.bf16.msra.mxu0 0
      %221 = vmatprep.subr.bf16.mxu0 0
      %222 = vmatpush2.bf16.msra.mxu0 0
      %223 = vmatprep.subr.bf16.mxu0 0
      %224 = vmatpush2.bf16.msra.mxu0 0
      %225 = vmatprep.mubr.bf16.mxu0 0
      %226 = vmatmul.mubr.bf16.gmra.mxu0 %v187
      %v227 = vpop.f32.mrf.mxu0
      %v228 = vadd.f32 0.0, %v227
      %v229 = vpop.f32.mrf.mxu0
      %v230 = vpop.f32.mrf.mxu0
      %v231 = vpop.f32.mrf.mxu0
      %232 = vdwg.mxu0
      %v233 = vrcp.pop %v182
      %v234 = vmul.f32 %v228, %v233
      %235 = vrot.lane.b32.xlu0 %v121, 120
      %v236 = vpop.permute.xlu0 %235
      %237 = vrot.lane.b32.xlu0 %v121, 88
      %v238 = vpop.permute.xlu0 %237
      %v240 = vsel %vm125, %v236, 0
      %v243 = vsel %vm125, %v238, 0
      %245 = vmatprep.subr.bf16.mxu0 0
      %246 = vmatpush1.bf16.xpose.msra.mxu0 0
      %247 = vmatprep.subr.bf16.mxu0 0
      %248 = vmatpush1.bf16.xpose.msra.mxu0 0
      %249 = vmatprep.subr.bf16.mxu0 0
      %250 = vmatpush1.bf16.xpose.msra.mxu0 0
      %251 = vmatprep.subr.bf16.mxu0 0
      %252 = vmatpush1.bf16.xpose.msra.mxu0 0
      %253 = vmatprep.subr.bf16.mxu0 0
      %254 = vmatpush1.bf16.xpose.msra.mxu0 0
      %255 = vmatprep.subr.bf16.mxu0 0
      %256 = vmatpush1.bf16.xpose.msra.mxu0 0
      %257 = vmatprep.subr.bf16.mxu0 0
      %258 = vmatpush1.bf16.xpose.msra.mxu0 0
      %259 = vmatprep.subr.bf16.mxu0 0
      %260 = vmatpush1.bf16.xpose.msra.mxu0 %v243
      %261 = vmatprep.subr.bf16.mxu0 0
      %262 = vmatpush2.bf16.xpose.msra.mxu0 0
      %263 = vmatprep.subr.bf16.mxu0 0
      %264 = vmatpush2.bf16.xpose.msra.mxu0 0
      %265 = vmatprep.subr.bf16.mxu0 0
      %266 = vmatpush2.bf16.xpose.msra.mxu0 0
      %267 = vmatprep.subr.bf16.mxu0 0
      %268 = vmatpush2.bf16.xpose.msra.mxu0 0
      %269 = vmatprep.subr.bf16.mxu0 0
      %270 = vmatpush2.bf16.xpose.msra.mxu0 0
      %271 = vmatprep.subr.bf16.mxu0 0
      %272 = vmatpush2.bf16.xpose.msra.mxu0 0
      %273 = vmatprep.subr.bf16.mxu0 0
      %274 = vmatpush2.bf16.xpose.msra.mxu0 0
      %275 = vmatprep.subr.bf16.mxu0 0
      %276 = vmatpush2.bf16.xpose.msra.mxu0 0
      %277 = vmatprep.mubr.bf16.mxu0 0
      %278 = vmatmul.mubr.bf16.gmra.mxu0 %v240
      %v279 = vpop.f32.mrf.mxu0
      %v280 = vadd.f32 0.0, %v279
      %v281 = vpop.f32.mrf.mxu0
      %v282 = vpop.f32.mrf.mxu0
      %v283 = vpop.f32.mrf.mxu0
      %284 = vdwg.mxu0
      %v285 = vmul.f32 %v280, 0.35355338
      %v286 = vadd.f32 %v285, %v120
      %v287 = vsel %vm125, %v286, -inf
      %288 = vmax.xlane.f32.xlu0 %v287
      %v289 = vpop.xlane.xlu0 %288
      %v290 = vsub.f32 %v286, %v289
      %v291 = vmul.f32 %v290, 1.442695
      %v292 = vpow.pop %v291
      %v293 = vsel %vm125, %v292, 0.0
      %294 = vadd.xlane.f32.xlu0 %v293
      %v295 = vpop.xlane.xlu0 %294
      %v296 = vpack.c.bf16 %v292, %v292
      %297 = vrot.lane.b32.xlu0 %v121, 56
      %v298 = vpop.permute.xlu0 %297
      %v300 = vsel %vm125, %v296, 0
      %v303 = vsel %vm189, %v298, 0
      %305 = vmatprep.subr.bf16.mxu0 0
      %306 = vmatpush1.bf16.msra.mxu0 0
      %307 = vmatprep.subr.bf16.mxu0 0
      %308 = vmatpush1.bf16.msra.mxu0 0
      %309 = vmatprep.subr.bf16.mxu0 0
      %310 = vmatpush1.bf16.msra.mxu0 0
      %311 = vmatprep.subr.bf16.mxu0 0
      %312 = vmatpush1.bf16.msra.mxu0 0
      %313 = vmatprep.subr.bf16.mxu0 0
      %314 = vmatpush1.bf16.msra.mxu0 0
      %315 = vmatprep.subr.bf16.mxu0 0
      %316 = vmatpush1.bf16.msra.mxu0 0
      %317 = vmatprep.subr.bf16.mxu0 0
      %318 = vmatpush1.bf16.msra.mxu0 0
      %319 = vmatprep.subr.bf16.mxu0 0
      %320 = vmatpush1.bf16.msra.mxu0 %v303
      %321 = vmatprep.subr.bf16.mxu0 0
      %322 = vmatpush2.bf16.msra.mxu0 0
      %323 = vmatprep.subr.bf16.mxu0 0
      %324 = vmatpush2.bf16.msra.mxu0 0
      %325 = vmatprep.subr.bf16.mxu0 0
      %326 = vmatpush2.bf16.msra.mxu0 0
      %327 = vmatprep.subr.bf16.mxu0 0
      %328 = vmatpush2.bf16.msra.mxu0 0
      %329 = vmatprep.subr.bf16.mxu0 0
      %330 = vmatpush2.bf16.msra.mxu0 0
      %331 = vmatprep.subr.bf16.mxu0 0
      %332 = vmatpush2.bf16.msra.mxu0 0
      %333 = vmatprep.subr.bf16.mxu0 0
      %334 = vmatpush2.bf16.msra.mxu0 0
      %335 = vmatprep.subr.bf16.mxu0 0
      %336 = vmatpush2.bf16.msra.mxu0 0
      %337 = vmatprep.mubr.bf16.mxu0 0
      %338 = vmatmul.mubr.bf16.gmra.mxu0 %v300
      %v339 = vpop.f32.mrf.mxu0
      %v340 = vadd.f32 0.0, %v339
      %v341 = vpop.f32.mrf.mxu0
      %v342 = vpop.f32.mrf.mxu0
      %v343 = vpop.f32.mrf.mxu0
      %344 = vdwg.mxu0
      %v345 = vrcp.pop %v295
      %v346 = vmul.f32 %v340, %v345
      %347 = vrot.lane.b32.xlu0 %v121, 112
      %v348 = vpop.permute.xlu0 %347
      %349 = vrot.lane.b32.xlu0 %v121, 80
      %v350 = vpop.permute.xlu0 %349
      %v352 = vsel %vm125, %v348, 0
      %v355 = vsel %vm125, %v350, 0
      %357 = vmatprep.subr.bf16.mxu0 0
      %358 = vmatpush1.bf16.xpose.msra.mxu0 0
      %359 = vmatprep.subr.bf16.mxu0 0
      %360 = vmatpush1.bf16.xpose.msra.mxu0 0
      %361 = vmatprep.subr.bf16.mxu0 0
      %362 = vmatpush1.bf16.xpose.msra.mxu0 0
      %363 = vmatprep.subr.bf16.mxu0 0
      %364 = vmatpush1.bf16.xpose.msra.mxu0 0
      %365 = vmatprep.subr.bf16.mxu0 0
      %366 = vmatpush1.bf16.xpose.msra.mxu0 0
      %367 = vmatprep.subr.bf16.mxu0 0
      %368 = vmatpush1.bf16.xpose.msra.mxu0 0
      %369 = vmatprep.subr.bf16.mxu0 0
      %370 = vmatpush1.bf16.xpose.msra.mxu0 0
      %371 = vmatprep.subr.bf16.mxu0 0
      %372 = vmatpush1.bf16.xpose.msra.mxu0 %v355
      %373 = vmatprep.subr.bf16.mxu0 0
      %374 = vmatpush2.bf16.xpose.msra.mxu0 0
      %375 = vmatprep.subr.bf16.mxu0 0
      %376 = vmatpush2.bf16.xpose.msra.mxu0 0
      %377 = vmatprep.subr.bf16.mxu0 0
      %378 = vmatpush2.bf16.xpose.msra.mxu0 0
      %379 = vmatprep.subr.bf16.mxu0 0
      %380 = vmatpush2.bf16.xpose.msra.mxu0 0
      %381 = vmatprep.subr.bf16.mxu0 0
      %382 = vmatpush2.bf16.xpose.msra.mxu0 0
      %383 = vmatprep.subr.bf16.mxu0 0
      %384 = vmatpush2.bf16.xpose.msra.mxu0 0
      %385 = vmatprep.subr.bf16.mxu0 0
      %386 = vmatpush2.bf16.xpose.msra.mxu0 0
      %387 = vmatprep.subr.bf16.mxu0 0
      %388 = vmatpush2.bf16.xpose.msra.mxu0 0
      %389 = vmatprep.mubr.bf16.mxu0 0
      %390 = vmatmul.mubr.bf16.gmra.mxu0 %v352
      %v391 = vpop.f32.mrf.mxu0
      %v392 = vadd.f32 0.0, %v391
      %v393 = vpop.f32.mrf.mxu0
      %v394 = vpop.f32.mrf.mxu0
      %v395 = vpop.f32.mrf.mxu0
      %396 = vdwg.mxu0
      %v397 = vmul.f32 %v392, 0.35355338
      %v398 = vadd.f32 %v397, %v120
      %v399 = vsel %vm125, %v398, -inf
      %400 = vmax.xlane.f32.xlu0 %v399
      %v401 = vpop.xlane.xlu0 %400
      %v402 = vsub.f32 %v398, %v401
      %v403 = vmul.f32 %v402, 1.442695
      %v404 = vpow.pop %v403
      %v405 = vsel %vm125, %v404, 0.0
      %406 = vadd.xlane.f32.xlu0 %v405
      %v407 = vpop.xlane.xlu0 %406
      %v408 = vpack.c.bf16 %v404, %v404
      %409 = vrot.lane.b32.xlu0 %v121, 48
      %v410 = vpop.permute.xlu0 %409
      %v412 = vsel %vm125, %v408, 0
      %v415 = vsel %vm189, %v410, 0
      %417 = vmatprep.subr.bf16.mxu0 0
      %418 = vmatpush1.bf16.msra.mxu0 0
      %419 = vmatprep.subr.bf16.mxu0 0
      %420 = vmatpush1.bf16.msra.mxu0 0
      %421 = vmatprep.subr.bf16.mxu0 0
      %422 = vmatpush1.bf16.msra.mxu0 0
      %423 = vmatprep.subr.bf16.mxu0 0
      %424 = vmatpush1.bf16.msra.mxu0 0
      %425 = vmatprep.subr.bf16.mxu0 0
      %426 = vmatpush1.bf16.msra.mxu0 0
      %427 = vmatprep.subr.bf16.mxu0 0
      %428 = vmatpush1.bf16.msra.mxu0 0
      %429 = vmatprep.subr.bf16.mxu0 0
      %430 = vmatpush1.bf16.msra.mxu0 0
      %431 = vmatprep.subr.bf16.mxu0 0
      %432 = vmatpush1.bf16.msra.mxu0 %v415
      %433 = vmatprep.subr.bf16.mxu0 0
      %434 = vmatpush2.bf16.msra.mxu0 0
      %435 = vmatprep.subr.bf16.mxu0 0
      %436 = vmatpush2.bf16.msra.mxu0 0
      %437 = vmatprep.subr.bf16.mxu0 0
      %438 = vmatpush2.bf16.msra.mxu0 0
      %439 = vmatprep.subr.bf16.mxu0 0
      %440 = vmatpush2.bf16.msra.mxu0 0
      %441 = vmatprep.subr.bf16.mxu0 0
      %442 = vmatpush2.bf16.msra.mxu0 0
      %443 = vmatprep.subr.bf16.mxu0 0
      %444 = vmatpush2.bf16.msra.mxu0 0
      %445 = vmatprep.subr.bf16.mxu0 0
      %446 = vmatpush2.bf16.msra.mxu0 0
      %447 = vmatprep.subr.bf16.mxu0 0
      %448 = vmatpush2.bf16.msra.mxu0 0
      %449 = vmatprep.mubr.bf16.mxu0 0
      %450 = vmatmul.mubr.bf16.gmra.mxu0 %v412
      %v451 = vpop.f32.mrf.mxu0
      %v452 = vadd.f32 0.0, %v451
      %v453 = vpop.f32.mrf.mxu0
      %v454 = vpop.f32.mrf.mxu0
      %v455 = vpop.f32.mrf.mxu0
      %456 = vdwg.mxu0
      %v457 = vrcp.pop %v407
      %v458 = vmul.f32 %v452, %v457
      %459 = vrot.lane.b32.xlu0 %v121, 104
      %v460 = vpop.permute.xlu0 %459
      %461 = vrot.lane.b32.xlu0 %v121, 72
      %v462 = vpop.permute.xlu0 %461
      %v464 = vsel %vm125, %v460, 0
      %v467 = vsel %vm125, %v462, 0
      %469 = vmatprep.subr.bf16.mxu0 0
      %470 = vmatpush1.bf16.xpose.msra.mxu0 0
      %471 = vmatprep.subr.bf16.mxu0 0
      %472 = vmatpush1.bf16.xpose.msra.mxu0 0
      %473 = vmatprep.subr.bf16.mxu0 0
      %474 = vmatpush1.bf16.xpose.msra.mxu0 0
      %475 = vmatprep.subr.bf16.mxu0 0
      %476 = vmatpush1.bf16.xpose.msra.mxu0 0
      %477 = vmatprep.subr.bf16.mxu0 0
      %478 = vmatpush1.bf16.xpose.msra.mxu0 0
      %479 = vmatprep.subr.bf16.mxu0 0
      %480 = vmatpush1.bf16.xpose.msra.mxu0 0
      %481 = vmatprep.subr.bf16.mxu0 0
      %482 = vmatpush1.bf16.xpose.msra.mxu0 0
      %483 = vmatprep.subr.bf16.mxu0 0
      %484 = vmatpush1.bf16.xpose.msra.mxu0 %v467
      %485 = vmatprep.subr.bf16.mxu0 0
      %486 = vmatpush2.bf16.xpose.msra.mxu0 0
      %487 = vmatprep.subr.bf16.mxu0 0
      %488 = vmatpush2.bf16.xpose.msra.mxu0 0
      %489 = vmatprep.subr.bf16.mxu0 0
      %490 = vmatpush2.bf16.xpose.msra.mxu0 0
      %491 = vmatprep.subr.bf16.mxu0 0
      %492 = vmatpush2.bf16.xpose.msra.mxu0 0
      %493 = vmatprep.subr.bf16.mxu0 0
      %494 = vmatpush2.bf16.xpose.msra.mxu0 0
      %495 = vmatprep.subr.bf16.mxu0 0
      %496 = vmatpush2.bf16.xpose.msra.mxu0 0
      %497 = vmatprep.subr.bf16.mxu0 0
      %498 = vmatpush2.bf16.xpose.msra.mxu0 0
      %499 = vmatprep.subr.bf16.mxu0 0
      %500 = vmatpush2.bf16.xpose.msra.mxu0 0
      %501 = vmatprep.mubr.bf16.mxu0 0
      %502 = vmatmul.mubr.bf16.gmra.mxu0 %v464
      %v503 = vpop.f32.mrf.mxu0
      %v504 = vadd.f32 0.0, %v503
      %v505 = vpop.f32.mrf.mxu0
      %v506 = vpop.f32.mrf.mxu0
      %v507 = vpop.f32.mrf.mxu0
      %508 = vdwg.mxu0
      %v509 = vmul.f32 %v504, 0.35355338
      %v510 = vadd.f32 %v509, %v120
      %v511 = vsel %vm125, %v510, -inf
      %512 = vmax.xlane.f32.xlu0 %v511
      %v513 = vpop.xlane.xlu0 %512
      %v514 = vsub.f32 %v510, %v513
      %v515 = vmul.f32 %v514, 1.442695
      %v516 = vpow.pop %v515
      %v517 = vsel %vm125, %v516, 0.0
      %518 = vadd.xlane.f32.xlu0 %v517
      %v519 = vpop.xlane.xlu0 %518
      %v520 = vpack.c.bf16 %v516, %v516
      %521 = vrot.lane.b32.xlu0 %v121, 40
      %v522 = vpop.permute.xlu0 %521
      %v524 = vsel %vm125, %v520, 0
      %v527 = vsel %vm189, %v522, 0
      %529 = vmatprep.subr.bf16.mxu0 0
      %530 = vmatpush1.bf16.msra.mxu0 0
      %531 = vmatprep.subr.bf16.mxu0 0
      %532 = vmatpush1.bf16.msra.mxu0 0
      %533 = vmatprep.subr.bf16.mxu0 0
      %534 = vmatpush1.bf16.msra.mxu0 0
      %535 = vmatprep.subr.bf16.mxu0 0
      %536 = vmatpush1.bf16.msra.mxu0 0
      %537 = vmatprep.subr.bf16.mxu0 0
      %538 = vmatpush1.bf16.msra.mxu0 0
      %539 = vmatprep.subr.bf16.mxu0 0
      %540 = vmatpush1.bf16.msra.mxu0 0
      %541 = vmatprep.subr.bf16.mxu0 0
      %542 = vmatpush1.bf16.msra.mxu0 0
      %543 = vmatprep.subr.bf16.mxu0 0
      %544 = vmatpush1.bf16.msra.mxu0 %v527
      %545 = vmatprep.subr.bf16.mxu0 0
      %546 = vmatpush2.bf16.msra.mxu0 0
      %547 = vmatprep.subr.bf16.mxu0 0
      %548 = vmatpush2.bf16.msra.mxu0 0
      %549 = vmatprep.subr.bf16.mxu0 0
      %550 = vmatpush2.bf16.msra.mxu0 0
      %551 = vmatprep.subr.bf16.mxu0 0
      %552 = vmatpush2.bf16.msra.mxu0 0
      %553 = vmatprep.subr.bf16.mxu0 0
      %554 = vmatpush2.bf16.msra.mxu0 0
      %555 = vmatprep.subr.bf16.mxu0 0
      %556 = vmatpush2.bf16.msra.mxu0 0
      %557 = vmatprep.subr.bf16.mxu0 0
      %558 = vmatpush2.bf16.msra.mxu0 0
      %559 = vmatprep.subr.bf16.mxu0 0
      %560 = vmatpush2.bf16.msra.mxu0 0
      %561 = vmatprep.mubr.bf16.mxu0 0
      %562 = vmatmul.mubr.bf16.gmra.mxu0 %v524
      %v563 = vpop.f32.mrf.mxu0
      %v564 = vadd.f32 0.0, %v563
      %v565 = vpop.f32.mrf.mxu0
      %v566 = vpop.f32.mrf.mxu0
      %v567 = vpop.f32.mrf.mxu0
      %568 = vdwg.mxu0
      %v569 = vrcp.pop %v519
      %v570 = vmul.f32 %v564, %v569
      %572 = vrot.lane.b32.xlu0 %v346, 8
      %v573 = vpop.permute.xlu0 %572
      %576 = vrot.lane.b32.xlu0 %v458, 16
      %v577 = vpop.permute.xlu0 %576
      %580 = vrot.lane.b32.xlu0 %v570, 24
      %v581 = vpop.permute.xlu0 %580
      %v583 = vsel %vm125, %v234, %v573
      %vm584 = vcmask 130048
      %v585 = vsel %vm584, %v583, %v577
      %vm586 = vcmask 195584
      %v587 = vsel %vm586, %v585, %v581
      %v588 = vpack.c.bf16 %v587, %v587
      %vm589 = vcmask 257024
      %590 = vst.msk [vmem:[%s111] sm:$0xf] %vm589, %v588
      %p591 = scmp.lt.s32.totalorder %s12, 1
      %s592 = scalar_select %p591, %s12, 1
      %s593 = smul.addr %s592, 4
      %s594 = scalar_lea.vmem %s1, %s593
      // Predicated region
      $region25: #{encoder_decoder_forward.42} parent=23 // pred_check
        %p595 = pneg %p56
      $region26: #{encoder_decoder_forward.42} parent=23 // pred_check_branch
        %597 = sbr.rel (%p595) target = $region28
      $region27: #{encoder_decoder_forward.42} parent=23 // pred_region
        _
      $region28: #{encoder_decoder_forward.42} parent=23 // pred_fallthru
        _
    $region24: #{encoder_decoder_forward.42} parent=5 // pred_fallthru
      _
    %p598 = scmp.le.s32.totalorder 2, %s7
    // Predicated region
    $region29: #{encoder_decoder_forward.42} parent=5 // pred_check
      %p599 = pneg %p598
    $region30: #{encoder_decoder_forward.42} parent=5 // pred_check_branch
      %601 = sbr.rel (%p599) target = $region32
    $region31: #{encoder_decoder_forward.42} parent=5 // pred_region
      %s602 = ssub.s32 %s7, 2
      // Predicated region
      $region33: #{encoder_decoder_forward.42} parent=31 // pred_check
        %p603 = pneg %p62
      $region34: #{encoder_decoder_forward.42} parent=31 // pred_check_branch
        %605 = sbr.rel (%p603) target = $region36
      $region35: #{encoder_decoder_forward.42} parent=31 // pred_region
        %p606 = scmp.lt.s32.totalorder %s13, 1
        %s607 = scalar_select %p606, %s13, 1
        %s608 = smul.addr %s607, 4
        %s609 = scalar_lea.vmem %s1, %s608
      $region36: #{encoder_decoder_forward.42} parent=31 // pred_fallthru
        _
    $region32: #{encoder_decoder_forward.42} parent=5 // pred_fallthru
      _
  $region6: #{encoder_decoder_forward.42} parent=0 // loop_footer
    %s11 = sadd.s32 1, %s7
  $region7: #{encoder_decoder_forward.42} parent=0 // loop_footer_branch
    %6 = sbr.rel target = $region3
  $region8: #{encoder_decoder_forward.42} parent=0 // loop_exit
    _

// kernel: encoder_decoder_forward.59
$region0: #{encoder_decoder_forward.59}
  #allocation0 [shape = 'u32[]', space=smem, size = 0x4, offset = 0x4, fixed_abs, tag = 'smem constant byte address 0x4 - core index']
  #allocation1 [shape = 'u32[144,128]{1,0:T(1,128)}', space=vmem, size = 0x12000, scoped, tag = 'internal scratch']
  %s0 = inlined_call_operand.vmem [shape: bf16[16,32], index: 0, kind: input, shape index: {}]
  %s1 = inlined_call_operand.vmem [shape: f32[1,32], index: 1, kind: input, shape index: {}]
  %s2 = inlined_call_operand.vmem [shape: f32[1,32], index: 2, kind: input, shape index: {}]
  %s3 = inlined_call_operand.vmem [shape: bf16[32,32], index: 3, kind: input, shape index: {}]
  %s4 = inlined_call_operand.hbm [shape: f32[16,32], index: 4, kind: output, shape index: {}]
  %s5 = sld [smem:[#allocation0]]
  $region26: #{encoder_decoder_forward.59} parent=0
    _
  %s7 = ssub.s32 1, %s5
  %s8 = scalar_select 0, %s7, %s5
  $region1: #{encoder_decoder_forward.59} parent=0
    #allocation2 [shape = 'u8[8192]{0}', space=vmem, size = 0x2000, scoped, tag = 'output window, operand 0, single buffered']
    #allocation3 [shape = 's32[1]{0}', space=sflag, size = 0x4, scoped, tag = 'scoped memory for encoder_decoder_forward.59']
    %9 = vsyncpa [#allocation3], 0
    // Predicated region
    $region2: #{encoder_decoder_forward.59} parent=1 // pred_check
      _
    $region3: #{encoder_decoder_forward.59} parent=1 // pred_check_branch
      %11 = sbr.rel (0) target = $region5
    $region4: #{encoder_decoder_forward.59} parent=1 // pred_region
      _
    $region5: #{encoder_decoder_forward.59} parent=1 // pred_fallthru
      _
    // Predicated region
    $region6: #{encoder_decoder_forward.59} parent=1 // pred_check
      _
    $region7: #{encoder_decoder_forward.59} parent=1 // pred_check_branch
      %13 = sbr.rel (0) target = $region9
    $region8: #{encoder_decoder_forward.59} parent=1 // pred_region
      _
    $region9: #{encoder_decoder_forward.59} parent=1 // pred_fallthru
      _
    // Predicated region
    $region10: #{encoder_decoder_forward.59} parent=1 // pred_check
      _
    $region11: #{encoder_decoder_forward.59} parent=1 // pred_check_branch
      %15 = sbr.rel (0) target = $region13
    $region12: #{encoder_decoder_forward.59} parent=1 // pred_region
      _
    $region13: #{encoder_decoder_forward.59} parent=1 // pred_fallthru
      _
    // Predicated region
    $region14: #{encoder_decoder_forward.59} parent=1 // pred_check
      _
    $region15: #{encoder_decoder_forward.59} parent=1 // pred_check_branch
      %17 = sbr.rel (0) target = $region17
    $region16: #{encoder_decoder_forward.59} parent=1 // pred_region
      _
    $region17: #{encoder_decoder_forward.59} parent=1 // pred_fallthru
      _
    %v19 = vld [vmem:[%s0] sm:$0xf]
    %v20 = vld [vmem:[%s0 + $0x4] sm:$0xf]
    %v21 = vunpack.c.l.bf16 %v19
    %v22 = vunpack.c.l.bf16 %v20
    %vm23 = vcmask 261120
    %v24 = vsel %vm23, %v21, 0.0
    %25 = vadd.xlane.f32.xlu0 %v24
    %v26 = vpop.xlane.xlu0 %25
    %v27 = vsel %vm23, %v22, 0.0
    %28 = vadd.xlane.f32.xlu0 %v27
    %v29 = vpop.xlane.xlu0 %28
    %v30 = vrcp.pop 32.0
    %v31 = vmul.f32 %v26, %v30
    %v32 = vmul.f32 %v29, %v30
    %v33 = vsub.f32 %v21, %v31
    %v34 = vsub.f32 %v22, %v32
    %v35 = vmul.f32 %v33, %v33
    %v36 = vmul.f32 %v34, %v34
    %v37 = vsel %vm23, %v35, 0.0
    %38 = vadd.xlane.f32.xlu0 %v37
    %v39 = vpop.xlane.xlu0 %38
    %v40 = vsel %vm23, %v36, 0.0
    %41 = vadd.xlane.f32.xlu0 %v40
    %v42 = vpop.xlane.xlu0 %41
    %v43 = vmul.f32 %v39, %v30
    %v44 = vmul.f32 %v42, %v30
    %v45 = vadd.f32 %v43, 1e-05
    %v46 = vadd.f32 %v44, 1e-05
    %v47 = vrsqrt.pop %v45
    %v48 = vrsqrt.pop %v46
    %v49 = vmul.f32 %v33, %v47
    %v50 = vmul.f32 %v34, %v48
    %v51 = vld [vmem:[%s1] sm:$0x1]
    %v53 = vlaneseq
    %v54 = vshrl.u32 %v53, 7
    %v55 = vsub.s32 0, %v54
    %v56 = vrot.slane %v51, %v55
    %v58 = vmul.f32 %v49, %v56
    %v59 = vmul.f32 %v50, %v56
    %v60 = vld [vmem:[%s2] sm:$0x1]
    %v62 = vlaneseq
    %v63 = vshrl.u32 %v62, 7
    %v64 = vsub.s32 0, %v63
    %v65 = vrot.slane %v60, %v64
    %v67 = vadd.f32 %v58, %v65
    %v68 = vadd.f32 %v59, %v65
    %v69 = vpack.c.bf16 %v68, %v67
    %v70 = vld [vmem:[%s3] sm:$0xf]
    %v71 = vld [vmem:[%s3 + $0x4] sm:$0xf]
    %v72 = vld [vmem:[%s3 + $0x8] sm:$0xf]
    %v73 = vld [vmem:[%s3 + $0xc] sm:$0xf]
    %v78 = vunpack.c.l.b16 %v70
    %v79 = vunpack.c.l.b16 %v71
    %v80 = vunpack.c.l.b16 %v72
    %v81 = vunpack.c.l.b16 %v73
    %v82 = vpack.c.b16 %v79, %v78
    %v83 = vpack.c.b16 %v81, %v80
    %v85 = vsel %vm23, %v69, 0
    %v88 = vsel %vm23, %v82, 0
    %v91 = vsel %vm23, %v83, 0
    %93 = vmatprep.subr.bf16.mxu0 0
    %94 = vmatpush1.bf16.xpose.msra.mxu0 0
    %95 = vmatprep.subr.bf16.mxu0 0
    %96 = vmatpush1.bf16.xpose.msra.mxu0 0
    %97 = vmatprep.subr.bf16.mxu0 0
    %98 = vmatpush1.bf16.xpose.msra.mxu0 0
    %99 = vmatprep.subr.bf16.mxu0 0
    %100 = vmatpush1.bf16.xpose.msra.mxu0 0
    %101 = vmatprep.subr.bf16.mxu0 0
    %102 = vmatpush1.bf16.xpose.msra.mxu0 0
    %103 = vmatprep.subr.bf16.mxu0 0
    %104 = vmatpush1.bf16.xpose.msra.mxu0 0
    %105 = vmatprep.subr.bf16.mxu0 0
    %106 = vmatpush1.bf16.xpose.msra.mxu0 %v91
    %107 = vmatprep.subr.bf16.mxu0 0
    %108 = vmatpush1.bf16.xpose.msra.mxu0 %v88
    %109 = vmatprep.subr.bf16.mxu0 0
    %110 = vmatpush2.bf16.xpose.msra.mxu0 0
    %111 = vmatprep.subr.bf16.mxu0 0
    %112 = vmatpush2.bf16.xpose.msra.mxu0 0
    %113 = vmatprep.subr.bf16.mxu0 0
    %114 = vmatpush2.bf16.xpose.msra.mxu0 0
    %115 = vmatprep.subr.bf16.mxu0 0
    %116 = vmatpush2.bf16.xpose.msra.mxu0 0
    %117 = vmatprep.subr.bf16.mxu0 0
    %118 = vmatpush2.bf16.xpose.msra.mxu0 0
    %119 = vmatprep.subr.bf16.mxu0 0
    %120 = vmatpush2.bf16.xpose.msra.mxu0 0
    %121 = vmatprep.subr.bf16.mxu0 0
    %122 = vmatpush2.bf16.xpose.msra.mxu0 0
    %123 = vmatprep.subr.bf16.mxu0 0
    %124 = vmatpush2.bf16.xpose.msra.mxu0 0
    %125 = vmatprep.mubr.bf16.mxu0 0
    %126 = vmatmul.mubr.bf16.gmra.mxu0 %v85
    %v127 = vpop.f32.mrf.mxu0
    %v128 = vadd.f32 0.0, %v127
    %v129 = vpop.f32.mrf.mxu0
    %v130 = vpop.f32.mrf.mxu0
    %v131 = vadd.f32 0.0, %v130
    %v132 = vpop.f32.mrf.mxu0
    %133 = vdwg.mxu0
    %134 = vst.msk [vmem:[#allocation2] sm:$0xff] %vm23, %v128
    %135 = vst.msk [vmem:[#allocation2 + $0x8] sm:$0xff] %vm23, %v131
    // Predicated region
    $region18: #{encoder_decoder_forward.59} parent=1 // pred_check
      _
    $region19: #{encoder_decoder_forward.59} parent=1 // pred_check_branch
      %137 = sbr.rel (0) target = $region21
    $region20: #{encoder_decoder_forward.59} parent=1 // pred_region
      %s139 = ssub.s32 256, 256
      %140 = vsyncadd [#allocation3], %s139
      %s141 = sshll.u32 [#allocation2], 4
      %s142 = int_to_ptr.vmem [resolvable:$true] %s141
      %147 = dma.vmem_to_hbm [thread:$0]  %s142, 256, %s4, [#allocation3], 128, 128, 8
    $region21: #{encoder_decoder_forward.59} parent=1 // pred_fallthru
      _
    // Predicated region
    $region22: #{encoder_decoder_forward.59} parent=1 // pred_check
      _
    $region23: #{encoder_decoder_forward.59} parent=1 // pred_check_branch
      %149 = sbr.rel (0) target = $region25
    $region24: #{encoder_decoder_forward.59} parent=1 // pred_region
      %150 = dma.done [#allocation3], 256
    $region25: #{encoder_decoder_forward.59} parent=1 // pred_fallthru
      _
    %151 = vsyncpa [#allocation3], 1

// kernel: encoder_decoder_forward.44
$region0: #{encoder_decoder_forward.44}
  #allocation0 [shape = 'u32[]', space=smem, size = 0x4, offset = 0x4, fixed_abs, tag = 'smem constant byte address 0x4 - core index']
  #allocation1 [shape = 'u32[144,128]{1,0:T(1,128)}', space=vmem, size = 0x12000, scoped, tag = 'internal scratch']
  %s0 = inlined_call_operand.vmem [shape: bf16[16,32], index: 0, kind: input, shape index: {}]
  %s1 = inlined_call_operand.vmem [shape: f32[1,32], index: 1, kind: input, shape index: {}]
  %s2 = inlined_call_operand.vmem [shape: f32[1,32], index: 2, kind: input, shape index: {}]
  %s3 = inlined_call_operand.vmem [shape: bf16[32,32], index: 3, kind: input, shape index: {}]
  %s4 = inlined_call_operand.vmem [shape: f32[1,32], index: 4, kind: input, shape index: {}]
  %s5 = inlined_call_operand.vmem [shape: bf16[16,32], index: 5, kind: output, shape index: {}]
  %s6 = sld [smem:[#allocation0]]
  $region30: #{encoder_decoder_forward.44} parent=0
    _
  %s8 = ssub.s32 1, %s6
  %s9 = scalar_select 0, %s8, %s6
  // Predicated region
  $region2: #{encoder_decoder_forward.44} parent=0 // pred_check
    _
  $region3: #{encoder_decoder_forward.44} parent=0 // pred_check_branch
    %11 = sbr.rel (0) target = $region5
  $region4: #{encoder_decoder_forward.44} parent=0 // pred_region
    _
  $region5: #{encoder_decoder_forward.44} parent=0 // pred_fallthru
    _
  // Predicated region
  $region6: #{encoder_decoder_forward.44} parent=0 // pred_check
    _
  $region7: #{encoder_decoder_forward.44} parent=0 // pred_check_branch
    %13 = sbr.rel (0) target = $region9
  $region8: #{encoder_decoder_forward.44} parent=0 // pred_region
    _
  $region9: #{encoder_decoder_forward.44} parent=0 // pred_fallthru
    _
  // Predicated region
  $region10: #{encoder_decoder_forward.44} parent=0 // pred_check
    _
  $region11: #{encoder_decoder_forward.44} parent=0 // pred_check_branch
    %15 = sbr.rel (0) target = $region13
  $region12: #{encoder_decoder_forward.44} parent=0 // pred_region
    _
  $region13: #{encoder_decoder_forward.44} parent=0 // pred_fallthru
    _
  // Predicated region
  $region14: #{encoder_decoder_forward.44} parent=0 // pred_check
    _
  $region15: #{encoder_decoder_forward.44} parent=0 // pred_check_branch
    %17 = sbr.rel (0) target = $region17
  $region16: #{encoder_decoder_forward.44} parent=0 // pred_region
    _
  $region17: #{encoder_decoder_forward.44} parent=0 // pred_fallthru
    _
  // Predicated region
  $region18: #{encoder_decoder_forward.44} parent=0 // pred_check
    _
  $region19: #{encoder_decoder_forward.44} parent=0 // pred_check_branch
    %19 = sbr.rel (0) target = $region21
  $region20: #{encoder_decoder_forward.44} parent=0 // pred_region
    _
  $region21: #{encoder_decoder_forward.44} parent=0 // pred_fallthru
    _
  %v21 = vld [vmem:[%s0] sm:$0xf]
  %v22 = vld [vmem:[%s0 + $0x4] sm:$0xf]
  %v23 = vunpack.c.l.bf16 %v21
  %v24 = vunpack.c.l.bf16 %v22
  %vm25 = vcmask 261120
  %v26 = vsel %vm25, %v23, 0.0
  %27 = vadd.xlane.f32.xlu0 %v26
  %v28 = vpop.xlane.xlu0 %27
  %v29 = vsel %vm25, %v24, 0.0
  %30 = vadd.xlane.f32.xlu0 %v29
  %v31 = vpop.xlane.xlu0 %30
  %v32 = vrcp.pop 32.0
  %v33 = vmul.f32 %v28, %v32
  %v34 = vmul.f32 %v31, %v32
  %v35 = vsub.f32 %v23, %v33
  %v36 = vsub.f32 %v24, %v34
  %v37 = vmul.f32 %v35, %v35
  %v38 = vmul.f32 %v36, %v36
  %v39 = vsel %vm25, %v37, 0.0
  %40 = vadd.xlane.f32.xlu0 %v39
  %v41 = vpop.xlane.xlu0 %40
  %v42 = vsel %vm25, %v38, 0.0
  %43 = vadd.xlane.f32.xlu0 %v42
  %v44 = vpop.xlane.xlu0 %43
  %v45 = vmul.f32 %v41, %v32
  %v46 = vmul.f32 %v44, %v32
  %v47 = vadd.f32 %v45, 1e-05
  %v48 = vadd.f32 %v46, 1e-05
  %v49 = vrsqrt.pop %v47
  %v50 = vrsqrt.pop %v48
  %v51 = vmul.f32 %v35, %v49
  %v52 = vmul.f32 %v36, %v50
  %v53 = vld [vmem:[%s1] sm:$0x1]
  %v55 = vlaneseq
  %v56 = vshrl.u32 %v55, 7
  %v57 = vsub.s32 0, %v56
  %v58 = vrot.slane %v53, %v57
  %v60 = vmul.f32 %v51, %v58
  %v61 = vmul.f32 %v52, %v58
  %v62 = vld [vmem:[%s2] sm:$0x1]
  %v64 = vlaneseq
  %v65 = vshrl.u32 %v64, 7
  %v66 = vsub.s32 0, %v65
  %v67 = vrot.slane %v62, %v66
  %v69 = vadd.f32 %v60, %v67
  %v70 = vadd.f32 %v61, %v67
  %v71 = vpack.c.bf16 %v70, %v69
  %v72 = vld [vmem:[%s3] sm:$0xf]
  %v73 = vld [vmem:[%s3 + $0x4] sm:$0xf]
  %v74 = vld [vmem:[%s3 + $0x8] sm:$0xf]
  %v75 = vld [vmem:[%s3 + $0xc] sm:$0xf]
  %v76 = vld [vmem:[%s4] sm:$0x1]
  %v78 = vlaneseq
  %v79 = vshrl.u32 %v78, 7
  %v80 = vsub.s32 0, %v79
  %v81 = vrot.slane %v76, %v80
  %v87 = vunpack.c.l.b16 %v72
  %v88 = vunpack.c.l.b16 %v73
  %v89 = vunpack.c.l.b16 %v74
  %v90 = vunpack.c.l.b16 %v75
  %v91 = vpack.c.b16 %v88, %v87
  %v92 = vpack.c.b16 %v90, %v89
  %v96 = vsel %vm25, %v71, 0
  %98 = vmatprep.subr.bf16.mxu0 0
  %99 = vmatpush1.bf16.msra.mxu0 0
  %100 = vmatprep.subr.bf16.mxu0 0
  %101 = vmatpush1.bf16.msra.mxu0 0
  %102 = vmatprep.subr.bf16.mxu0 0
  %103 = vmatpush1.bf16.msra.mxu0 0
  %104 = vmatprep.subr.bf16.mxu0 0
  %105 = vmatpush1.bf16.msra.mxu0 0
  %106 = vmatprep.subr.bf16.mxu0 0
  %107 = vmatpush1.bf16.msra.mxu0 0
  %108 = vmatprep.subr.bf16.mxu0 0
  %109 = vmatpush1.bf16.msra.mxu0 0
  %110 = vmatprep.subr.bf16.mxu0 0
  %111 = vmatpush1.bf16.msra.mxu0 %v92
  %112 = vmatprep.subr.bf16.mxu0 0
  %113 = vmatpush1.bf16.msra.mxu0 %v91
  %114 = vmatprep.subr.bf16.mxu0 0
  %115 = vmatpush2.bf16.msra.mxu0 0
  %116 = vmatprep.subr.bf16.mxu0 0
  %117 = vmatpush2.bf16.msra.mxu0 0
  %118 = vmatprep.subr.bf16.mxu0 0
  %119 = vmatpush2.bf16.msra.mxu0 0
  %120 = vmatprep.subr.bf16.mxu0 0
  %121 = vmatpush2.bf16.msra.mxu0 0
  %122 = vmatprep.subr.bf16.mxu0 0
  %123 = vmatpush2.bf16.msra.mxu0 0
  %124 = vmatprep.subr.bf16.mxu0 0
  %125 = vmatpush2.bf16.msra.mxu0 0
  %126 = vmatprep.subr.bf16.mxu0 0
  %127 = vmatpush2.bf16.msra.mxu0 0
  %128 = vmatprep.subr.bf16.mxu0 0
  %129 = vmatpush2.bf16.msra.mxu0 0
  %130 = vmatprep.mubr.bf16.mxu0 0
  %131 = vmatmul.mubr.bf16.gmra.mxu0 %v96
  %v132 = vpop.f32.mrf.mxu0
  %v133 = vadd.f32 %v81, %v132
  %v134 = vpop.f32.mrf.mxu0
  %v135 = vpop.f32.mrf.mxu0
  %v136 = vadd.f32 %v81, %v135
  %v137 = vpop.f32.mrf.mxu0
  %138 = vdwg.mxu0
  %v139 = vpack.c.bf16 %v136, %v133
  %v141 = vunpack.c.l.b16 %v139
  %v142 = vunpack.c.h.b16 %v139
  %v143 = vpack.c.b16 %v141, %v141
  %v144 = vpack.c.b16 %v142, %v142
  %vm147 = vcmask 257024
  %148 = vst.msk [vmem:[%s5] sm:$0xf] %vm147, %v143
  %149 = vst.msk [vmem:[%s5 + $0x4] sm:$0xf] %vm147, %v144
  // Predicated region
  $region22: #{encoder_decoder_forward.44} parent=0 // pred_check
    _
  $region23: #{encoder_decoder_forward.44} parent=0 // pred_check_branch
    %151 = sbr.rel (0) target = $region25
  $region24: #{encoder_decoder_forward.44} parent=0 // pred_region
    _
  $region25: #{encoder_decoder_forward.44} parent=0 // pred_fallthru
    _
  // Predicated region
  $region26: #{encoder_decoder_forward.44} parent=0 // pred_check
    _
  $region27: #{encoder_decoder_forward.44} parent=0 // pred_check_branch
    %153 = sbr.rel (0) target = $region29
  $region28: #{encoder_decoder_forward.44} parent=0 // pred_region
    _
  $region29: #{encoder_decoder_forward.44} parent=0 // pred_fallthru
    _

// kernel: encoder_decoder_forward.46
$region0: #{encoder_decoder_forward.46}
  #allocation0 [shape = 'u32[]', space=smem, size = 0x4, offset = 0x4, fixed_abs, tag = 'smem constant byte address 0x4 - core index']
  #allocation1 [shape = 'u32[144,128]{1,0:T(1,128)}', space=vmem, size = 0x12000, scoped, tag = 'internal scratch']
  %s0 = inlined_call_operand.vmem [shape: bf16[2,8,32], index: 0, kind: input, shape index: {}]
  %s1 = inlined_call_operand.vmem [shape: bf16[2,8,64], index: 1, kind: input, shape index: {}]
  %s2 = inlined_call_operand.vmem [shape: f32[2,1,8], index: 2, kind: input, shape index: {}]
  %s3 = inlined_call_operand.vmem [shape: bf16[2,8,32], index: 3, kind: output, shape index: {}]
  %s4 = sld [smem:[#allocation0]]
  $region45: #{encoder_decoder_forward.46} parent=0
    _
  %s6 = ssub.s32 1, %s4
  %s7 = scalar_select 0, %s6, %s4
  loop: start=0, step=1, limit=4
  $region2: #{encoder_decoder_forward.46} parent=0 // loop_pre_header
    _
  $region3: #{encoder_decoder_forward.46} parent=0 // loop_header
    %s9 = sphi 0, %s13
    %p10 = scmp.ge.s32.totalorder %s9, 4
    %s19 = sphi 0, %s21
    %s22 = sphi 0, %s19
    %s23 = sphi 0, %s22
    %s39 = sphi 0, %s23
    %s45 = sphi 0, %s47
    %s48 = sphi 0, %s45
    %s49 = sphi 0, %s48
    %s65 = sphi 0, %s49
    %s71 = sphi 0, %s73
    %s74 = sphi 0, %s71
    %s75 = sphi 0, %s74
    %s91 = sphi 0, %s75
    %s97 = sphi 0, %s99
    %s100 = sphi 0, %s97
    %s101 = sphi 0, %s100
    %s117 = sphi 0, %s101
  $region4: #{encoder_decoder_forward.46} parent=0 // loop_header_branch
    %12 = sbr.rel (%p10) target = $region8
  $region5: #{encoder_decoder_forward.46} parent=0 // loop_body
    %s14 = ssub.s32 %s9, 1
    %s15 = ssub.s32 %s9, 2
    %s16 = sadd.s32 %s9, 1
    %s17 = ssub.s32 %s9, %s16
    %p18 = scmp.eq.s32.totalorder %s17, 0
    %s20 = sadd.s32 %s19, 1
    %s21 = scalar_select %p18, %s19, %s20
    %p24 = pneg %p18
    %p25 = scmp.eq.s32.totalorder %s9, 1
    %p26 = por %p24, %p25
    %p27 = scmp.ne.s32.totalorder %s19, %s22
    %p28 = scmp.eq.s32.totalorder %s9, 0
    %p29 = por %p27, %p28
    %p30 = scmp.ne.s32.totalorder %s19, %s22
    %p31 = scmp.eq.s32.totalorder %s14, 1
    %p32 = por %p30, %p31
    %p33 = scmp.ne.s32.totalorder %s22, %s23
    %p34 = scmp.eq.s32.totalorder %s14, 0
    %p35 = por %p33, %p34
    %p36 = scmp.ne.s32.totalorder %s22, %s23
    %p37 = scmp.eq.s32.totalorder %s15, 1
    %p38 = por %p36, %p37
    %p40 = scmp.ne.s32.totalorder %s23, %s39
    %p41 = scmp.eq.s32.totalorder %s15, 0
    %p42 = por %p40, %p41
    %s43 = ssub.s32 %s9, %s16
    %p44 = scmp.eq.s32.totalorder %s43, 0
    %s46 = sadd.s32 %s45, 1
    %s47 = scalar_select %p44, %s45, %s46
    %p50 = pneg %p44
    %p51 = scmp.eq.s32.totalorder %s9, 1
    %p52 = por %p50, %p51
    %p53 = scmp.ne.s32.totalorder %s45, %s48
    %p54 = scmp.eq.s32.totalorder %s9, 0
    %p55 = por %p53, %p54
    %p56 = scmp.ne.s32.totalorder %s45, %s48
    %p57 = scmp.eq.s32.totalorder %s14, 1
    %p58 = por %p56, %p57
    %p59 = scmp.ne.s32.totalorder %s48, %s49
    %p60 = scmp.eq.s32.totalorder %s14, 0
    %p61 = por %p59, %p60
    %p62 = scmp.ne.s32.totalorder %s48, %s49
    %p63 = scmp.eq.s32.totalorder %s15, 1
    %p64 = por %p62, %p63
    %p66 = scmp.ne.s32.totalorder %s49, %s65
    %p67 = scmp.eq.s32.totalorder %s15, 0
    %p68 = por %p66, %p67
    %s69 = ssub.s32 %s9, %s16
    %p70 = scmp.eq.s32.totalorder %s69, 0
    %s72 = sadd.s32 %s71, 1
    %s73 = scalar_select %p70, %s71, %s72
    %p76 = pneg %p70
    %p77 = scmp.eq.s32.totalorder %s9, 1
    %p78 = por %p76, %p77
    %p79 = scmp.ne.s32.totalorder %s71, %s74
    %p80 = scmp.eq.s32.totalorder %s9, 0
    %p81 = por %p79, %p80
    %p82 = scmp.ne.s32.totalorder %s71, %s74
    %p83 = scmp.eq.s32.totalorder %s14, 1
    %p84 = por %p82, %p83
    %p85 = scmp.ne.s32.totalorder %s74, %s75
    %p86 = scmp.eq.s32.totalorder %s14, 0
    %p87 = por %p85, %p86
    %p88 = scmp.ne.s32.totalorder %s74, %s75
    %p89 = scmp.eq.s32.totalorder %s15, 1
    %p90 = por %p88, %p89
    %p92 = scmp.ne.s32.totalorder %s75, %s91
    %p93 = scmp.eq.s32.totalorder %s15, 0
    %p94 = por %p92, %p93
    %s95 = ssub.s32 %s9, %s16
    %p96 = scmp.eq.s32.totalorder %s95, 0
    %s98 = sadd.s32 %s97, 1
    %s99 = scalar_select %p96, %s97, %s98
    %p102 = pneg %p96
    %p103 = scmp.eq.s32.totalorder %s9, 1
    %p104 = por %p102, %p103
    %p105 = scmp.ne.s32.totalorder %s97, %s100
    %p106 = scmp.eq.s32.totalorder %s9, 0
    %p107 = por %p105, %p106
    %p108 = scmp.ne.s32.totalorder %s97, %s100
    %p109 = scmp.eq.s32.totalorder %s14, 1
    %p110 = por %p108, %p109
    %p111 = scmp.ne.s32.totalorder %s100, %s101
    %p112 = scmp.eq.s32.totalorder %s14, 0
    %p113 = por %p111, %p112
    %p114 = scmp.ne.s32.totalorder %s100, %s101
    %p115 = scmp.eq.s32.totalorder %s15, 1
    %p116 = por %p114, %p115
    %p118 = scmp.ne.s32.totalorder %s101, %s117
    %p119 = scmp.eq.s32.totalorder %s15, 0
    %p120 = por %p118, %p119
    %p121 = scmp.le.s32.totalorder 1, %s9
    %p122 = scmp.lt.s32.totalorder %s9, 3
    %p123 = pnand %p121, %p122
    %p124 = pneg %p123
    // Predicated region
    $region9: #{encoder_decoder_forward.46} parent=5 // pred_check
      _
    $region10: #{encoder_decoder_forward.46} parent=5 // pred_check_branch
      %126 = sbr.rel (%p123) target = $region12
    $region11: #{encoder_decoder_forward.46} parent=5 // pred_region
      %s127 = ssub.s32 %s9, 1
    $region12: #{encoder_decoder_forward.46} parent=5 // pred_fallthru
      _
    %p128 = scmp.lt.s32.totalorder %s9, 2
    // Predicated region
    $region13: #{encoder_decoder_forward.46} parent=5 // pred_check
      %p129 = pneg %p128
    $region14: #{encoder_decoder_forward.46} parent=5 // pred_check_branch
      %131 = sbr.rel (%p129) target = $region16
    $region15: #{encoder_decoder_forward.46} parent=5 // pred_region
      // Predicated region
      $region17: #{encoder_decoder_forward.46} parent=15 // pred_check
        %p132 = pneg %p29
      $region18: #{encoder_decoder_forward.46} parent=15 // pred_check_branch
        %134 = sbr.rel (%p132) target = $region20
      $region19: #{encoder_decoder_forward.46} parent=15 // pred_region
        %p135 = scmp.lt.s32.totalorder %s9, 1
        %s136 = scalar_select %p135, %s9, 1
        %s137 = smul.addr %s136, 4
        %s138 = scalar_lea.vmem %s0, %s137
      $region20: #{encoder_decoder_forward.46} parent=15 // pred_fallthru
        _
      // Predicated region
      $region21: #{encoder_decoder_forward.46} parent=15 // pred_check
        %p139 = pneg %p55
      $region22: #{encoder_decoder_forward.46} parent=15 // pred_check_branch
        %141 = sbr.rel (%p139) target = $region24
      $region23: #{encoder_decoder_forward.46} parent=15 // pred_region
        %p142 = scmp.lt.s32.totalorder %s9, 1
        %s143 = scalar_select %p142, %s9, 1
        %s144 = smul.addr %s143, 4
        %s145 = scalar_lea.vmem %s1, %s144
      $region24: #{encoder_decoder_forward.46} parent=15 // pred_fallthru
        _
      // Predicated region
      $region25: #{encoder_decoder_forward.46} parent=15 // pred_check
        %p146 = pneg %p81
      $region26: #{encoder_decoder_forward.46} parent=15 // pred_check_branch
        %148 = sbr.rel (%p146) target = $region28
      $region27: #{encoder_decoder_forward.46} parent=15 // pred_region
        %p149 = scmp.lt.s32.totalorder %s9, 1
        %s150 = scalar_select %p149, %s9, 1
        %s151 = scalar_lea.vmem %s2, %s150
      $region28: #{encoder_decoder_forward.46} parent=15 // pred_fallthru
        _
    $region16: #{encoder_decoder_forward.46} parent=5 // pred_fallthru
      _
    %p152 = scmp.le.s32.totalorder 1, %s9
    %p153 = scmp.lt.s32.totalorder %s9, 3
    %p154 = pnand %p152, %p153
    %p155 = pneg %p154
    // Predicated region
    $region29: #{encoder_decoder_forward.46} parent=5 // pred_check
      _
    $region30: #{encoder_decoder_forward.46} parent=5 // pred_check_branch
      %157 = sbr.rel (%p154) target = $region32
    $region31: #{encoder_decoder_forward.46} parent=5 // pred_region
      %s158 = ssub.s32 %s9, 1
      %p159 = scmp.lt.s32.totalorder %s14, 1
      %s160 = scalar_select %p159, %s14, 1
      %s161 = smul.addr %s160, 4
      %s162 = scalar_lea.vmem %s0, %s161
      %p163 = pneg %p35
      %p164 = pneg %p32
      %p165 = scmp.lt.s32.totalorder %s14, 1
      %s166 = scalar_select %p165, %s14, 1
      %s167 = smul.addr %s166, 4
      %s168 = scalar_lea.vmem %s1, %s167
      %p169 = pneg %p61
      %p170 = pneg %p58
      %p171 = scmp.lt.s32.totalorder %s14, 1
      %s172 = scalar_select %p171, %s14, 1
      %s173 = scalar_lea.vmem %s2, %s172
      %p174 = pneg %p87
      %p175 = pneg %p84
      %p176 = pneg %p113
      %p177 = pneg %p110
      %p178 = scmp.lt.s32.totalorder %s14, 1
      %s179 = scalar_select %p178, %s14, 1
      %s180 = smul.addr %s179, 4
      %s181 = scalar_lea.vmem %s3, %s180
      %p182 = scmp.lt.s32.totalorder %s14, 1
      %s183 = scalar_select %p182, %s14, 1
      %s184 = smul.addr %s183, 4
      %s185 = scalar_lea.vmem %s0, %s184
      %p186 = scmp.lt.s32.totalorder %s14, 1
      %s187 = scalar_select %p186, %s14, 1
      %s188 = smul.addr %s187, 4
      %s189 = scalar_lea.vmem %s1, %s188
      %p190 = scmp.lt.s32.totalorder %s14, 1
      %s191 = scalar_select %p190, %s14, 1
      %s192 = scalar_lea.vmem %s2, %s191
      %p193 = scmp.lt.s32.totalorder %s14, 1
      %s194 = scalar_select %p193, %s14, 1
      %s195 = smul.addr %s194, 4
      %s196 = scalar_lea.vmem %s3, %s195
      %v198 = vld [vmem:[%s185] sm:$0xf]
      %v199 = vunpack.c.l.bf16 %v198
      %v200 = vld [vmem:[%s189] sm:$0xf]
      %v201 = vunpack.c.l.bf16 %v200
      %v202 = vld [vmem:[%s192] sm:$0x1]
      %v203 = vpack.c.bf16 %v199, %v199
      %v204 = vpack.c.bf16 %v201, %v201
      %vm205 = vcmask 64512
      %v207 = vsel %vm205, %v203, 0
      %v210 = vsel %vm205, %v204, 0
      %212 = vmatprep.subr.bf16.mxu0 0
      %213 = vmatpush1.bf16.xpose.msra.mxu0 0
      %214 = vmatprep.subr.bf16.mxu0 0
      %215 = vmatpush1.bf16.xpose.msra.mxu0 0
      %216 = vmatprep.subr.bf16.mxu0 0
      %217 = vmatpush1.bf16.xpose.msra.mxu0 0
      %218 = vmatprep.subr.bf16.mxu0 0
      %219 = vmatpush1.bf16.xpose.msra.mxu0 0
      %220 = vmatprep.subr.bf16.mxu0 0
      %221 = vmatpush1.bf16.xpose.msra.mxu0 0
      %222 = vmatprep.subr.bf16.mxu0 0
      %223 = vmatpush1.bf16.xpose.msra.mxu0 0
      %224 = vmatprep.subr.bf16.mxu0 0
      %225 = vmatpush1.bf16.xpose.msra.mxu0 0
      %226 = vmatprep.subr.bf16.mxu0 0
      %227 = vmatpush1.bf16.xpose.msra.mxu0 %v210
      %228 = vmatprep.subr.bf16.mxu0 0
      %229 = vmatpush2.bf16.xpose.msra.mxu0 0
      %230 = vmatprep.subr.bf16.mxu0 0
      %231 = vmatpush2.bf16.xpose.msra.mxu0 0
      %232 = vmatprep.subr.bf16.mxu0 0
      %233 = vmatpush2.bf16.xpose.msra.mxu0 0
      %234 = vmatprep.subr.bf16.mxu0 0
      %235 = vmatpush2.bf16.xpose.msra.mxu0 0
      %236 = vmatprep.subr.bf16.mxu0 0
      %237 = vmatpush2.bf16.xpose.msra.mxu0 0
      %238 = vmatprep.subr.bf16.mxu0 0
      %239 = vmatpush2.bf16.xpose.msra.mxu0 0
      %240 = vmatprep.subr.bf16.mxu0 0
      %241 = vmatpush2.bf16.xpose.msra.mxu0 0
      %242 = vmatprep.subr.bf16.mxu0 0
      %243 = vmatpush2.bf16.xpose.msra.mxu0 0
      %244 = vmatprep.mubr.bf16.mxu0 0
      %245 = vmatmul.mubr.bf16.gmra.mxu0 %v207
      %v246 = vpop.f32.mrf.mxu0
      %v247 = vadd.f32 0.0, %v246
      %v248 = vpop.f32.mrf.mxu0
      %v249 = vpop.f32.mrf.mxu0
      %v250 = vpop.f32.mrf.mxu0
      %251 = vdwg.mxu0
      %v252 = vmul.f32 %v247, 0.35355338
      %v254 = vlaneseq
      %v255 = vshrl.u32 %v254, 7
      %v256 = vsub.s32 0, %v255
      %v257 = vrot.slane %v202, %v256
      %v259 = vadd.f32 %v252, %v257
      %v260 = vsel %vm205, %v259, -inf
      %261 = vmax.xlane.f32.xlu0 %v260
      %v262 = vpop.xlane.xlu0 %261
      %v263 = vsub.f32 %v259, %v262
      %v264 = vmul.f32 %v263, 1.442695
      %v265 = vpow.pop %v264
      %v266 = vsel %vm205, %v265, 0.0
      %267 = vadd.xlane.f32.xlu0 %v266
      %v268 = vpop.xlane.xlu0 %267
      %v269 = vpack.c.bf16 %v265, %v265
      %271 = vrot.lane.b32.xlu0 %v204, 96
      %v272 = vpop.permute.xlu0 %271
      %v274 = vsel %vm205, %v269, 0
      %vm276 = vcmask 1043456
      %v278 = vsel %vm276, %v272, 0
      %280 = vmatprep.subr.bf16.mxu0 0
      %281 = vmatpush1.bf16.msra.mxu0 0
      %282 = vmatprep.subr.bf16.mxu0 0
      %283 = vmatpush1.bf16.msra.mxu0 0
      %284 = vmatprep.subr.bf16.mxu0 0
      %285 = vmatpush1.bf16.msra.mxu0 0
      %286 = vmatprep.subr.bf16.mxu0 0
      %287 = vmatpush1.bf16.msra.mxu0 0
      %288 = vmatprep.subr.bf16.mxu0 0
      %289 = vmatpush1.bf16.msra.mxu0 0
      %290 = vmatprep.subr.bf16.mxu0 0
      %291 = vmatpush1.bf16.msra.mxu0 0
      %292 = vmatprep.subr.bf16.mxu0 0
      %293 = vmatpush1.bf16.msra.mxu0 0
      %294 = vmatprep.subr.bf16.mxu0 0
      %295 = vmatpush1.bf16.msra.mxu0 %v278
      %296 = vmatprep.subr.bf16.mxu0 0
      %297 = vmatpush2.bf16.msra.mxu0 0
      %298 = vmatprep.subr.bf16.mxu0 0
      %299 = vmatpush2.bf16.msra.mxu0 0
      %300 = vmatprep.subr.bf16.mxu0 0
      %301 = vmatpush2.bf16.msra.mxu0 0
      %302 = vmatprep.subr.bf16.mxu0 0
      %303 = vmatpush2.bf16.msra.mxu0 0
      %304 = vmatprep.subr.bf16.mxu0 0
      %305 = vmatpush2.bf16.msra.mxu0 0
      %306 = vmatprep.subr.bf16.mxu0 0
      %307 = vmatpush2.bf16.msra.mxu0 0
      %308 = vmatprep.subr.bf16.mxu0 0
      %309 = vmatpush2.bf16.msra.mxu0 0
      %310 = vmatprep.subr.bf16.mxu0 0
      %311 = vmatpush2.bf16.msra.mxu0 0
      %312 = vmatprep.mubr.bf16.mxu0 0
      %313 = vmatmul.mubr.bf16.gmra.mxu0 %v274
      %v314 = vpop.f32.mrf.mxu0
      %v315 = vadd.f32 0.0, %v314
      %v316 = vpop.f32.mrf.mxu0
      %v317 = vpop.f32.mrf.mxu0
      %v318 = vpop.f32.mrf.mxu0
      %319 = vdwg.mxu0
      %v320 = vrcp.pop %v268
      %v321 = vmul.f32 %v315, %v320
      %323 = vrot.lane.b32.xlu0 %v203, 120
      %v324 = vpop.permute.xlu0 %323
      %325 = vrot.lane.b32.xlu0 %v204, 120
      %v326 = vpop.permute.xlu0 %325
      %v328 = vsel %vm205, %v324, 0
      %v331 = vsel %vm205, %v326, 0
      %333 = vmatprep.subr.bf16.mxu0 0
      %334 = vmatpush1.bf16.xpose.msra.mxu0 0
      %335 = vmatprep.subr.bf16.mxu0 0
      %336 = vmatpush1.bf16.xpose.msra.mxu0 0
      %337 = vmatprep.subr.bf16.mxu0 0
      %338 = vmatpush1.bf16.xpose.msra.mxu0 0
      %339 = vmatprep.subr.bf16.mxu0 0
      %340 = vmatpush1.bf16.xpose.msra.mxu0 0
      %341 = vmatprep.subr.bf16.mxu0 0
      %342 = vmatpush1.bf16.xpose.msra.mxu0 0
      %343 = vmatprep.subr.bf16.mxu0 0
      %344 = vmatpush1.bf16.xpose.msra.mxu0 0
      %345 = vmatprep.subr.bf16.mxu0 0
      %346 = vmatpush1.bf16.xpose.msra.mxu0 0
      %347 = vmatprep.subr.bf16.mxu0 0
      %348 = vmatpush1.bf16.xpose.msra.mxu0 %v331
      %349 = vmatprep.subr.bf16.mxu0 0
      %350 = vmatpush2.bf16.xpose.msra.mxu0 0
      %351 = vmatprep.subr.bf16.mxu0 0
      %352 = vmatpush2.bf16.xpose.msra.mxu0 0
      %353 = vmatprep.subr.bf16.mxu0 0
      %354 = vmatpush2.bf16.xpose.msra.mxu0 0
      %355 = vmatprep.subr.bf16.mxu0 0
      %356 = vmatpush2.bf16.xpose.msra.mxu0 0
      %357 = vmatprep.subr.bf16.mxu0 0
      %358 = vmatpush2.bf16.xpose.msra.mxu0 0
      %359 = vmatprep.subr.bf16.mxu0 0
      %360 = vmatpush2.bf16.xpose.msra.mxu0 0
      %361 = vmatprep.subr.bf16.mxu0 0
      %362 = vmatpush2.bf16.xpose.msra.mxu0 0
      %363 = vmatprep.subr.bf16.mxu0 0
      %364 = vmatpush2.bf16.xpose.msra.mxu0 0
      %365 = vmatprep.mubr.bf16.mxu0 0
      %366 = vmatmul.mubr.bf16.gmra.mxu0 %v328
      %v367 = vpop.f32.mrf.mxu0
      %v368 = vadd.f32 0.0, %v367
      %v369 = vpop.f32.mrf.mxu0
      %v370 = vpop.f32.mrf.mxu0
      %v371 = vpop.f32.mrf.mxu0
      %372 = vdwg.mxu0
      %v373 = vmul.f32 %v368, 0.35355338
      %v374 = vadd.f32 %v373, %v257
      %v375 = vsel %vm205, %v374, -inf
      %376 = vmax.xlane.f32.xlu0 %v375
      %v377 = vpop.xlane.xlu0 %376
      %v378 = vsub.f32 %v374, %v377
      %v379 = vmul.f32 %v378, 1.442695
      %v380 = vpow.pop %v379
      %v381 = vsel %vm205, %v380, 0.0
      %382 = vadd.xlane.f32.xlu0 %v381
      %v383 = vpop.xlane.xlu0 %382
      %v384 = vpack.c.bf16 %v380, %v380
      %385 = vrot.lane.b32.xlu0 %v204, 88
      %v386 = vpop.permute.xlu0 %385
      %v388 = vsel %vm205, %v384, 0
      %v391 = vsel %vm276, %v386, 0
      %393 = vmatprep.subr.bf16.mxu0 0
      %394 = vmatpush1.bf16.msra.mxu0 0
      %395 = vmatprep.subr.bf16.mxu0 0
      %396 = vmatpush1.bf16.msra.mxu0 0
      %397 = vmatprep.subr.bf16.mxu0 0
      %398 = vmatpush1.bf16.msra.mxu0 0
      %399 = vmatprep.subr.bf16.mxu0 0
      %400 = vmatpush1.bf16.msra.mxu0 0
      %401 = vmatprep.subr.bf16.mxu0 0
      %402 = vmatpush1.bf16.msra.mxu0 0
      %403 = vmatprep.subr.bf16.mxu0 0
      %404 = vmatpush1.bf16.msra.mxu0 0
      %405 = vmatprep.subr.bf16.mxu0 0
      %406 = vmatpush1.bf16.msra.mxu0 0
      %407 = vmatprep.subr.bf16.mxu0 0
      %408 = vmatpush1.bf16.msra.mxu0 %v391
      %409 = vmatprep.subr.bf16.mxu0 0
      %410 = vmatpush2.bf16.msra.mxu0 0
      %411 = vmatprep.subr.bf16.mxu0 0
      %412 = vmatpush2.bf16.msra.mxu0 0
      %413 = vmatprep.subr.bf16.mxu0 0
      %414 = vmatpush2.bf16.msra.mxu0 0
      %415 = vmatprep.subr.bf16.mxu0 0
      %416 = vmatpush2.bf16.msra.mxu0 0
      %417 = vmatprep.subr.bf16.mxu0 0
      %418 = vmatpush2.bf16.msra.mxu0 0
      %419 = vmatprep.subr.bf16.mxu0 0
      %420 = vmatpush2.bf16.msra.mxu0 0
      %421 = vmatprep.subr.bf16.mxu0 0
      %422 = vmatpush2.bf16.msra.mxu0 0
      %423 = vmatprep.subr.bf16.mxu0 0
      %424 = vmatpush2.bf16.msra.mxu0 0
      %425 = vmatprep.mubr.bf16.mxu0 0
      %426 = vmatmul.mubr.bf16.gmra.mxu0 %v388
      %v427 = vpop.f32.mrf.mxu0
      %v428 = vadd.f32 0.0, %v427
      %v429 = vpop.f32.mrf.mxu0
      %v430 = vpop.f32.mrf.mxu0
      %v431 = vpop.f32.mrf.mxu0
      %432 = vdwg.mxu0
      %v433 = vrcp.pop %v383
      %v434 = vmul.f32 %v428, %v433
      %435 = vrot.lane.b32.xlu0 %v203, 112
      %v436 = vpop.permute.xlu0 %435
      %437 = vrot.lane.b32.xlu0 %v204, 112
      %v438 = vpop.permute.xlu0 %437
      %v440 = vsel %vm205, %v436, 0
      %v443 = vsel %vm205, %v438, 0
      %445 = vmatprep.subr.bf16.mxu0 0
      %446 = vmatpush1.bf16.xpose.msra.mxu0 0
      %447 = vmatprep.subr.bf16.mxu0 0
      %448 = vmatpush1.bf16.xpose.msra.mxu0 0
      %449 = vmatprep.subr.bf16.mxu0 0
      %450 = vmatpush1.bf16.xpose.msra.mxu0 0
      %451 = vmatprep.subr.bf16.mxu0 0
      %452 = vmatpush1.bf16.xpose.msra.mxu0 0
      %453 = vmatprep.subr.bf16.mxu0 0
      %454 = vmatpush1.bf16.xpose.msra.mxu0 0
      %455 = vmatprep.subr.bf16.mxu0 0
      %456 = vmatpush1.bf16.xpose.msra.mxu0 0
      %457 = vmatprep.subr.bf16.mxu0 0
      %458 = vmatpush1.bf16.xpose.msra.mxu0 0
      %459 = vmatprep.subr.bf16.mxu0 0
      %460 = vmatpush1.bf16.xpose.msra.mxu0 %v443
      %461 = vmatprep.subr.bf16.mxu0 0
      %462 = vmatpush2.bf16.xpose.msra.mxu0 0
      %463 = vmatprep.subr.bf16.mxu0 0
      %464 = vmatpush2.bf16.xpose.msra.mxu0 0
      %465 = vmatprep.subr.bf16.mxu0 0
      %466 = vmatpush2.bf16.xpose.msra.mxu0 0
      %467 = vmatprep.subr.bf16.mxu0 0
      %468 = vmatpush2.bf16.xpose.msra.mxu0 0
      %469 = vmatprep.subr.bf16.mxu0 0
      %470 = vmatpush2.bf16.xpose.msra.mxu0 0
      %471 = vmatprep.subr.bf16.mxu0 0
      %472 = vmatpush2.bf16.xpose.msra.mxu0 0
      %473 = vmatprep.subr.bf16.mxu0 0
      %474 = vmatpush2.bf16.xpose.msra.mxu0 0
      %475 = vmatprep.subr.bf16.mxu0 0
      %476 = vmatpush2.bf16.xpose.msra.mxu0 0
      %477 = vmatprep.mubr.bf16.mxu0 0
      %478 = vmatmul.mubr.bf16.gmra.mxu0 %v440
      %v479 = vpop.f32.mrf.mxu0
      %v480 = vadd.f32 0.0, %v479
      %v481 = vpop.f32.mrf.mxu0
      %v482 = vpop.f32.mrf.mxu0
      %v483 = vpop.f32.mrf.mxu0
      %484 = vdwg.mxu0
      %v485 = vmul.f32 %v480, 0.35355338
      %v486 = vadd.f32 %v485, %v257
      %v487 = vsel %vm205, %v486, -inf
      %488 = vmax.xlane.f32.xlu0 %v487
      %v489 = vpop.xlane.xlu0 %488
      %v490 = vsub.f32 %v486, %v489
      %v491 = vmul.f32 %v490, 1.442695
      %v492 = vpow.pop %v491
      %v493 = vsel %vm205, %v492, 0.0
      %494 = vadd.xlane.f32.xlu0 %v493
      %v495 = vpop.xlane.xlu0 %494
      %v496 = vpack.c.bf16 %v492, %v492
      %497 = vrot.lane.b32.xlu0 %v204, 80
      %v498 = vpop.permute.xlu0 %497
      %v500 = vsel %vm205, %v496, 0
      %v503 = vsel %vm276, %v498, 0
      %505 = vmatprep.subr.bf16.mxu0 0
      %506 = vmatpush1.bf16.msra.mxu0 0
      %507 = vmatprep.subr.bf16.mxu0 0
      %508 = vmatpush1.bf16.msra.mxu0 0
      %509 = vmatprep.subr.bf16.mxu0 0
      %510 = vmatpush1.bf16.msra.mxu0 0
      %511 = vmatprep.subr.bf16.mxu0 0
      %512 = vmatpush1.bf16.msra.mxu0 0
      %513 = vmatprep.subr.bf16.mxu0 0
      %514 = vmatpush1.bf16.msra.mxu0 0
      %515 = vmatprep.subr.bf16.mxu0 0
      %516 = vmatpush1.bf16.msra.mxu0 0
      %517 = vmatprep.subr.bf16.mxu0 0
      %518 = vmatpush1.bf16.msra.mxu0 0
      %519 = vmatprep.subr.bf16.mxu0 0
      %520 = vmatpush1.bf16.msra.mxu0 %v503
      %521 = vmatprep.subr.bf16.mxu0 0
      %522 = vmatpush2.bf16.msra.mxu0 0
      %523 = vmatprep.subr.bf16.mxu0 0
      %524 = vmatpush2.bf16.msra.mxu0 0
      %525 = vmatprep.subr.bf16.mxu0 0
      %526 = vmatpush2.bf16.msra.mxu0 0
      %527 = vmatprep.subr.bf16.mxu0 0
      %528 = vmatpush2.bf16.msra.mxu0 0
      %529 = vmatprep.subr.bf16.mxu0 0
      %530 = vmatpush2.bf16.msra.mxu0 0
      %531 = vmatprep.subr.bf16.mxu0 0
      %532 = vmatpush2.bf16.msra.mxu0 0
      %533 = vmatprep.subr.bf16.mxu0 0
      %534 = vmatpush2.bf16.msra.mxu0 0
      %535 = vmatprep.subr.bf16.mxu0 0
      %536 = vmatpush2.bf16.msra.mxu0 0
      %537 = vmatprep.mubr.bf16.mxu0 0
      %538 = vmatmul.mubr.bf16.gmra.mxu0 %v500
      %v539 = vpop.f32.mrf.mxu0
      %v540 = vadd.f32 0.0, %v539
      %v541 = vpop.f32.mrf.mxu0
      %v542 = vpop.f32.mrf.mxu0
      %v543 = vpop.f32.mrf.mxu0
      %544 = vdwg.mxu0
      %v545 = vrcp.pop %v495
      %v546 = vmul.f32 %v540, %v545
      %547 = vrot.lane.b32.xlu0 %v203, 104
      %v548 = vpop.permute.xlu0 %547
      %549 = vrot.lane.b32.xlu0 %v204, 104
      %v550 = vpop.permute.xlu0 %549
      %v552 = vsel %vm205, %v548, 0
      %v555 = vsel %vm205, %v550, 0
      %557 = vmatprep.subr.bf16.mxu0 0
      %558 = vmatpush1.bf16.xpose.msra.mxu0 0
      %559 = vmatprep.subr.bf16.mxu0 0
      %560 = vmatpush1.bf16.xpose.msra.mxu0 0
      %561 = vmatprep.subr.bf16.mxu0 0
      %562 = vmatpush1.bf16.xpose.msra.mxu0 0
      %563 = vmatprep.subr.bf16.mxu0 0
      %564 = vmatpush1.bf16.xpose.msra.mxu0 0
      %565 = vmatprep.subr.bf16.mxu0 0
      %566 = vmatpush1.bf16.xpose.msra.mxu0 0
      %567 = vmatprep.subr.bf16.mxu0 0
      %568 = vmatpush1.bf16.xpose.msra.mxu0 0
      %569 = vmatprep.subr.bf16.mxu0 0
      %570 = vmatpush1.bf16.xpose.msra.mxu0 0
      %571 = vmatprep.subr.bf16.mxu0 0
      %572 = vmatpush1.bf16.xpose.msra.mxu0 %v555
      %573 = vmatprep.subr.bf16.mxu0 0
      %574 = vmatpush2.bf16.xpose.msra.mxu0 0
      %575 = vmatprep.subr.bf16.mxu0 0
      %576 = vmatpush2.bf16.xpose.msra.mxu0 0
      %577 = vmatprep.subr.bf16.mxu0 0
      %578 = vmatpush2.bf16.xpose.msra.mxu0 0
      %579 = vmatprep.subr.bf16.mxu0 0
      %580 = vmatpush2.bf16.xpose.msra.mxu0 0
      %581 = vmatprep.subr.bf16.mxu0 0
      %582 = vmatpush2.bf16.xpose.msra.mxu0 0
      %583 = vmatprep.subr.bf16.mxu0 0
      %584 = vmatpush2.bf16.xpose.msra.mxu0 0
      %585 = vmatprep.subr.bf16.mxu0 0
      %586 = vmatpush2.bf16.xpose.msra.mxu0 0
      %587 = vmatprep.subr.bf16.mxu0 0
      %588 = vmatpush2.bf16.xpose.msra.mxu0 0
      %589 = vmatprep.mubr.bf16.mxu0 0
      %590 = vmatmul.mubr.bf16.gmra.mxu0 %v552
      %v591 = vpop.f32.mrf.mxu0
      %v592 = vadd.f32 0.0, %v591
      %v593 = vpop.f32.mrf.mxu0
      %v594 = vpop.f32.mrf.mxu0
      %v595 = vpop.f32.mrf.mxu0
      %596 = vdwg.mxu0
      %v597 = vmul.f32 %v592, 0.35355338
      %v598 = vadd.f32 %v597, %v257
      %v599 = vsel %vm205, %v598, -inf
      %600 = vmax.xlane.f32.xlu0 %v599
      %v601 = vpop.xlane.xlu0 %600
      %v602 = vsub.f32 %v598, %v601
      %v603 = vmul.f32 %v602, 1.442695
      %v604 = vpow.pop %v603
      %v605 = vsel %vm205, %v604, 0.0
      %606 = vadd.xlane.f32.xlu0 %v605
      %v607 = vpop.xlane.xlu0 %606
      %v608 = vpack.c.bf16 %v604, %v604
      %609 = vrot.lane.b32.xlu0 %v204, 72
      %v610 = vpop.permute.xlu0 %609
      %v612 = vsel %vm205, %v608, 0
      %v615 = vsel %vm276, %v610, 0
      %617 = vmatprep.subr.bf16.mxu0 0
      %618 = vmatpush1.bf16.msra.mxu0 0
      %619 = vmatprep.subr.bf16.mxu0 0
      %620 = vmatpush1.bf16.msra.mxu0 0
      %621 = vmatprep.subr.bf16.mxu0 0
      %622 = vmatpush1.bf16.msra.mxu0 0
      %623 = vmatprep.subr.bf16.mxu0 0
      %624 = vmatpush1.bf16.msra.mxu0 0
      %625 = vmatprep.subr.bf16.mxu0 0
      %626 = vmatpush1.bf16.msra.mxu0 0
      %627 = vmatprep.subr.bf16.mxu0 0
      %628 = vmatpush1.bf16.msra.mxu0 0
      %629 = vmatprep.subr.bf16.mxu0 0
      %630 = vmatpush1.bf16.msra.mxu0 0
      %631 = vmatprep.subr.bf16.mxu0 0
      %632 = vmatpush1.bf16.msra.mxu0 %v615
      %633 = vmatprep.subr.bf16.mxu0 0
      %634 = vmatpush2.bf16.msra.mxu0 0
      %635 = vmatprep.subr.bf16.mxu0 0
      %636 = vmatpush2.bf16.msra.mxu0 0
      %637 = vmatprep.subr.bf16.mxu0 0
      %638 = vmatpush2.bf16.msra.mxu0 0
      %639 = vmatprep.subr.bf16.mxu0 0
      %640 = vmatpush2.bf16.msra.mxu0 0
      %641 = vmatprep.subr.bf16.mxu0 0
      %642 = vmatpush2.bf16.msra.mxu0 0
      %643 = vmatprep.subr.bf16.mxu0 0
      %644 = vmatpush2.bf16.msra.mxu0 0
      %645 = vmatprep.subr.bf16.mxu0 0
      %646 = vmatpush2.bf16.msra.mxu0 0
      %647 = vmatprep.subr.bf16.mxu0 0
      %648 = vmatpush2.bf16.msra.mxu0 0
      %649 = vmatprep.mubr.bf16.mxu0 0
      %650 = vmatmul.mubr.bf16.gmra.mxu0 %v612
      %v651 = vpop.f32.mrf.mxu0
      %v652 = vadd.f32 0.0, %v651
      %v653 = vpop.f32.mrf.mxu0
      %v654 = vpop.f32.mrf.mxu0
      %v655 = vpop.f32.mrf.mxu0
      %656 = vdwg.mxu0
      %v657 = vrcp.pop %v607
      %v658 = vmul.f32 %v652, %v657
      %660 = vrot.lane.b32.xlu0 %v434, 8
      %v661 = vpop.permute.xlu0 %660
      %664 = vrot.lane.b32.xlu0 %v546, 16
      %v665 = vpop.permute.xlu0 %664
      %668 = vrot.lane.b32.xlu0 %v658, 24
      %v669 = vpop.permute.xlu0 %668
      %v671 = vsel %vm205, %v321, %v661
      %vm672 = vcmask 130048
      %v673 = vsel %vm672, %v671, %v665
      %vm674 = vcmask 195584
      %v675 = vsel %vm674, %v673, %v669
      %v676 = vpack.c.bf16 %v675, %v675
      %vm677 = vcmask 257024
      %678 = vst.msk [vmem:[%s196] sm:$0xf] %vm677, %v676
      %p679 = scmp.lt.s32.totalorder %s14, 1
      %s680 = scalar_select %p679, %s14, 1
      %s681 = smul.addr %s680, 4
      %s682 = scalar_lea.vmem %s3, %s681
      // Predicated region
      $region33: #{encoder_decoder_forward.46} parent=31 // pred_check
        %p683 = pneg %p110
      $region34: #{encoder_decoder_forward.46} parent=31 // pred_check_branch
        %685 = sbr.rel (%p683) target = $region36
      $region35: #{encoder_decoder_forward.46} parent=31 // pred_region
        _
      $region36: #{encoder_decoder_forward.46} parent=31 // pred_fallthru
        _
    $region32: #{encoder_decoder_forward.46} parent=5 // pred_fallthru
      _
    %p686 = scmp.le.s32.totalorder 2, %s9
    // Predicated region
    $region37: #{encoder_decoder_forward.46} parent=5 // pred_check
      %p687 = pneg %p686
    $region38: #{encoder_decoder_forward.46} parent=5 // pred_check_branch
      %689 = sbr.rel (%p687) target = $region40
    $region39: #{encoder_decoder_forward.46} parent=5 // pred_region
      %s690 = ssub.s32 %s9, 2
      // Predicated region
      $region41: #{encoder_decoder_forward.46} parent=39 // pred_check
        %p691 = pneg %p116
      $region42: #{encoder_decoder_forward.46} parent=39 // pred_check_branch
        %693 = sbr.rel (%p691) target = $region44
      $region43: #{encoder_decoder_forward.46} parent=39 // pred_region
        %p694 = scmp.lt.s32.totalorder %s15, 1
        %s695 = scalar_select %p694, %s15, 1
        %s696 = smul.addr %s695, 4
        %s697 = scalar_lea.vmem %s3, %s696
      $region44: #{encoder_decoder_forward.46} parent=39 // pred_fallthru
        _
    $region40: #{encoder_decoder_forward.46} parent=5 // pred_fallthru
      _
  $region6: #{encoder_decoder_forward.46} parent=0 // loop_footer
    %s13 = sadd.s32 1, %s9
  $region7: #{encoder_decoder_forward.46} parent=0 // loop_footer_branch
    %8 = sbr.rel target = $region3
  $region8: #{encoder_decoder_forward.46} parent=0 // loop_exit
    _

</llo_original>
